<compile_context>
chip_gen: v6e
topology: v6e:2x2x1
jax: 0.10.0
libtpu: 0.0.40
codegen_flags: <defaults>
</compile_context>

<pallas_src>
import jax
import jax.numpy as jnp
from jax import lax
from jax.experimental import pallas as pl
from jax.experimental.pallas import tpu as pltpu


# (parity, tap) pairs whose padded-input offset is dr = parity + tap, dr in {0,1,2}
_TAP_PAIRS = (((0, 0),), ((0, 1), (1, 0)), ((1, 1),))


def _upsample_conv_kernel(x_ref, w_ref, b_ref, scol_ref, srow_ref, o_ref):
    """Fused nearest-2x upsample + 3x3 conv (padding=1), one output row band.

    x_ref:    (1, C, H+2, W+2)  zero-padded ORIGINAL-resolution NCHW input
                                (resident in VMEM across the row-band grid axis)
    w_ref:    (4, 4, O, C)      effective 2x2-tap sub-pixel weights [a*2+b, r*2+s]
    b_ref:    (O, 1, 1)         bias
    scol_ref: (2, W, 2W)        constant 0/1 column-interleave matrices (even/odd)
    srow_ref: (2, TH, 2TH)      constant 0/1 row-interleave matrices (even/odd)
    o_ref:    (1, O, 2*TH, 2*W) NCHW output row band (lane dim = full width)
    """
    O, TH2, Wu = o_ref.shape[1], o_ref.shape[2], o_ref.shape[3]
    TH, W = TH2 // 2, Wu // 2

    # Row band [h*TH, h*TH + TH + 2) of the padded input (2-row halo).
    r0 = pl.multiple_of(pl.program_id(1) * TH, TH)
    xt = x_ref[0, :, pl.ds(r0, TH + 2), :].astype(jnp.float32)   # (C, TH+2, W+2)

    # Load the tiny effective weights once; static slices below are in-register.
    w = w_ref[...].astype(jnp.float32)                           # (4, 4, O, C)

    # One f32 accumulator per output sub-pixel parity (a, b).
    acc = [[jnp.zeros((O, TH, W), jnp.float32) for _ in range(2)]
           for _ in range(2)]

    # 9 shifted views of the 1x-resolution tile; each feeds 1..4 sub-pixel
    # accumulators with its own (O, C) weight block (VPU broadcast-FMA).
    # TODO(synk): for C,O >= 128 switch this contraction to an MXU matmul
    # with K = 4*C (taps folded into K) in bf16.
    for dr in range(3):
        for dc in range(3):
            slab = xt[:, dr:dr + TH, dc:dc + W]                  # (C, TH, W)
            for a, r in _TAP_PAIRS[dr]:
                for b, s in _TAP_PAIRS[dc]:
                    wab = w[a * 2 + b, r * 2 + s]                # (O, C)
                    contrib = jnp.sum(wab[:, :, None, None] * slab[None], axis=1)
                    acc[a][b] = acc[a][b] + contrib              # (O, TH, W)

    # ---- pixel-shuffle the 4 sub-pixel images back into the dense NCHW tile.
    # Width (lane) interleave via constant 0/1 spread matrices on the MXU
    # (matrices precomputed wrapper-side; no per-step iota/compare work).
    s_even = scol_ref[0].astype(jnp.float32)                     # (W, Wu)
    s_odd = scol_ref[1].astype(jnp.float32)

    def spread_cols(y_even, y_odd):                              # -> (O, TH, Wu)
        z = jnp.dot(y_even.reshape(O * TH, W), s_even,
                    preferred_element_type=jnp.float32)
        z = z + jnp.dot(y_odd.reshape(O * TH, W), s_odd,
                        preferred_element_type=jnp.float32)
        return z.reshape(O, TH, Wu)

    z0 = spread_cols(acc[0][0], acc[0][1])     # even output rows
    z1 = spread_cols(acc[1][0], acc[1][1])     # odd output rows

    # Height (sublane) interleave: same trick on the transposed tile.
    r_even = srow_ref[0].astype(jnp.float32)                     # (TH, TH2)
    r_odd = srow_ref[1].astype(jnp.float32)

    zt0 = jnp.swapaxes(z0, 1, 2).reshape(O * Wu, TH)
    zt1 = jnp.swapaxes(z1, 1, 2).reshape(O * Wu, TH)
    rows = jnp.dot(zt0, r_even, preferred_element_type=jnp.float32)
    rows = rows + jnp.dot(zt1, r_odd, preferred_element_type=jnp.float32)
    out = jnp.swapaxes(rows.reshape(O, Wu, TH2), 1, 2)           # (O, 2TH, Wu)

    out = out + b_ref[...].astype(jnp.float32)                   # bias, once
    o_ref[0] = out.astype(o_ref.dtype)


def _pick_row_tile(H, target):
    # 2*TH output rows must be sublane-aligned (multiple of 8) unless TH == H.
    for t in range(min(H, target), 0, -1):
        if H % t == 0 and (2 * t) % 8 == 0:
            return t
    return H


def _padded_block_bytes(shape, itemsize):
    s = list(shape)
    if len(s) >= 1:
        s[-1] = -(-s[-1] // 128) * 128
    if len(s) >= 2:
        s[-2] = -(-s[-2] // 8) * 8
    n = 1
    for d in s:
        n *= d
    return n * itemsize


def _interleave_matrices(n, dtype):
    """(2, n, 2n) constant 0/1 spread matrices: m[p, q, 2q+p] = 1."""
    q = jnp.arange(n)[:, None]
    j = jnp.arange(2 * n)[None, :]
    return jnp.stack([(j == 2 * q).astype(dtype),
                      (j == 2 * q + 1).astype(dtype)], axis=0)


def upsample_forward(x, weight=None, bias=None, *, use_conv=True, row_tile=8):
    """Pallas equivalent of Upsample.forward (dims=2). x: (N, C, H, W) NCHW."""
    N, C, H, W = x.shape
    if not use_conv:
        # pure nearest-neighbour replication, no conv: plain XLA data movement
        return jnp.repeat(jnp.repeat(x, 2, axis=2), 2, axis=3)
    # TODO(synk): dims=1 and dims=3 variants of the module are not implemented.

    assert weight.shape[1] == C, "channel mismatch"
    O = weight.shape[0]
    Hu, Wu = 2 * H, 2 * W
    TH = _pick_row_tile(H, row_tile)

    # Only wrapper-side prep: zero-pad the ORIGINAL-resolution input by 1.
    xp = jnp.pad(x, ((0, 0), (0, 0), (1, 1), (1, 1)))            # (N, C, H+2, W+2)

    # Effective 2x2-tap sub-pixel weights: conv3x3(nearest2x(x)) decomposes,
    # per output parity (a, b), into a 2x2-tap conv on the 1x input whose tap
    # weights are sums of the 3x3 weights.
    G = (((0,), (1, 2)), ((0, 1), (2,)))        # G[parity][tap] -> dy/dx group
    w_eff = jnp.stack([
        jnp.stack([
            sum(weight[:, :, dy, dx] for dy in G[a][r] for dx in G[b][s])
            for r in (0, 1) for s in (0, 1)
        ], axis=0)
        for a in (0, 1) for b in (0, 1)
    ], axis=0).astype(x.dtype)                                   # (4, 4, O, C)
    b3 = bias.reshape(O, 1, 1).astype(x.dtype)

    # Constant pixel-shuffle interleave matrices (computed once here, resident
    # in VMEM across the whole grid — no per-step iota/compare VPU work).
    s_col = _interleave_matrices(W, jnp.float32)                 # (2, W, Wu)
    s_row = _interleave_matrices(TH, jnp.float32)                # (2, TH, 2TH)

    # VMEM budgeting: raise the scoped limit only when the tiles need it
    # (v5e default is 16 MiB); cap below v7x's 64 MiB physical VMEM.
    itemsize = jnp.dtype(x.dtype).itemsize
    est = (2 * (_padded_block_bytes((C, H + 2, W + 2), itemsize)
                + _padded_block_bytes((O, 2 * TH, Wu), itemsize))
           + _padded_block_bytes((4, 4, O, C), itemsize)
           + _padded_block_bytes((2, W, Wu), 4)
           + _padded_block_bytes((2, TH, 2 * TH), 4) + (4 << 20))
    cparams = dict(dimension_semantics=("parallel", "parallel"))
    if est > 12 * 1024 * 1024:
        cparams["vmem_limit_bytes"] = int(min(max(est, 32 * 1024 * 1024),
                                              64 * 1024 * 1024))

    # Advisory scheduling hint: 4*C MACs per output element for the fused
    # sub-pixel conv, plus the tiny 0/1 interleave matmuls.
    cost = pl.CostEstimate(
        flops=int(2 * N * O * Hu * Wu * (4 * C + 2)),
        transcendentals=0,
        bytes_accessed=int(itemsize * (N * C * (H + 2) * (W + 2)
                                       + N * O * Hu * Wu + 16 * O * C + O)))

    out = pl.pallas_call(
        _upsample_conv_kernel,
        out_shape=jax.ShapeDtypeStruct((N, O, Hu, Wu), x.dtype),
        grid=(N, H // TH),
        in_specs=[
            # padded 1x input: whole image per batch element, resident across
            # the row-band axis (block index ignores h -> fetched once per n).
            pl.BlockSpec((1, C, H + 2, W + 2), lambda n, h: (n, 0, 0, 0)),
            pl.BlockSpec((4, 4, O, C), lambda n, h: (0, 0, 0, 0)),
            pl.BlockSpec((O, 1, 1), lambda n, h: (0, 0, 0)),
            pl.BlockSpec((2, W, Wu), lambda n, h: (0, 0, 0)),
            pl.BlockSpec((2, TH, 2 * TH), lambda n, h: (0, 0, 0)),
        ],
        # dense NCHW output row band; lane dim = full output width.
        out_specs=pl.BlockSpec((1, O, 2 * TH, Wu), lambda n, h: (n, 0, h, 0)),
        compiler_params=pltpu.CompilerParams(**cparams),
        cost_estimate=cost,
    )(xp, w_eff, b3, s_col, s_row)
    return out


if __name__ == "__main__":
    key = jax.random.PRNGKey(0)
    kx, kw, kb = jax.random.split(key, 3)

    # Upsample(channels=4, use_conv=True, dims=2) on a small NCHW input
    N, C, H, W = 2, 4, 16, 16
    out_channels = C
    x = jax.random.normal(kx, (N, C, H, W), dtype=jnp.float32)
    weight = 0.1 * jax.random.normal(kw, (out_channels, C, 3, 3), dtype=jnp.float32)
    bias = 0.1 * jax.random.normal(kb, (out_channels,), dtype=jnp.float32)

    out = jax.block_until_ready(upsample_forward(x, weight, bias, use_conv=True))
    assert out.shape == (N, out_channels, 2 * H, 2 * W)

    # pure-XLA reference check (nearest upsample + conv2d, padding=1)
    x_up = jnp.repeat(jnp.repeat(x, 2, axis=2), 2, axis=3)
    ref = lax.conv_general_dilated(
        x_up, weight, window_strides=(1, 1), padding=((1, 1), (1, 1)),
        dimension_numbers=("NCHW", "OIHW", "NCHW")) + bias[None, :, None, None]
    max_err = float(jnp.max(jnp.abs(out - ref)))
    assert jnp.allclose(out, ref, atol=1e-4, rtol=1e-4), max_err

    print("KERNEL_OK")
</pallas_src>

<mosaic_0001>
module attributes {stable_mosaic.version = 11 : i64} {
  func.func @_upsample_conv_kernel(%arg0: i32, %arg1: i32, %arg2: memref<1x4x18x18xf32, #tpu.memory_space<vmem>>, %arg3: memref<4x4x4x4xf32, #tpu.memory_space<vmem>>, %arg4: memref<4x1x1xf32, #tpu.memory_space<vmem>>, %arg5: memref<2x16x32xf32, #tpu.memory_space<vmem>>, %arg6: memref<2x8x16xf32, #tpu.memory_space<vmem>>, %arg7: memref<1x4x16x32xf32, #tpu.memory_space<vmem>>) attributes {dimension_semantics = [#tpu.dimension_semantics<parallel>, #tpu.dimension_semantics<parallel>], iteration_bounds = array<i64: 2, 2>, scalar_prefetch = 0 : i64, scratch_operands = 0 : i64, tpu.core_type = #tpu.core_type<tc>, window_params = [{transform_indices = @transform_0, window_bounds = array<i64: 1, 4, 18, 18>}, {pipeline_mode = #tpu.pipeline_mode<synchronous>, transform_indices = @transform_1, window_bounds = array<i64: 4, 4, 4, 4>}, {pipeline_mode = #tpu.pipeline_mode<synchronous>, transform_indices = @transform_2, window_bounds = array<i64: 4, 1, 1>}, {pipeline_mode = #tpu.pipeline_mode<synchronous>, transform_indices = @transform_3, window_bounds = array<i64: 2, 16, 32>}, {pipeline_mode = #tpu.pipeline_mode<synchronous>, transform_indices = @transform_4, window_bounds = array<i64: 2, 8, 16>}, {transform_indices = @transform_5, window_bounds = array<i64: 1, 4, 16, 32>}]} {
    %c8_i32 = arith.constant 8 : i32
    %0 = arith.muli %arg1, %c8_i32 : i32
    %1 = tpu.assume_multiple %0, 8 : i32
    %c0 = arith.constant 0 : index
    %c0_0 = arith.constant 0 : index
    %2 = arith.index_cast %1 : i32 to index
    %c0_1 = arith.constant 0 : index
    %3 = vector.load %arg2[%c0, %c0_0, %2, %c0_1] : memref<1x4x18x18xf32, #tpu.memory_space<vmem>>, vector<1x4x10x18xf32>
    %4 = vector.shape_cast %3 : vector<1x4x10x18xf32> to vector<4x10x18xf32>
    %c0_2 = arith.constant 0 : index
    %c0_3 = arith.constant 0 : index
    %c0_4 = arith.constant 0 : index
    %c0_5 = arith.constant 0 : index
    %5 = vector.load %arg3[%c0_2, %c0_3, %c0_4, %c0_5] : memref<4x4x4x4xf32, #tpu.memory_space<vmem>>, vector<4x4x4x4xf32>
    %cst = arith.constant 0.000000e+00 : f32
    %6 = vector.broadcast %cst : f32 to vector<4x8x16xf32>
    %cst_6 = arith.constant 0.000000e+00 : f32
    %7 = vector.broadcast %cst_6 : f32 to vector<4x8x16xf32>
    %cst_7 = arith.constant 0.000000e+00 : f32
    %8 = vector.broadcast %cst_7 : f32 to vector<4x8x16xf32>
    %cst_8 = arith.constant 0.000000e+00 : f32
    %9 = vector.broadcast %cst_8 : f32 to vector<4x8x16xf32>
    %10 = vector.extract_strided_slice %4 {offsets = [0, 0, 0], sizes = [4, 8, 16], strides = [1, 1, 1]} : vector<4x10x18xf32> to vector<4x8x16xf32>
    %11 = vector.extract_strided_slice %5 {offsets = [0, 0, 0, 0], sizes = [1, 1, 4, 4], strides = [1, 1, 1, 1]} : vector<4x4x4x4xf32> to vector<1x1x4x4xf32>
    %12 = vector.shape_cast %11 : vector<1x1x4x4xf32> to vector<4x4xf32>
    %13 = vector.shape_cast %12 : vector<4x4xf32> to vector<4x4x1x1xf32>
    %14 = vector.shape_cast %10 : vector<4x8x16xf32> to vector<1x4x8x16xf32>
    %15 = vector.broadcast %13 : vector<4x4x1x1xf32> to vector<4x4x8x16xf32>
    %16 = vector.broadcast %14 : vector<1x4x8x16xf32> to vector<4x4x8x16xf32>
    %17 = arith.mulf %15, %16 : vector<4x4x8x16xf32>
    %cst_9 = arith.constant dense<0.000000e+00> : vector<4x8x16xf32>
    %18 = vector.multi_reduction <add>, %17, %cst_9 [1] : vector<4x4x8x16xf32> to vector<4x8x16xf32>
    %19 = arith.addf %6, %18 : vector<4x8x16xf32>
    %20 = vector.extract_strided_slice %4 {offsets = [0, 0, 1], sizes = [4, 8, 16], strides = [1, 1, 1]} : vector<4x10x18xf32> to vector<4x8x16xf32>
    %21 = vector.extract_strided_slice %5 {offsets = [0, 1, 0, 0], sizes = [1, 1, 4, 4], strides = [1, 1, 1, 1]} : vector<4x4x4x4xf32> to vector<1x1x4x4xf32>
    %22 = vector.shape_cast %21 : vector<1x1x4x4xf32> to vector<4x4xf32>
    %23 = vector.shape_cast %22 : vector<4x4xf32> to vector<4x4x1x1xf32>
    %24 = vector.shape_cast %20 : vector<4x8x16xf32> to vector<1x4x8x16xf32>
    %25 = vector.broadcast %23 : vector<4x4x1x1xf32> to vector<4x4x8x16xf32>
    %26 = vector.broadcast %24 : vector<1x4x8x16xf32> to vector<4x4x8x16xf32>
    %27 = arith.mulf %25, %26 : vector<4x4x8x16xf32>
    %cst_10 = arith.constant dense<0.000000e+00> : vector<4x8x16xf32>
    %28 = vector.multi_reduction <add>, %27, %cst_10 [1] : vector<4x4x8x16xf32> to vector<4x8x16xf32>
    %29 = arith.addf %19, %28 : vector<4x8x16xf32>
    %30 = vector.extract_strided_slice %5 {offsets = [1, 0, 0, 0], sizes = [1, 1, 4, 4], strides = [1, 1, 1, 1]} : vector<4x4x4x4xf32> to vector<1x1x4x4xf32>
    %31 = vector.shape_cast %30 : vector<1x1x4x4xf32> to vector<4x4xf32>
    %32 = vector.shape_cast %31 : vector<4x4xf32> to vector<4x4x1x1xf32>
    %33 = vector.shape_cast %20 : vector<4x8x16xf32> to vector<1x4x8x16xf32>
    %34 = vector.broadcast %32 : vector<4x4x1x1xf32> to vector<4x4x8x16xf32>
    %35 = vector.broadcast %33 : vector<1x4x8x16xf32> to vector<4x4x8x16xf32>
    %36 = arith.mulf %34, %35 : vector<4x4x8x16xf32>
    %cst_11 = arith.constant dense<0.000000e+00> : vector<4x8x16xf32>
    %37 = vector.multi_reduction <add>, %36, %cst_11 [1] : vector<4x4x8x16xf32> to vector<4x8x16xf32>
    %38 = arith.addf %7, %37 : vector<4x8x16xf32>
    %39 = vector.extract_strided_slice %4 {offsets = [0, 0, 2], sizes = [4, 8, 16], strides = [1, 1, 1]} : vector<4x10x18xf32> to vector<4x8x16xf32>
    %40 = vector.extract_strided_slice %5 {offsets = [1, 1, 0, 0], sizes = [1, 1, 4, 4], strides = [1, 1, 1, 1]} : vector<4x4x4x4xf32> to vector<1x1x4x4xf32>
    %41 = vector.shape_cast %40 : vector<1x1x4x4xf32> to vector<4x4xf32>
    %42 = vector.shape_cast %41 : vector<4x4xf32> to vector<4x4x1x1xf32>
    %43 = vector.shape_cast %39 : vector<4x8x16xf32> to vector<1x4x8x16xf32>
    %44 = vector.broadcast %42 : vector<4x4x1x1xf32> to vector<4x4x8x16xf32>
    %45 = vector.broadcast %43 : vector<1x4x8x16xf32> to vector<4x4x8x16xf32>
    %46 = arith.mulf %44, %45 : vector<4x4x8x16xf32>
    %cst_12 = arith.constant dense<0.000000e+00> : vector<4x8x16xf32>
    %47 = vector.multi_reduction <add>, %46, %cst_12 [1] : vector<4x4x8x16xf32> to vector<4x8x16xf32>
    %48 = arith.addf %38, %47 : vector<4x8x16xf32>
    %49 = vector.extract_strided_slice %4 {offsets = [0, 1, 0], sizes = [4, 8, 16], strides = [1, 1, 1]} : vector<4x10x18xf32> to vector<4x8x16xf32>
    %50 = vector.extract_strided_slice %5 {offsets = [0, 2, 0, 0], sizes = [1, 1, 4, 4], strides = [1, 1, 1, 1]} : vector<4x4x4x4xf32> to vector<1x1x4x4xf32>
    %51 = vector.shape_cast %50 : vector<1x1x4x4xf32> to vector<4x4xf32>
    %52 = vector.shape_cast %51 : vector<4x4xf32> to vector<4x4x1x1xf32>
    %53 = vector.shape_cast %49 : vector<4x8x16xf32> to vector<1x4x8x16xf32>
    %54 = vector.broadcast %52 : vector<4x4x1x1xf32> to vector<4x4x8x16xf32>
    %55 = vector.broadcast %53 : vector<1x4x8x16xf32> to vector<4x4x8x16xf32>
    %56 = arith.mulf %54, %55 : vector<4x4x8x16xf32>
    %cst_13 = arith.constant dense<0.000000e+00> : vector<4x8x16xf32>
    %57 = vector.multi_reduction <add>, %56, %cst_13 [1] : vector<4x4x8x16xf32> to vector<4x8x16xf32>
    %58 = arith.addf %29, %57 : vector<4x8x16xf32>
    %59 = vector.extract_strided_slice %5 {offsets = [2, 0, 0, 0], sizes = [1, 1, 4, 4], strides = [1, 1, 1, 1]} : vector<4x4x4x4xf32> to vector<1x1x4x4xf32>
    %60 = vector.shape_cast %59 : vector<1x1x4x4xf32> to vector<4x4xf32>
    %61 = vector.shape_cast %60 : vector<4x4xf32> to vector<4x4x1x1xf32>
    %62 = vector.shape_cast %49 : vector<4x8x16xf32> to vector<1x4x8x16xf32>
    %63 = vector.broadcast %61 : vector<4x4x1x1xf32> to vector<4x4x8x16xf32>
    %64 = vector.broadcast %62 : vector<1x4x8x16xf32> to vector<4x4x8x16xf32>
    %65 = arith.mulf %63, %64 : vector<4x4x8x16xf32>
    %cst_14 = arith.constant dense<0.000000e+00> : vector<4x8x16xf32>
    %66 = vector.multi_reduction <add>, %65, %cst_14 [1] : vector<4x4x8x16xf32> to vector<4x8x16xf32>
    %67 = arith.addf %8, %66 : vector<4x8x16xf32>
    %68 = vector.extract_strided_slice %4 {offsets = [0, 1, 1], sizes = [4, 8, 16], strides = [1, 1, 1]} : vector<4x10x18xf32> to vector<4x8x16xf32>
    %69 = vector.extract_strided_slice %5 {offsets = [0, 3, 0, 0], sizes = [1, 1, 4, 4], strides = [1, 1, 1, 1]} : vector<4x4x4x4xf32> to vector<1x1x4x4xf32>
    %70 = vector.shape_cast %69 : vector<1x1x4x4xf32> to vector<4x4xf32>
    %71 = vector.shape_cast %70 : vector<4x4xf32> to vector<4x4x1x1xf32>
    %72 = vector.shape_cast %68 : vector<4x8x16xf32> to vector<1x4x8x16xf32>
    %73 = vector.broadcast %71 : vector<4x4x1x1xf32> to vector<4x4x8x16xf32>
    %74 = vector.broadcast %72 : vector<1x4x8x16xf32> to vector<4x4x8x16xf32>
    %75 = arith.mulf %73, %74 : vector<4x4x8x16xf32>
    %cst_15 = arith.constant dense<0.000000e+00> : vector<4x8x16xf32>
    %76 = vector.multi_reduction <add>, %75, %cst_15 [1] : vector<4x4x8x16xf32> to vector<4x8x16xf32>
    %77 = arith.addf %58, %76 : vector<4x8x16xf32>
    %78 = vector.extract_strided_slice %5 {offsets = [1, 2, 0, 0], sizes = [1, 1, 4, 4], strides = [1, 1, 1, 1]} : vector<4x4x4x4xf32> to vector<1x1x4x4xf32>
    %79 = vector.shape_cast %78 : vector<1x1x4x4xf32> to vector<4x4xf32>
    %80 = vector.shape_cast %79 : vector<4x4xf32> to vector<4x4x1x1xf32>
    %81 = vector.shape_cast %68 : vector<4x8x16xf32> to vector<1x4x8x16xf32>
    %82 = vector.broadcast %80 : vector<4x4x1x1xf32> to vector<4x4x8x16xf32>
    %83 = vector.broadcast %81 : vector<1x4x8x16xf32> to vector<4x4x8x16xf32>
    %84 = arith.mulf %82, %83 : vector<4x4x8x16xf32>
    %cst_16 = arith.constant dense<0.000000e+00> : vector<4x8x16xf32>
    %85 = vector.multi_reduction <add>, %84, %cst_16 [1] : vector<4x4x8x16xf32> to vector<4x8x16xf32>
    %86 = arith.addf %48, %85 : vector<4x8x16xf32>
    %87 = vector.extract_strided_slice %5 {offsets = [2, 1, 0, 0], sizes = [1, 1, 4, 4], strides = [1, 1, 1, 1]} : vector<4x4x4x4xf32> to vector<1x1x4x4xf32>
    %88 = vector.shape_cast %87 : vector<1x1x4x4xf32> to vector<4x4xf32>
    %89 = vector.shape_cast %88 : vector<4x4xf32> to vector<4x4x1x1xf32>
    %90 = vector.shape_cast %68 : vector<4x8x16xf32> to vector<1x4x8x16xf32>
    %91 = vector.broadcast %89 : vector<4x4x1x1xf32> to vector<4x4x8x16xf32>
    %92 = vector.broadcast %90 : vector<1x4x8x16xf32> to vector<4x4x8x16xf32>
    %93 = arith.mulf %91, %92 : vector<4x4x8x16xf32>
    %cst_17 = arith.constant dense<0.000000e+00> : vector<4x8x16xf32>
    %94 = vector.multi_reduction <add>, %93, %cst_17 [1] : vector<4x4x8x16xf32> to vector<4x8x16xf32>
    %95 = arith.addf %67, %94 : vector<4x8x16xf32>
    %96 = vector.extract_strided_slice %5 {offsets = [3, 0, 0, 0], sizes = [1, 1, 4, 4], strides = [1, 1, 1, 1]} : vector<4x4x4x4xf32> to vector<1x1x4x4xf32>
    %97 = vector.shape_cast %96 : vector<1x1x4x4xf32> to vector<4x4xf32>
    %98 = vector.shape_cast %97 : vector<4x4xf32> to vector<4x4x1x1xf32>
    %99 = vector.shape_cast %68 : vector<4x8x16xf32> to vector<1x4x8x16xf32>
    %100 = vector.broadcast %98 : vector<4x4x1x1xf32> to vector<4x4x8x16xf32>
    %101 = vector.broadcast %99 : vector<1x4x8x16xf32> to vector<4x4x8x16xf32>
    %102 = arith.mulf %100, %101 : vector<4x4x8x16xf32>
    %cst_18 = arith.constant dense<0.000000e+00> : vector<4x8x16xf32>
    %103 = vector.multi_reduction <add>, %102, %cst_18 [1] : vector<4x4x8x16xf32> to vector<4x8x16xf32>
    %104 = arith.addf %9, %103 : vector<4x8x16xf32>
    %105 = vector.extract_strided_slice %4 {offsets = [0, 1, 2], sizes = [4, 8, 16], strides = [1, 1, 1]} : vector<4x10x18xf32> to vector<4x8x16xf32>
    %106 = vector.extract_strided_slice %5 {offsets = [1, 3, 0, 0], sizes = [1, 1, 4, 4], strides = [1, 1, 1, 1]} : vector<4x4x4x4xf32> to vector<1x1x4x4xf32>
    %107 = vector.shape_cast %106 : vector<1x1x4x4xf32> to vector<4x4xf32>
    %108 = vector.shape_cast %107 : vector<4x4xf32> to vector<4x4x1x1xf32>
    %109 = vector.shape_cast %105 : vector<4x8x16xf32> to vector<1x4x8x16xf32>
    %110 = vector.broadcast %108 : vector<4x4x1x1xf32> to vector<4x4x8x16xf32>
    %111 = vector.broadcast %109 : vector<1x4x8x16xf32> to vector<4x4x8x16xf32>
    %112 = arith.mulf %110, %111 : vector<4x4x8x16xf32>
    %cst_19 = arith.constant dense<0.000000e+00> : vector<4x8x16xf32>
    %113 = vector.multi_reduction <add>, %112, %cst_19 [1] : vector<4x4x8x16xf32> to vector<4x8x16xf32>
    %114 = arith.addf %86, %113 : vector<4x8x16xf32>
    %115 = vector.extract_strided_slice %5 {offsets = [3, 1, 0, 0], sizes = [1, 1, 4, 4], strides = [1, 1, 1, 1]} : vector<4x4x4x4xf32> to vector<1x1x4x4xf32>
    %116 = vector.shape_cast %115 : vector<1x1x4x4xf32> to vector<4x4xf32>
    %117 = vector.shape_cast %116 : vector<4x4xf32> to vector<4x4x1x1xf32>
    %118 = vector.shape_cast %105 : vector<4x8x16xf32> to vector<1x4x8x16xf32>
    %119 = vector.broadcast %117 : vector<4x4x1x1xf32> to vector<4x4x8x16xf32>
    %120 = vector.broadcast %118 : vector<1x4x8x16xf32> to vector<4x4x8x16xf32>
    %121 = arith.mulf %119, %120 : vector<4x4x8x16xf32>
    %cst_20 = arith.constant dense<0.000000e+00> : vector<4x8x16xf32>
    %122 = vector.multi_reduction <add>, %121, %cst_20 [1] : vector<4x4x8x16xf32> to vector<4x8x16xf32>
    %123 = arith.addf %104, %122 : vector<4x8x16xf32>
    %124 = vector.extract_strided_slice %4 {offsets = [0, 2, 0], sizes = [4, 8, 16], strides = [1, 1, 1]} : vector<4x10x18xf32> to vector<4x8x16xf32>
    %125 = vector.extract_strided_slice %5 {offsets = [2, 2, 0, 0], sizes = [1, 1, 4, 4], strides = [1, 1, 1, 1]} : vector<4x4x4x4xf32> to vector<1x1x4x4xf32>
    %126 = vector.shape_cast %125 : vector<1x1x4x4xf32> to vector<4x4xf32>
    %127 = vector.shape_cast %126 : vector<4x4xf32> to vector<4x4x1x1xf32>
    %128 = vector.shape_cast %124 : vector<4x8x16xf32> to vector<1x4x8x16xf32>
    %129 = vector.broadcast %127 : vector<4x4x1x1xf32> to vector<4x4x8x16xf32>
    %130 = vector.broadcast %128 : vector<1x4x8x16xf32> to vector<4x4x8x16xf32>
    %131 = arith.mulf %129, %130 : vector<4x4x8x16xf32>
    %cst_21 = arith.constant dense<0.000000e+00> : vector<4x8x16xf32>
    %132 = vector.multi_reduction <add>, %131, %cst_21 [1] : vector<4x4x8x16xf32> to vector<4x8x16xf32>
    %133 = arith.addf %95, %132 : vector<4x8x16xf32>
    %134 = vector.extract_strided_slice %4 {offsets = [0, 2, 1], sizes = [4, 8, 16], strides = [1, 1, 1]} : vector<4x10x18xf32> to vector<4x8x16xf32>
    %135 = vector.extract_strided_slice %5 {offsets = [2, 3, 0, 0], sizes = [1, 1, 4, 4], strides = [1, 1, 1, 1]} : vector<4x4x4x4xf32> to vector<1x1x4x4xf32>
    %136 = vector.shape_cast %135 : vector<1x1x4x4xf32> to vector<4x4xf32>
    %137 = vector.shape_cast %136 : vector<4x4xf32> to vector<4x4x1x1xf32>
    %138 = vector.shape_cast %134 : vector<4x8x16xf32> to vector<1x4x8x16xf32>
    %139 = vector.broadcast %137 : vector<4x4x1x1xf32> to vector<4x4x8x16xf32>
    %140 = vector.broadcast %138 : vector<1x4x8x16xf32> to vector<4x4x8x16xf32>
    %141 = arith.mulf %139, %140 : vector<4x4x8x16xf32>
    %cst_22 = arith.constant dense<0.000000e+00> : vector<4x8x16xf32>
    %142 = vector.multi_reduction <add>, %141, %cst_22 [1] : vector<4x4x8x16xf32> to vector<4x8x16xf32>
    %143 = arith.addf %133, %142 : vector<4x8x16xf32>
    %144 = vector.extract_strided_slice %5 {offsets = [3, 2, 0, 0], sizes = [1, 1, 4, 4], strides = [1, 1, 1, 1]} : vector<4x4x4x4xf32> to vector<1x1x4x4xf32>
    %145 = vector.shape_cast %144 : vector<1x1x4x4xf32> to vector<4x4xf32>
    %146 = vector.shape_cast %145 : vector<4x4xf32> to vector<4x4x1x1xf32>
    %147 = vector.shape_cast %134 : vector<4x8x16xf32> to vector<1x4x8x16xf32>
    %148 = vector.broadcast %146 : vector<4x4x1x1xf32> to vector<4x4x8x16xf32>
    %149 = vector.broadcast %147 : vector<1x4x8x16xf32> to vector<4x4x8x16xf32>
    %150 = arith.mulf %148, %149 : vector<4x4x8x16xf32>
    %cst_23 = arith.constant dense<0.000000e+00> : vector<4x8x16xf32>
    %151 = vector.multi_reduction <add>, %150, %cst_23 [1] : vector<4x4x8x16xf32> to vector<4x8x16xf32>
    %152 = arith.addf %123, %151 : vector<4x8x16xf32>
    %153 = vector.extract_strided_slice %4 {offsets = [0, 2, 2], sizes = [4, 8, 16], strides = [1, 1, 1]} : vector<4x10x18xf32> to vector<4x8x16xf32>
    %154 = vector.extract_strided_slice %5 {offsets = [3, 3, 0, 0], sizes = [1, 1, 4, 4], strides = [1, 1, 1, 1]} : vector<4x4x4x4xf32> to vector<1x1x4x4xf32>
    %155 = vector.shape_cast %154 : vector<1x1x4x4xf32> to vector<4x4xf32>
    %156 = vector.shape_cast %155 : vector<4x4xf32> to vector<4x4x1x1xf32>
    %157 = vector.shape_cast %153 : vector<4x8x16xf32> to vector<1x4x8x16xf32>
    %158 = vector.broadcast %156 : vector<4x4x1x1xf32> to vector<4x4x8x16xf32>
    %159 = vector.broadcast %157 : vector<1x4x8x16xf32> to vector<4x4x8x16xf32>
    %160 = arith.mulf %158, %159 : vector<4x4x8x16xf32>
    %cst_24 = arith.constant dense<0.000000e+00> : vector<4x8x16xf32>
    %161 = vector.multi_reduction <add>, %160, %cst_24 [1] : vector<4x4x8x16xf32> to vector<4x8x16xf32>
    %162 = arith.addf %152, %161 : vector<4x8x16xf32>
    %c0_25 = arith.constant 0 : index
    %c0_26 = arith.constant 0 : index
    %c0_27 = arith.constant 0 : index
    %163 = vector.load %arg5[%c0_25, %c0_26, %c0_27] : memref<2x16x32xf32, #tpu.memory_space<vmem>>, vector<1x16x32xf32>
    %164 = vector.shape_cast %163 : vector<1x16x32xf32> to vector<16x32xf32>
    %c1 = arith.constant 1 : index
    %c0_28 = arith.constant 0 : index
    %c0_29 = arith.constant 0 : index
    %165 = vector.load %arg5[%c1, %c0_28, %c0_29] : memref<2x16x32xf32, #tpu.memory_space<vmem>>, vector<1x16x32xf32>
    %166 = vector.shape_cast %165 : vector<1x16x32xf32> to vector<16x32xf32>
    %167 = vector.shape_cast %77 : vector<4x8x16xf32> to vector<32x16xf32>
    %cst_30 = arith.constant dense<0.000000e+00> : vector<32x32xf32>
    %168 = tpu.matmul %167, %164, %cst_30 {dimension_numbers = #tpu.dot_dimension_numbers<[1], [0], [0], [1], [0, 0, 1, 1], [], []>} : vector<32x16xf32>, vector<16x32xf32>, vector<32x32xf32> -> vector<32x32xf32>
    %169 = vector.shape_cast %114 : vector<4x8x16xf32> to vector<32x16xf32>
    %cst_31 = arith.constant dense<0.000000e+00> : vector<32x32xf32>
    %170 = tpu.matmul %169, %166, %cst_31 {dimension_numbers = #tpu.dot_dimension_numbers<[1], [0], [0], [1], [0, 0, 1, 1], [], []>} : vector<32x16xf32>, vector<16x32xf32>, vector<32x32xf32> -> vector<32x32xf32>
    %171 = arith.addf %168, %170 : vector<32x32xf32>
    %172 = vector.shape_cast %171 : vector<32x32xf32> to vector<4x8x32xf32>
    %173 = vector.shape_cast %143 : vector<4x8x16xf32> to vector<32x16xf32>
    %cst_32 = arith.constant dense<0.000000e+00> : vector<32x32xf32>
    %174 = tpu.matmul %173, %164, %cst_32 {dimension_numbers = #tpu.dot_dimension_numbers<[1], [0], [0], [1], [0, 0, 1, 1], [], []>} : vector<32x16xf32>, vector<16x32xf32>, vector<32x32xf32> -> vector<32x32xf32>
    %175 = vector.shape_cast %162 : vector<4x8x16xf32> to vector<32x16xf32>
    %cst_33 = arith.constant dense<0.000000e+00> : vector<32x32xf32>
    %176 = tpu.matmul %175, %166, %cst_33 {dimension_numbers = #tpu.dot_dimension_numbers<[1], [0], [0], [1], [0, 0, 1, 1], [], []>} : vector<32x16xf32>, vector<16x32xf32>, vector<32x32xf32> -> vector<32x32xf32>
    %177 = arith.addf %174, %176 : vector<32x32xf32>
    %178 = vector.shape_cast %177 : vector<32x32xf32> to vector<4x8x32xf32>
    %c0_34 = arith.constant 0 : index
    %c0_35 = arith.constant 0 : index
    %c0_36 = arith.constant 0 : index
    %179 = vector.load %arg6[%c0_34, %c0_35, %c0_36] : memref<2x8x16xf32, #tpu.memory_space<vmem>>, vector<1x8x16xf32>
    %180 = vector.shape_cast %179 : vector<1x8x16xf32> to vector<8x16xf32>
    %c1_37 = arith.constant 1 : index
    %c0_38 = arith.constant 0 : index
    %c0_39 = arith.constant 0 : index
    %181 = vector.load %arg6[%c1_37, %c0_38, %c0_39] : memref<2x8x16xf32, #tpu.memory_space<vmem>>, vector<1x8x16xf32>
    %182 = vector.shape_cast %181 : vector<1x8x16xf32> to vector<8x16xf32>
    %183 = tpu.transpose %172, [0, 2, 1] : vector<4x8x32xf32> -> vector<4x32x8xf32>
    %184 = vector.shape_cast %183 : vector<4x32x8xf32> to vector<128x8xf32>
    %185 = tpu.transpose %178, [0, 2, 1] : vector<4x8x32xf32> -> vector<4x32x8xf32>
    %186 = vector.shape_cast %185 : vector<4x32x8xf32> to vector<128x8xf32>
    %cst_40 = arith.constant dense<0.000000e+00> : vector<128x16xf32>
    %187 = tpu.matmul %184, %180, %cst_40 {dimension_numbers = #tpu.dot_dimension_numbers<[1], [0], [0], [1], [0, 0, 1, 1], [], []>} : vector<128x8xf32>, vector<8x16xf32>, vector<128x16xf32> -> vector<128x16xf32>
    %cst_41 = arith.constant dense<0.000000e+00> : vector<128x16xf32>
    %188 = tpu.matmul %186, %182, %cst_41 {dimension_numbers = #tpu.dot_dimension_numbers<[1], [0], [0], [1], [0, 0, 1, 1], [], []>} : vector<128x8xf32>, vector<8x16xf32>, vector<128x16xf32> -> vector<128x16xf32>
    %189 = arith.addf %187, %188 : vector<128x16xf32>
    %190 = vector.shape_cast %189 : vector<128x16xf32> to vector<4x32x16xf32>
    %191 = tpu.transpose %190, [0, 2, 1] : vector<4x32x16xf32> -> vector<4x16x32xf32>
    %c0_42 = arith.constant 0 : index
    %c0_43 = arith.constant 0 : index
    %c0_44 = arith.constant 0 : index
    %192 = vector.load %arg4[%c0_42, %c0_43, %c0_44] : memref<4x1x1xf32, #tpu.memory_space<vmem>>, vector<4x1x1xf32>
    %193 = vector.broadcast %192 : vector<4x1x1xf32> to vector<4x16x32xf32>
    %194 = arith.addf %191, %193 : vector<4x16x32xf32>
    %c0_45 = arith.constant 0 : index
    %c0_46 = arith.constant 0 : index
    %c0_47 = arith.constant 0 : index
    %c0_48 = arith.constant 0 : index
    %195 = vector.load %arg7[%c0_45, %c0_46, %c0_47, %c0_48] : memref<1x4x16x32xf32, #tpu.memory_space<vmem>>, vector<1x4x16x32xf32>
    %196 = vector.shape_cast %195 : vector<1x4x16x32xf32> to vector<4x16x32xf32>
    %197 = vector.shape_cast %194 : vector<4x16x32xf32> to vector<1x4x16x32xf32>
    tpu.vector_store %arg7[%c0_45, %c0_46, %c0_47, %c0_48], %197 {strides = array<i32>} : memref<1x4x16x32xf32, #tpu.memory_space<vmem>>, vector<1x4x16x32xf32>,
    return
  }
  func.func @transform_0(%arg0: i32, %arg1: i32) -> (i32, i32, i32, i32) {
    %c0_i32 = arith.constant 0 : i32
    %c0_i32_0 = arith.constant 0 : i32
    %c0_i32_1 = arith.constant 0 : i32
    %c0_i32_2 = arith.constant 0 : i32
    return %arg0, %c0_i32, %c0_i32_0, %c0_i32_1 : i32, i32, i32, i32
  }
  func.func @transform_1(%arg0: i32, %arg1: i32) -> (i32, i32, i32, i32) {
    %c0_i32 = arith.constant 0 : i32
    %c0_i32_0 = arith.constant 0 : i32
    %c0_i32_1 = arith.constant 0 : i32
    %c0_i32_2 = arith.constant 0 : i32
    %c0_i32_3 = arith.constant 0 : i32
    return %c0_i32, %c0_i32_0, %c0_i32_1, %c0_i32_2 : i32, i32, i32, i32
  }
  func.func @transform_2(%arg0: i32, %arg1: i32) -> (i32, i32, i32) {
    %c0_i32 = arith.constant 0 : i32
    %c0_i32_0 = arith.constant 0 : i32
    %c0_i32_1 = arith.constant 0 : i32
    %c0_i32_2 = arith.constant 0 : i32
    return %c0_i32, %c0_i32_0, %c0_i32_1 : i32, i32, i32
  }
  func.func @transform_3(%arg0: i32, %arg1: i32) -> (i32, i32, i32) {
    %c0_i32 = arith.constant 0 : i32
    %c0_i32_0 = arith.constant 0 : i32
    %c0_i32_1 = arith.constant 0 : i32
    %c0_i32_2 = arith.constant 0 : i32
    return %c0_i32, %c0_i32_0, %c0_i32_1 : i32, i32, i32
  }
  func.func @transform_4(%arg0: i32, %arg1: i32) -> (i32, i32, i32) {
    %c0_i32 = arith.constant 0 : i32
    %c0_i32_0 = arith.constant 0 : i32
    %c0_i32_1 = arith.constant 0 : i32
    %c0_i32_2 = arith.constant 0 : i32
    return %c0_i32, %c0_i32_0, %c0_i32_1 : i32, i32, i32
  }
  func.func @transform_5(%arg0: i32, %arg1: i32) -> (i32, i32, i32, i32) {
    %c0_i32 = arith.constant 0 : i32
    %c0_i32_0 = arith.constant 0 : i32
    %c0_i32_1 = arith.constant 0 : i32
    return %arg0, %c0_i32, %arg1, %c0_i32_0 : i32, i32, i32, i32
  }
}

</mosaic_0001>

<llo_original>
// kernel: tpu_custom_call.1
$region0: #{tpu_custom_call.1}
  #allocation0 [shape = 'u32[]', space=smem, size = 0x4, offset = 0x4, fixed_abs, tag = 'smem constant byte address 0x4 - core index']
  #allocation1 [shape = 'u32[144,128]{1,0:T(1,128)}', space=vmem, size = 0x12000, scoped, tag = 'internal scratch']
  #allocation4 [shape = 's32[]', space=sflag, size = 0x4, offset = 0, fixed_abs, tag = 'sflag constant byte address 0x0 - dummy sync flag']
  %s0 = inlined_call_operand.vmem [shape: f32[2,4,18,18], index: 0, kind: input, shape index: {}]
  %s1 = inlined_call_operand.vmem [shape: f32[4,4,4,4], index: 1, kind: input, shape index: {}]
  %s2 = inlined_call_operand.vmem [shape: f32[4,1,1], index: 2, kind: input, shape index: {}]
  %s3 = inlined_call_operand.vmem [shape: f32[2,16,32], index: 3, kind: input, shape index: {}]
  %s4 = inlined_call_operand.vmem [shape: f32[2,8,16], index: 4, kind: input, shape index: {}]
  %s5 = inlined_call_operand.hbm [shape: f32[2,4,32,32], index: 5, kind: output, shape index: {}]
  %s6 = sld [smem:[#allocation0]]
  $region53: #{tpu_custom_call.1} parent=0
    _
  %s8 = ssub.s32 1, %s6
  %s9 = scalar_select 0, %s8, %s6
  $region1: #{tpu_custom_call.1} parent=0
    #allocation2 [shape = 'u8[65536]{0}', space=vmem, size = 0x10000, scoped, tag = 'output window, operand 0']
    #allocation3 [shape = 's32[2]{0}', space=sflag, size = 0x8, scoped, tag = 'scoped memory for tpu_custom_call.1']
    %10 = vsyncpa [#allocation3], 0
    %s11 = scalar_lea.sflag [#allocation3], 1
    %12 = vsyncpa %s11, 0
    loop: start=0, step=1, limit=6
    $region2: #{tpu_custom_call.1} parent=1 // loop_pre_header
      _
    $region3: #{tpu_custom_call.1} parent=1 // loop_header
      %s14 = sphi 0, %s18
      %p15 = scmp.ge.s32.totalorder %s14, 6
      %s21 = sphi 0, %s33
      %s22 = sphi 0, %s29
      %s23 = sphi 0, %s21
      %s24 = sphi 0, %s22
      %s25 = sphi 0, %s23
      %s26 = sphi 0, %s24
      %s36 = sphi 0, %s38
      %s39 = sphi 0, %s36
      %s40 = sphi 0, %s39
      %s56 = sphi 0, %s40
      %s60 = sphi 0, %s60
      %s62 = sphi 0, %s60
      %s63 = sphi 0, %s62
      %s77 = sphi 0, %s63
      %s81 = sphi 0, %s81
      %s83 = sphi 0, %s81
      %s84 = sphi 0, %s83
      %s98 = sphi 0, %s84
      %s102 = sphi 0, %s102
      %s104 = sphi 0, %s102
      %s105 = sphi 0, %s104
      %s119 = sphi 0, %s105
      %s123 = sphi 0, %s123
      %s125 = sphi 0, %s123
      %s126 = sphi 0, %s125
      %s140 = sphi 0, %s126
      %s148 = sphi 0, %s150
      %s151 = sphi 0, %s148
      %s152 = sphi 0, %s151
      %s168 = sphi 0, %s152
    $region4: #{tpu_custom_call.1} parent=1 // loop_header_branch
      %17 = sbr.rel (%p15) target = $region8
    $region5: #{tpu_custom_call.1} parent=1 // loop_body
      %s19 = ssub.s32 %s14, 1
      %s20 = ssub.s32 %s14, 2
      %s27 = sadd.s32 1, %s22
      %p28 = scmp.ge.s32.totalorder %s27, 2
      %s29 = scalar_select %p28, 0, %s27
      %s30 = sadd.s32 1, %s21
      %s31 = scalar_select %p28, %s30, %s21
      %p32 = scmp.ge.s32.totalorder %s31, 2
      %s33 = scalar_select %p32, 0, %s31
      %s34 = ssub.s32 %s21, %s33
      %p35 = scmp.eq.s32.totalorder %s34, 0
      %s37 = sadd.s32 %s36, 1
      %s38 = scalar_select %p35, %s36, %s37
      %p41 = pneg %p35
      %p42 = scmp.eq.s32.totalorder %s14, 3
      %p43 = por %p41, %p42
      %p44 = scmp.ne.s32.totalorder %s36, %s39
      %p45 = scmp.eq.s32.totalorder %s14, 0
      %p46 = por %p44, %p45
      %p47 = scmp.ne.s32.totalorder %s36, %s39
      %p48 = scmp.eq.s32.totalorder %s19, 3
      %p49 = por %p47, %p48
      %p50 = scmp.ne.s32.totalorder %s39, %s40
      %p51 = scmp.eq.s32.totalorder %s19, 0
      %p52 = por %p50, %p51
      %p53 = scmp.ne.s32.totalorder %s39, %s40
      %p54 = scmp.eq.s32.totalorder %s20, 3
      %p55 = por %p53, %p54
      %p57 = scmp.ne.s32.totalorder %s40, %s56
      %p58 = scmp.eq.s32.totalorder %s20, 0
      %p59 = por %p57, %p58
      %s61 = sadd.s32 %s60, 1
      %p64 = scmp.eq.s32.totalorder %s14, 3
      %p65 = scmp.ne.s32.totalorder %s60, %s62
      %p66 = scmp.eq.s32.totalorder %s14, 0
      %p67 = por %p65, %p66
      %p68 = scmp.ne.s32.totalorder %s60, %s62
      %p69 = scmp.eq.s32.totalorder %s19, 3
      %p70 = por %p68, %p69
      %p71 = scmp.ne.s32.totalorder %s62, %s63
      %p72 = scmp.eq.s32.totalorder %s19, 0
      %p73 = por %p71, %p72
      %p74 = scmp.ne.s32.totalorder %s62, %s63
      %p75 = scmp.eq.s32.totalorder %s20, 3
      %p76 = por %p74, %p75
      %p78 = scmp.ne.s32.totalorder %s63, %s77
      %p79 = scmp.eq.s32.totalorder %s20, 0
      %p80 = por %p78, %p79
      %s82 = sadd.s32 %s81, 1
      %p85 = scmp.eq.s32.totalorder %s14, 3
      %p86 = scmp.ne.s32.totalorder %s81, %s83
      %p87 = scmp.eq.s32.totalorder %s14, 0
      %p88 = por %p86, %p87
      %p89 = scmp.ne.s32.totalorder %s81, %s83
      %p90 = scmp.eq.s32.totalorder %s19, 3
      %p91 = por %p89, %p90
      %p92 = scmp.ne.s32.totalorder %s83, %s84
      %p93 = scmp.eq.s32.totalorder %s19, 0
      %p94 = por %p92, %p93
      %p95 = scmp.ne.s32.totalorder %s83, %s84
      %p96 = scmp.eq.s32.totalorder %s20, 3
      %p97 = por %p95, %p96
      %p99 = scmp.ne.s32.totalorder %s84, %s98
      %p100 = scmp.eq.s32.totalorder %s20, 0
      %p101 = por %p99, %p100
      %s103 = sadd.s32 %s102, 1
      %p106 = scmp.eq.s32.totalorder %s14, 3
      %p107 = scmp.ne.s32.totalorder %s102, %s104
      %p108 = scmp.eq.s32.totalorder %s14, 0
      %p109 = por %p107, %p108
      %p110 = scmp.ne.s32.totalorder %s102, %s104
      %p111 = scmp.eq.s32.totalorder %s19, 3
      %p112 = por %p110, %p111
      %p113 = scmp.ne.s32.totalorder %s104, %s105
      %p114 = scmp.eq.s32.totalorder %s19, 0
      %p115 = por %p113, %p114
      %p116 = scmp.ne.s32.totalorder %s104, %s105
      %p117 = scmp.eq.s32.totalorder %s20, 3
      %p118 = por %p116, %p117
      %p120 = scmp.ne.s32.totalorder %s105, %s119
      %p121 = scmp.eq.s32.totalorder %s20, 0
      %p122 = por %p120, %p121
      %s124 = sadd.s32 %s123, 1
      %p127 = scmp.eq.s32.totalorder %s14, 3
      %p128 = scmp.ne.s32.totalorder %s123, %s125
      %p129 = scmp.eq.s32.totalorder %s14, 0
      %p130 = por %p128, %p129
      %p131 = scmp.ne.s32.totalorder %s123, %s125
      %p132 = scmp.eq.s32.totalorder %s19, 3
      %p133 = por %p131, %p132
      %p134 = scmp.ne.s32.totalorder %s125, %s126
      %p135 = scmp.eq.s32.totalorder %s19, 0
      %p136 = por %p134, %p135
      %p137 = scmp.ne.s32.totalorder %s125, %s126
      %p138 = scmp.eq.s32.totalorder %s20, 3
      %p139 = por %p137, %p138
      %p141 = scmp.ne.s32.totalorder %s126, %s140
      %p142 = scmp.eq.s32.totalorder %s20, 0
      %p143 = por %p141, %p142
      %s144 = ssub.s32 %s21, %s33
      %s145 = ssub.s32 %s22, %s29
      %s146 = sor.u32 %s144, %s145
      %p147 = scmp.eq.s32.totalorder %s146, 0
      %s149 = sadd.s32 %s148, 1
      %s150 = scalar_select %p147, %s148, %s149
      %p153 = pneg %p147
      %p154 = scmp.eq.s32.totalorder %s14, 3
      %p155 = por %p153, %p154
      %p156 = scmp.ne.s32.totalorder %s148, %s151
      %p157 = scmp.eq.s32.totalorder %s14, 0
      %p158 = por %p156, %p157
      %p159 = scmp.ne.s32.totalorder %s148, %s151
      %p160 = scmp.eq.s32.totalorder %s19, 3
      %p161 = por %p159, %p160
      %p162 = scmp.ne.s32.totalorder %s151, %s152
      %p163 = scmp.eq.s32.totalorder %s19, 0
      %p164 = por %p162, %p163
      %p165 = scmp.ne.s32.totalorder %s151, %s152
      %p166 = scmp.eq.s32.totalorder %s20, 3
      %p167 = por %p165, %p166
      %p169 = scmp.ne.s32.totalorder %s152, %s168
      %p170 = scmp.eq.s32.totalorder %s20, 0
      %p171 = por %p169, %p170
      %p172 = scmp.le.s32.totalorder 1, %s14
      %p173 = scmp.lt.s32.totalorder %s14, 5
      %p174 = pnand %p172, %p173
      %p175 = pneg %p174
      // Predicated region
      $region9: #{tpu_custom_call.1} parent=5 // pred_check
        _
      $region10: #{tpu_custom_call.1} parent=5 // pred_check_branch
        %177 = sbr.rel (%p174) target = $region12
      $region11: #{tpu_custom_call.1} parent=5 // pred_region
        %s178 = ssub.s32 %s14, 1
        // Predicated region
        $region13: #{tpu_custom_call.1} parent=11 // pred_check
          %p179 = pneg %p73
        $region14: #{tpu_custom_call.1} parent=11 // pred_check_branch
          %181 = sbr.rel (%p179) target = $region16
        $region15: #{tpu_custom_call.1} parent=11 // pred_region
          _
        $region16: #{tpu_custom_call.1} parent=11 // pred_fallthru
          _
        // Predicated region
        $region17: #{tpu_custom_call.1} parent=11 // pred_check
          %p182 = pneg %p94
        $region18: #{tpu_custom_call.1} parent=11 // pred_check_branch
          %184 = sbr.rel (%p182) target = $region20
        $region19: #{tpu_custom_call.1} parent=11 // pred_region
          _
        $region20: #{tpu_custom_call.1} parent=11 // pred_fallthru
          _
        // Predicated region
        $region21: #{tpu_custom_call.1} parent=11 // pred_check
          %p185 = pneg %p115
        $region22: #{tpu_custom_call.1} parent=11 // pred_check_branch
          %187 = sbr.rel (%p185) target = $region24
        $region23: #{tpu_custom_call.1} parent=11 // pred_region
          _
        $region24: #{tpu_custom_call.1} parent=11 // pred_fallthru
          _
        // Predicated region
        $region25: #{tpu_custom_call.1} parent=11 // pred_check
          %p188 = pneg %p136
        $region26: #{tpu_custom_call.1} parent=11 // pred_check_branch
          %190 = sbr.rel (%p188) target = $region28
        $region27: #{tpu_custom_call.1} parent=11 // pred_region
          _
        $region28: #{tpu_custom_call.1} parent=11 // pred_fallthru
          _
      $region12: #{tpu_custom_call.1} parent=5 // pred_fallthru
        _
      %p191 = scmp.lt.s32.totalorder %s14, 4
      // Predicated region
      $region29: #{tpu_custom_call.1} parent=5 // pred_check
        %p192 = pneg %p191
      $region30: #{tpu_custom_call.1} parent=5 // pred_check_branch
        %194 = sbr.rel (%p192) target = $region32
      $region31: #{tpu_custom_call.1} parent=5 // pred_region
        // Predicated region
        $region33: #{tpu_custom_call.1} parent=31 // pred_check
          %p195 = pneg %p46
        $region34: #{tpu_custom_call.1} parent=31 // pred_check_branch
          %197 = sbr.rel (%p195) target = $region36
        $region35: #{tpu_custom_call.1} parent=31 // pred_region
          %p198 = scmp.lt.s32.totalorder %s21, 1
          %s199 = scalar_select %p198, %s21, 1
          %s200 = smul.addr %s199, 12
          %s201 = smul.addr %s200, 8
          %s202 = scalar_lea.vmem %s0, %s201
        $region36: #{tpu_custom_call.1} parent=31 // pred_fallthru
          _
      $region32: #{tpu_custom_call.1} parent=5 // pred_fallthru
        _
      %p203 = scmp.le.s32.totalorder 1, %s14
      %p204 = scmp.lt.s32.totalorder %s14, 5
      %p205 = pnand %p203, %p204
      %p206 = pneg %p205
      // Predicated region
      $region37: #{tpu_custom_call.1} parent=5 // pred_check
        _
      $region38: #{tpu_custom_call.1} parent=5 // pred_check_branch
        %208 = sbr.rel (%p205) target = $region40
      $region39: #{tpu_custom_call.1} parent=5 // pred_region
        %s209 = ssub.s32 %s14, 1
        %p210 = scmp.lt.s32.totalorder %s23, 1
        %s211 = scalar_select %p210, %s23, 1
        %s212 = smul.addr %s211, 12
        %s213 = smul.addr %s212, 8
        %s214 = scalar_lea.vmem %s0, %s213
        %p215 = pneg %p52
        %p216 = pneg %p49
        %p217 = pneg %p73
        %p218 = pneg %p70
        %p219 = pneg %p94
        %p220 = pneg %p91
        %p221 = pneg %p115
        %p222 = pneg %p112
        %p223 = pneg %p136
        %p224 = pneg %p133
        %p225 = pneg %p164
        %p226 = pneg %p161
        %s227 = sand.u32 %s151, 1
        %s228 = scalar_lea.sflag [#allocation3], %s227
        %s229 = sand.u32 %s151, 1
        %s230 = smul.addr %s229, 64
        %s231 = scalar_lea.vmem [#allocation2], %s230
        %p232 = scmp.lt.s32.totalorder %s23, 1
        %s233 = scalar_select %p232, %s23, 1
        %s234 = smul.addr %s233, 12
        %s235 = smul.addr %s234, 8
        %s236 = scalar_lea.vmem %s0, %s235
        %s237 = smul.u32 2, %s24
        %s238 = smul.u32 %s24, 8
        %s239 = scalar_lea.vmem %s236, %s238
        %v240 = vld [vmem:[%s239] sm:$0xff]
        %v241 = vld [vmem:[%s239 + $0x8] sm:$0x3]
        %v242 = vld [vmem:[%s239 + $0x18] sm:$0xff]
        %v243 = vld [vmem:[%s239 + $0x20] sm:$0x3]
        %v244 = vld [vmem:[%s239 + $0x30] sm:$0xff]
        %v245 = vld [vmem:[%s239 + $0x38] sm:$0x3]
        %v246 = vld [vmem:[%s239 + $0x48] sm:$0xff]
        %v247 = vld [vmem:[%s239 + $0x50] sm:$0x3]
        %v248 = vld [vmem:[%s1] sm:$0xf]
        %v249 = vld [vmem:[%s1 + $0x4] sm:$0xf]
        %v250 = vld [vmem:[%s1 + $0x8] sm:$0xf]
        %v251 = vld [vmem:[%s1 + $0xc] sm:$0xf]
        %v252 = vld [vmem:[%s1 + $0x10] sm:$0xf]
        %v253 = vld [vmem:[%s1 + $0x14] sm:$0xf]
        %v254 = vld [vmem:[%s1 + $0x18] sm:$0xf]
        %v255 = vld [vmem:[%s1 + $0x1c] sm:$0xf]
        %v256 = vld [vmem:[%s1 + $0x20] sm:$0xf]
        %v257 = vld [vmem:[%s1 + $0x24] sm:$0xf]
        %v258 = vld [vmem:[%s1 + $0x28] sm:$0xf]
        %v259 = vld [vmem:[%s1 + $0x2c] sm:$0xf]
        %v260 = vld [vmem:[%s1 + $0x30] sm:$0xf]
        %v261 = vld [vmem:[%s1 + $0x34] sm:$0xf]
        %v262 = vld [vmem:[%s1 + $0x38] sm:$0xf]
        %v263 = vld [vmem:[%s1 + $0x3c] sm:$0xf]
        %v264 = vlaneseq
        %v265 = vshrl.u32 %v264, 7
        %v266 = vsub.s32 0, %v265
        %v267 = vrot.slane %v248, %v266
        %269 = vbcast.lane.b32.xlu0 %v267, 256
        %v270 = vpop.permute.xlu0 %269
        %v271 = vlaneseq
        %v272 = vshrl.u32 %v271, 7
        %v273 = vsub.s32 1, %v272
        %v274 = vrot.slane %v248, %v273
        %276 = vbcast.lane.b32.xlu0 %v274, 256
        %v277 = vpop.permute.xlu0 %276
        %v278 = vlaneseq
        %v279 = vshrl.u32 %v278, 7
        %v280 = vsub.s32 2, %v279
        %v281 = vrot.slane %v248, %v280
        %283 = vbcast.lane.b32.xlu0 %v281, 256
        %v284 = vpop.permute.xlu0 %283
        %v285 = vlaneseq
        %v286 = vshrl.u32 %v285, 7
        %v287 = vsub.s32 3, %v286
        %v288 = vrot.slane %v248, %v287
        %290 = vbcast.lane.b32.xlu0 %v288, 256
        %v291 = vpop.permute.xlu0 %290
        %v292 = vlaneseq
        %v293 = vshrl.u32 %v292, 7
        %v294 = vsub.s32 0, %v293
        %v295 = vrot.slane %v270, %v294
        %v296 = vlaneseq
        %v297 = vshrl.u32 %v296, 7
        %v298 = vsub.s32 1, %v297
        %v299 = vrot.slane %v270, %v298
        %v300 = vlaneseq
        %v301 = vshrl.u32 %v300, 7
        %v302 = vsub.s32 2, %v301
        %v303 = vrot.slane %v270, %v302
        %v304 = vlaneseq
        %v305 = vshrl.u32 %v304, 7
        %v306 = vsub.s32 3, %v305
        %v307 = vrot.slane %v270, %v306
        %v308 = vlaneseq
        %v309 = vshrl.u32 %v308, 7
        %v310 = vsub.s32 0, %v309
        %v311 = vrot.slane %v277, %v310
        %v312 = vlaneseq
        %v313 = vshrl.u32 %v312, 7
        %v314 = vsub.s32 1, %v313
        %v315 = vrot.slane %v277, %v314
        %v316 = vlaneseq
        %v317 = vshrl.u32 %v316, 7
        %v318 = vsub.s32 2, %v317
        %v319 = vrot.slane %v277, %v318
        %v320 = vlaneseq
        %v321 = vshrl.u32 %v320, 7
        %v322 = vsub.s32 3, %v321
        %v323 = vrot.slane %v277, %v322
        %v324 = vlaneseq
        %v325 = vshrl.u32 %v324, 7
        %v326 = vsub.s32 0, %v325
        %v327 = vrot.slane %v284, %v326
        %v328 = vlaneseq
        %v329 = vshrl.u32 %v328, 7
        %v330 = vsub.s32 1, %v329
        %v331 = vrot.slane %v284, %v330
        %v332 = vlaneseq
        %v333 = vshrl.u32 %v332, 7
        %v334 = vsub.s32 2, %v333
        %v335 = vrot.slane %v284, %v334
        %v336 = vlaneseq
        %v337 = vshrl.u32 %v336, 7
        %v338 = vsub.s32 3, %v337
        %v339 = vrot.slane %v284, %v338
        %v340 = vlaneseq
        %v341 = vshrl.u32 %v340, 7
        %v342 = vsub.s32 0, %v341
        %v343 = vrot.slane %v291, %v342
        %v344 = vlaneseq
        %v345 = vshrl.u32 %v344, 7
        %v346 = vsub.s32 1, %v345
        %v347 = vrot.slane %v291, %v346
        %v348 = vlaneseq
        %v349 = vshrl.u32 %v348, 7
        %v350 = vsub.s32 2, %v349
        %v351 = vrot.slane %v291, %v350
        %v352 = vlaneseq
        %v353 = vshrl.u32 %v352, 7
        %v354 = vsub.s32 3, %v353
        %v355 = vrot.slane %v291, %v354
        %v356 = vmul.f32 %v295, %v240
        %v357 = vmul.f32 %v299, %v242
        %v358 = vmul.f32 %v303, %v244
        %v359 = vmul.f32 %v307, %v246
        %v360 = vmul.f32 %v311, %v240
        %v361 = vmul.f32 %v315, %v242
        %v362 = vmul.f32 %v319, %v244
        %v363 = vmul.f32 %v323, %v246
        %v364 = vmul.f32 %v327, %v240
        %v365 = vmul.f32 %v331, %v242
        %v366 = vmul.f32 %v335, %v244
        %v367 = vmul.f32 %v339, %v246
        %v368 = vmul.f32 %v343, %v240
        %v369 = vmul.f32 %v347, %v242
        %v370 = vmul.f32 %v351, %v244
        %v371 = vmul.f32 %v355, %v246
        %vm372 = vcmask 130048
        %v373 = vsel %vm372, %v356, 0.0
        %v374 = vsel %vm372, %v357, 0.0
        %v375 = vadd.f32 %v373, %v374
        %v376 = vsel %vm372, %v358, 0.0
        %v377 = vadd.f32 %v375, %v376
        %v378 = vsel %vm372, %v359, 0.0
        %v379 = vadd.f32 %v377, %v378
        %v380 = vsel %vm372, %v360, 0.0
        %v381 = vsel %vm372, %v361, 0.0
        %v382 = vadd.f32 %v380, %v381
        %v383 = vsel %vm372, %v362, 0.0
        %v384 = vadd.f32 %v382, %v383
        %v385 = vsel %vm372, %v363, 0.0
        %v386 = vadd.f32 %v384, %v385
        %v387 = vsel %vm372, %v364, 0.0
        %v388 = vsel %vm372, %v365, 0.0
        %v389 = vadd.f32 %v387, %v388
        %v390 = vsel %vm372, %v366, 0.0
        %v391 = vadd.f32 %v389, %v390
        %v392 = vsel %vm372, %v367, 0.0
        %v393 = vadd.f32 %v391, %v392
        %v394 = vsel %vm372, %v368, 0.0
        %v395 = vsel %vm372, %v369, 0.0
        %v396 = vadd.f32 %v394, %v395
        %v397 = vsel %vm372, %v370, 0.0
        %v398 = vadd.f32 %v396, %v397
        %v399 = vsel %vm372, %v371, 0.0
        %v400 = vadd.f32 %v398, %v399
        %v401 = vadd.f32 %v379, 0.0
        %v402 = vadd.f32 %v386, 0.0
        %v403 = vadd.f32 %v393, 0.0
        %v404 = vadd.f32 %v400, 0.0
        %v405 = vlaneseq
        %v406 = vshrl.u32 %v405, 7
        %v407 = vsub.s32 0, %v406
        %v408 = vrot.slane %v249, %v407
        %410 = vbcast.lane.b32.xlu0 %v408, 256
        %v411 = vpop.permute.xlu0 %410
        %v412 = vlaneseq
        %v413 = vshrl.u32 %v412, 7
        %v414 = vsub.s32 1, %v413
        %v415 = vrot.slane %v249, %v414
        %417 = vbcast.lane.b32.xlu0 %v415, 256
        %v418 = vpop.permute.xlu0 %417
        %v419 = vlaneseq
        %v420 = vshrl.u32 %v419, 7
        %v421 = vsub.s32 2, %v420
        %v422 = vrot.slane %v249, %v421
        %424 = vbcast.lane.b32.xlu0 %v422, 256
        %v425 = vpop.permute.xlu0 %424
        %v426 = vlaneseq
        %v427 = vshrl.u32 %v426, 7
        %v428 = vsub.s32 3, %v427
        %v429 = vrot.slane %v249, %v428
        %431 = vbcast.lane.b32.xlu0 %v429, 256
        %v432 = vpop.permute.xlu0 %431
        %v433 = vlaneseq
        %v434 = vshrl.u32 %v433, 7
        %v435 = vsub.s32 0, %v434
        %v436 = vrot.slane %v411, %v435
        %v437 = vlaneseq
        %v438 = vshrl.u32 %v437, 7
        %v439 = vsub.s32 1, %v438
        %v440 = vrot.slane %v411, %v439
        %v441 = vlaneseq
        %v442 = vshrl.u32 %v441, 7
        %v443 = vsub.s32 2, %v442
        %v444 = vrot.slane %v411, %v443
        %v445 = vlaneseq
        %v446 = vshrl.u32 %v445, 7
        %v447 = vsub.s32 3, %v446
        %v448 = vrot.slane %v411, %v447
        %v449 = vlaneseq
        %v450 = vshrl.u32 %v449, 7
        %v451 = vsub.s32 0, %v450
        %v452 = vrot.slane %v418, %v451
        %v453 = vlaneseq
        %v454 = vshrl.u32 %v453, 7
        %v455 = vsub.s32 1, %v454
        %v456 = vrot.slane %v418, %v455
        %v457 = vlaneseq
        %v458 = vshrl.u32 %v457, 7
        %v459 = vsub.s32 2, %v458
        %v460 = vrot.slane %v418, %v459
        %v461 = vlaneseq
        %v462 = vshrl.u32 %v461, 7
        %v463 = vsub.s32 3, %v462
        %v464 = vrot.slane %v418, %v463
        %v465 = vlaneseq
        %v466 = vshrl.u32 %v465, 7
        %v467 = vsub.s32 0, %v466
        %v468 = vrot.slane %v425, %v467
        %v469 = vlaneseq
        %v470 = vshrl.u32 %v469, 7
        %v471 = vsub.s32 1, %v470
        %v472 = vrot.slane %v425, %v471
        %v473 = vlaneseq
        %v474 = vshrl.u32 %v473, 7
        %v475 = vsub.s32 2, %v474
        %v476 = vrot.slane %v425, %v475
        %v477 = vlaneseq
        %v478 = vshrl.u32 %v477, 7
        %v479 = vsub.s32 3, %v478
        %v480 = vrot.slane %v425, %v479
        %v481 = vlaneseq
        %v482 = vshrl.u32 %v481, 7
        %v483 = vsub.s32 0, %v482
        %v484 = vrot.slane %v432, %v483
        %v485 = vlaneseq
        %v486 = vshrl.u32 %v485, 7
        %v487 = vsub.s32 1, %v486
        %v488 = vrot.slane %v432, %v487
        %v489 = vlaneseq
        %v490 = vshrl.u32 %v489, 7
        %v491 = vsub.s32 2, %v490
        %v492 = vrot.slane %v432, %v491
        %v493 = vlaneseq
        %v494 = vshrl.u32 %v493, 7
        %v495 = vsub.s32 3, %v494
        %v496 = vrot.slane %v432, %v495
        %v497 = vmul.f32 %v436, %v240
        %v498 = vmul.f32 %v440, %v242
        %v499 = vmul.f32 %v444, %v244
        %v500 = vmul.f32 %v448, %v246
        %v501 = vmul.f32 %v452, %v240
        %v502 = vmul.f32 %v456, %v242
        %v503 = vmul.f32 %v460, %v244
        %v504 = vmul.f32 %v464, %v246
        %v505 = vmul.f32 %v468, %v240
        %v506 = vmul.f32 %v472, %v242
        %v507 = vmul.f32 %v476, %v244
        %v508 = vmul.f32 %v480, %v246
        %v509 = vmul.f32 %v484, %v240
        %v510 = vmul.f32 %v488, %v242
        %v511 = vmul.f32 %v492, %v244
        %v512 = vmul.f32 %v496, %v246
        %vm513 = vcmask 138248
        %v514 = vsel %vm513, %v497, 0.0
        %v515 = vsel %vm513, %v498, 0.0
        %v516 = vadd.f32 %v514, %v515
        %v517 = vsel %vm513, %v499, 0.0
        %v518 = vadd.f32 %v516, %v517
        %v519 = vsel %vm513, %v500, 0.0
        %v520 = vadd.f32 %v518, %v519
        %v521 = vsel %vm513, %v501, 0.0
        %v522 = vsel %vm513, %v502, 0.0
        %v523 = vadd.f32 %v521, %v522
        %v524 = vsel %vm513, %v503, 0.0
        %v525 = vadd.f32 %v523, %v524
        %v526 = vsel %vm513, %v504, 0.0
        %v527 = vadd.f32 %v525, %v526
        %v528 = vsel %vm513, %v505, 0.0
        %v529 = vsel %vm513, %v506, 0.0
        %v530 = vadd.f32 %v528, %v529
        %v531 = vsel %vm513, %v507, 0.0
        %v532 = vadd.f32 %v530, %v531
        %v533 = vsel %vm513, %v508, 0.0
        %v534 = vadd.f32 %v532, %v533
        %v535 = vsel %vm513, %v509, 0.0
        %v536 = vsel %vm513, %v510, 0.0
        %v537 = vadd.f32 %v535, %v536
        %v538 = vsel %vm513, %v511, 0.0
        %v539 = vadd.f32 %v537, %v538
        %v540 = vsel %vm513, %v512, 0.0
        %v541 = vadd.f32 %v539, %v540
        %546 = vrot.lane.b32.xlu0 %v520, 127
        %v547 = vpop.permute.xlu0 %546
        %548 = vrot.lane.b32.xlu0 %v527, 127
        %v549 = vpop.permute.xlu0 %548
        %550 = vrot.lane.b32.xlu0 %v534, 127
        %v551 = vpop.permute.xlu0 %550
        %552 = vrot.lane.b32.xlu0 %v541, 127
        %v553 = vpop.permute.xlu0 %552
        %v558 = vadd.f32 %v401, %v547
        %v559 = vadd.f32 %v402, %v549
        %v560 = vadd.f32 %v403, %v551
        %v561 = vadd.f32 %v404, %v553
        %v562 = vlaneseq
        %v563 = vshrl.u32 %v562, 7
        %v564 = vsub.s32 0, %v563
        %v565 = vrot.slane %v252, %v564
        %567 = vbcast.lane.b32.xlu0 %v565, 256
        %v568 = vpop.permute.xlu0 %567
        %v569 = vlaneseq
        %v570 = vshrl.u32 %v569, 7
        %v571 = vsub.s32 1, %v570
        %v572 = vrot.slane %v252, %v571
        %574 = vbcast.lane.b32.xlu0 %v572, 256
        %v575 = vpop.permute.xlu0 %574
        %v576 = vlaneseq
        %v577 = vshrl.u32 %v576, 7
        %v578 = vsub.s32 2, %v577
        %v579 = vrot.slane %v252, %v578
        %581 = vbcast.lane.b32.xlu0 %v579, 256
        %v582 = vpop.permute.xlu0 %581
        %v583 = vlaneseq
        %v584 = vshrl.u32 %v583, 7
        %v585 = vsub.s32 3, %v584
        %v586 = vrot.slane %v252, %v585
        %588 = vbcast.lane.b32.xlu0 %v586, 256
        %v589 = vpop.permute.xlu0 %588
        %v590 = vlaneseq
        %v591 = vshrl.u32 %v590, 7
        %v592 = vsub.s32 0, %v591
        %v593 = vrot.slane %v568, %v592
        %v594 = vlaneseq
        %v595 = vshrl.u32 %v594, 7
        %v596 = vsub.s32 1, %v595
        %v597 = vrot.slane %v568, %v596
        %v598 = vlaneseq
        %v599 = vshrl.u32 %v598, 7
        %v600 = vsub.s32 2, %v599
        %v601 = vrot.slane %v568, %v600
        %v602 = vlaneseq
        %v603 = vshrl.u32 %v602, 7
        %v604 = vsub.s32 3, %v603
        %v605 = vrot.slane %v568, %v604
        %v606 = vlaneseq
        %v607 = vshrl.u32 %v606, 7
        %v608 = vsub.s32 0, %v607
        %v609 = vrot.slane %v575, %v608
        %v610 = vlaneseq
        %v611 = vshrl.u32 %v610, 7
        %v612 = vsub.s32 1, %v611
        %v613 = vrot.slane %v575, %v612
        %v614 = vlaneseq
        %v615 = vshrl.u32 %v614, 7
        %v616 = vsub.s32 2, %v615
        %v617 = vrot.slane %v575, %v616
        %v618 = vlaneseq
        %v619 = vshrl.u32 %v618, 7
        %v620 = vsub.s32 3, %v619
        %v621 = vrot.slane %v575, %v620
        %v622 = vlaneseq
        %v623 = vshrl.u32 %v622, 7
        %v624 = vsub.s32 0, %v623
        %v625 = vrot.slane %v582, %v624
        %v626 = vlaneseq
        %v627 = vshrl.u32 %v626, 7
        %v628 = vsub.s32 1, %v627
        %v629 = vrot.slane %v582, %v628
        %v630 = vlaneseq
        %v631 = vshrl.u32 %v630, 7
        %v632 = vsub.s32 2, %v631
        %v633 = vrot.slane %v582, %v632
        %v634 = vlaneseq
        %v635 = vshrl.u32 %v634, 7
        %v636 = vsub.s32 3, %v635
        %v637 = vrot.slane %v582, %v636
        %v638 = vlaneseq
        %v639 = vshrl.u32 %v638, 7
        %v640 = vsub.s32 0, %v639
        %v641 = vrot.slane %v589, %v640
        %v642 = vlaneseq
        %v643 = vshrl.u32 %v642, 7
        %v644 = vsub.s32 1, %v643
        %v645 = vrot.slane %v589, %v644
        %v646 = vlaneseq
        %v647 = vshrl.u32 %v646, 7
        %v648 = vsub.s32 2, %v647
        %v649 = vrot.slane %v589, %v648
        %v650 = vlaneseq
        %v651 = vshrl.u32 %v650, 7
        %v652 = vsub.s32 3, %v651
        %v653 = vrot.slane %v589, %v652
        %v654 = vmul.f32 %v593, %v240
        %v655 = vmul.f32 %v597, %v242
        %v656 = vmul.f32 %v601, %v244
        %v657 = vmul.f32 %v605, %v246
        %v658 = vmul.f32 %v609, %v240
        %v659 = vmul.f32 %v613, %v242
        %v660 = vmul.f32 %v617, %v244
        %v661 = vmul.f32 %v621, %v246
        %v662 = vmul.f32 %v625, %v240
        %v663 = vmul.f32 %v629, %v242
        %v664 = vmul.f32 %v633, %v244
        %v665 = vmul.f32 %v637, %v246
        %v666 = vmul.f32 %v641, %v240
        %v667 = vmul.f32 %v645, %v242
        %v668 = vmul.f32 %v649, %v244
        %v669 = vmul.f32 %v653, %v246
        %v670 = vsel %vm513, %v654, 0.0
        %v671 = vsel %vm513, %v655, 0.0
        %v672 = vadd.f32 %v670, %v671
        %v673 = vsel %vm513, %v656, 0.0
        %v674 = vadd.f32 %v672, %v673
        %v675 = vsel %vm513, %v657, 0.0
        %v676 = vadd.f32 %v674, %v675
        %v677 = vsel %vm513, %v658, 0.0
        %v678 = vsel %vm513, %v659, 0.0
        %v679 = vadd.f32 %v677, %v678
        %v680 = vsel %vm513, %v660, 0.0
        %v681 = vadd.f32 %v679, %v680
        %v682 = vsel %vm513, %v661, 0.0
        %v683 = vadd.f32 %v681, %v682
        %v684 = vsel %vm513, %v662, 0.0
        %v685 = vsel %vm513, %v663, 0.0
        %v686 = vadd.f32 %v684, %v685
        %v687 = vsel %vm513, %v664, 0.0
        %v688 = vadd.f32 %v686, %v687
        %v689 = vsel %vm513, %v665, 0.0
        %v690 = vadd.f32 %v688, %v689
        %v691 = vsel %vm513, %v666, 0.0
        %v692 = vsel %vm513, %v667, 0.0
        %v693 = vadd.f32 %v691, %v692
        %v694 = vsel %vm513, %v668, 0.0
        %v695 = vadd.f32 %v693, %v694
        %v696 = vsel %vm513, %v669, 0.0
        %v697 = vadd.f32 %v695, %v696
        %v698 = vadd.f32 %v676, 0.0
        %v699 = vadd.f32 %v683, 0.0
        %v700 = vadd.f32 %v690, 0.0
        %v701 = vadd.f32 %v697, 0.0
        %v702 = vlaneseq
        %v703 = vshrl.u32 %v702, 7
        %v704 = vsub.s32 0, %v703
        %v705 = vrot.slane %v253, %v704
        %707 = vbcast.lane.b32.xlu0 %v705, 256
        %v708 = vpop.permute.xlu0 %707
        %v709 = vlaneseq
        %v710 = vshrl.u32 %v709, 7
        %v711 = vsub.s32 1, %v710
        %v712 = vrot.slane %v253, %v711
        %714 = vbcast.lane.b32.xlu0 %v712, 256
        %v715 = vpop.permute.xlu0 %714
        %v716 = vlaneseq
        %v717 = vshrl.u32 %v716, 7
        %v718 = vsub.s32 2, %v717
        %v719 = vrot.slane %v253, %v718
        %721 = vbcast.lane.b32.xlu0 %v719, 256
        %v722 = vpop.permute.xlu0 %721
        %v723 = vlaneseq
        %v724 = vshrl.u32 %v723, 7
        %v725 = vsub.s32 3, %v724
        %v726 = vrot.slane %v253, %v725
        %728 = vbcast.lane.b32.xlu0 %v726, 256
        %v729 = vpop.permute.xlu0 %728
        %v730 = vlaneseq
        %v731 = vshrl.u32 %v730, 7
        %v732 = vsub.s32 0, %v731
        %v733 = vrot.slane %v708, %v732
        %v734 = vlaneseq
        %v735 = vshrl.u32 %v734, 7
        %v736 = vsub.s32 1, %v735
        %v737 = vrot.slane %v708, %v736
        %v738 = vlaneseq
        %v739 = vshrl.u32 %v738, 7
        %v740 = vsub.s32 2, %v739
        %v741 = vrot.slane %v708, %v740
        %v742 = vlaneseq
        %v743 = vshrl.u32 %v742, 7
        %v744 = vsub.s32 3, %v743
        %v745 = vrot.slane %v708, %v744
        %v746 = vlaneseq
        %v747 = vshrl.u32 %v746, 7
        %v748 = vsub.s32 0, %v747
        %v749 = vrot.slane %v715, %v748
        %v750 = vlaneseq
        %v751 = vshrl.u32 %v750, 7
        %v752 = vsub.s32 1, %v751
        %v753 = vrot.slane %v715, %v752
        %v754 = vlaneseq
        %v755 = vshrl.u32 %v754, 7
        %v756 = vsub.s32 2, %v755
        %v757 = vrot.slane %v715, %v756
        %v758 = vlaneseq
        %v759 = vshrl.u32 %v758, 7
        %v760 = vsub.s32 3, %v759
        %v761 = vrot.slane %v715, %v760
        %v762 = vlaneseq
        %v763 = vshrl.u32 %v762, 7
        %v764 = vsub.s32 0, %v763
        %v765 = vrot.slane %v722, %v764
        %v766 = vlaneseq
        %v767 = vshrl.u32 %v766, 7
        %v768 = vsub.s32 1, %v767
        %v769 = vrot.slane %v722, %v768
        %v770 = vlaneseq
        %v771 = vshrl.u32 %v770, 7
        %v772 = vsub.s32 2, %v771
        %v773 = vrot.slane %v722, %v772
        %v774 = vlaneseq
        %v775 = vshrl.u32 %v774, 7
        %v776 = vsub.s32 3, %v775
        %v777 = vrot.slane %v722, %v776
        %v778 = vlaneseq
        %v779 = vshrl.u32 %v778, 7
        %v780 = vsub.s32 0, %v779
        %v781 = vrot.slane %v729, %v780
        %v782 = vlaneseq
        %v783 = vshrl.u32 %v782, 7
        %v784 = vsub.s32 1, %v783
        %v785 = vrot.slane %v729, %v784
        %v786 = vlaneseq
        %v787 = vshrl.u32 %v786, 7
        %v788 = vsub.s32 2, %v787
        %v789 = vrot.slane %v729, %v788
        %v790 = vlaneseq
        %v791 = vshrl.u32 %v790, 7
        %v792 = vsub.s32 3, %v791
        %v793 = vrot.slane %v729, %v792
        %v794 = vmul.f32 %v733, %v240
        %v795 = vmul.f32 %v737, %v242
        %v796 = vmul.f32 %v741, %v244
        %v797 = vmul.f32 %v745, %v246
        %v798 = vmul.f32 %v749, %v240
        %v799 = vmul.f32 %v753, %v242
        %v800 = vmul.f32 %v757, %v244
        %v801 = vmul.f32 %v761, %v246
        %v802 = vmul.f32 %v765, %v240
        %v803 = vmul.f32 %v769, %v242
        %v804 = vmul.f32 %v773, %v244
        %v805 = vmul.f32 %v777, %v246
        %v806 = vmul.f32 %v781, %v240
        %v807 = vmul.f32 %v785, %v242
        %v808 = vmul.f32 %v789, %v244
        %v809 = vmul.f32 %v793, %v246
        %vm810 = vcmask 146448
        %v811 = vsel %vm810, %v794, 0.0
        %v812 = vsel %vm810, %v795, 0.0
        %v813 = vadd.f32 %v811, %v812
        %v814 = vsel %vm810, %v796, 0.0
        %v815 = vadd.f32 %v813, %v814
        %v816 = vsel %vm810, %v797, 0.0
        %v817 = vadd.f32 %v815, %v816
        %v818 = vsel %vm810, %v798, 0.0
        %v819 = vsel %vm810, %v799, 0.0
        %v820 = vadd.f32 %v818, %v819
        %v821 = vsel %vm810, %v800, 0.0
        %v822 = vadd.f32 %v820, %v821
        %v823 = vsel %vm810, %v801, 0.0
        %v824 = vadd.f32 %v822, %v823
        %v825 = vsel %vm810, %v802, 0.0
        %v826 = vsel %vm810, %v803, 0.0
        %v827 = vadd.f32 %v825, %v826
        %v828 = vsel %vm810, %v804, 0.0
        %v829 = vadd.f32 %v827, %v828
        %v830 = vsel %vm810, %v805, 0.0
        %v831 = vadd.f32 %v829, %v830
        %v832 = vsel %vm810, %v806, 0.0
        %v833 = vsel %vm810, %v807, 0.0
        %v834 = vadd.f32 %v832, %v833
        %v835 = vsel %vm810, %v808, 0.0
        %v836 = vadd.f32 %v834, %v835
        %v837 = vsel %vm810, %v809, 0.0
        %v838 = vadd.f32 %v836, %v837
        %843 = vrot.lane.b32.xlu0 %v817, 127
        %v844 = vpop.permute.xlu0 %843
        %845 = vrot.lane.b32.xlu0 %v824, 127
        %v846 = vpop.permute.xlu0 %845
        %847 = vrot.lane.b32.xlu0 %v831, 127
        %v848 = vpop.permute.xlu0 %847
        %849 = vrot.lane.b32.xlu0 %v838, 127
        %v850 = vpop.permute.xlu0 %849
        %v855 = vadd.f32 %v698, %v844
        %v856 = vadd.f32 %v699, %v846
        %v857 = vadd.f32 %v700, %v848
        %v858 = vadd.f32 %v701, %v850
        %v859 = vlaneseq
        %v860 = vshrl.u32 %v859, 7
        %v861 = vsub.s32 0, %v860
        %v862 = vrot.slane %v250, %v861
        %864 = vbcast.lane.b32.xlu0 %v862, 256
        %v865 = vpop.permute.xlu0 %864
        %v866 = vlaneseq
        %v867 = vshrl.u32 %v866, 7
        %v868 = vsub.s32 1, %v867
        %v869 = vrot.slane %v250, %v868
        %871 = vbcast.lane.b32.xlu0 %v869, 256
        %v872 = vpop.permute.xlu0 %871
        %v873 = vlaneseq
        %v874 = vshrl.u32 %v873, 7
        %v875 = vsub.s32 2, %v874
        %v876 = vrot.slane %v250, %v875
        %878 = vbcast.lane.b32.xlu0 %v876, 256
        %v879 = vpop.permute.xlu0 %878
        %v880 = vlaneseq
        %v881 = vshrl.u32 %v880, 7
        %v882 = vsub.s32 3, %v881
        %v883 = vrot.slane %v250, %v882
        %885 = vbcast.lane.b32.xlu0 %v883, 256
        %v886 = vpop.permute.xlu0 %885
        %v887 = vlaneseq
        %v888 = vshrl.u32 %v887, 7
        %v889 = vsub.s32 0, %v888
        %v890 = vrot.slane %v865, %v889
        %v891 = vlaneseq
        %v892 = vshrl.u32 %v891, 7
        %v893 = vsub.s32 1, %v892
        %v894 = vrot.slane %v865, %v893
        %v895 = vlaneseq
        %v896 = vshrl.u32 %v895, 7
        %v897 = vsub.s32 2, %v896
        %v898 = vrot.slane %v865, %v897
        %v899 = vlaneseq
        %v900 = vshrl.u32 %v899, 7
        %v901 = vsub.s32 3, %v900
        %v902 = vrot.slane %v865, %v901
        %v903 = vlaneseq
        %v904 = vshrl.u32 %v903, 7
        %v905 = vsub.s32 0, %v904
        %v906 = vrot.slane %v872, %v905
        %v907 = vlaneseq
        %v908 = vshrl.u32 %v907, 7
        %v909 = vsub.s32 1, %v908
        %v910 = vrot.slane %v872, %v909
        %v911 = vlaneseq
        %v912 = vshrl.u32 %v911, 7
        %v913 = vsub.s32 2, %v912
        %v914 = vrot.slane %v872, %v913
        %v915 = vlaneseq
        %v916 = vshrl.u32 %v915, 7
        %v917 = vsub.s32 3, %v916
        %v918 = vrot.slane %v872, %v917
        %v919 = vlaneseq
        %v920 = vshrl.u32 %v919, 7
        %v921 = vsub.s32 0, %v920
        %v922 = vrot.slane %v879, %v921
        %v923 = vlaneseq
        %v924 = vshrl.u32 %v923, 7
        %v925 = vsub.s32 1, %v924
        %v926 = vrot.slane %v879, %v925
        %v927 = vlaneseq
        %v928 = vshrl.u32 %v927, 7
        %v929 = vsub.s32 2, %v928
        %v930 = vrot.slane %v879, %v929
        %v931 = vlaneseq
        %v932 = vshrl.u32 %v931, 7
        %v933 = vsub.s32 3, %v932
        %v934 = vrot.slane %v879, %v933
        %v935 = vlaneseq
        %v936 = vshrl.u32 %v935, 7
        %v937 = vsub.s32 0, %v936
        %v938 = vrot.slane %v886, %v937
        %v939 = vlaneseq
        %v940 = vshrl.u32 %v939, 7
        %v941 = vsub.s32 1, %v940
        %v942 = vrot.slane %v886, %v941
        %v943 = vlaneseq
        %v944 = vshrl.u32 %v943, 7
        %v945 = vsub.s32 2, %v944
        %v946 = vrot.slane %v886, %v945
        %v947 = vlaneseq
        %v948 = vshrl.u32 %v947, 7
        %v949 = vsub.s32 3, %v948
        %v950 = vrot.slane %v886, %v949
        %v951 = vmul.f32 %v890, %v240
        %v952 = vmul.f32 %v890, %v241
        %v953 = vmul.f32 %v894, %v242
        %v954 = vmul.f32 %v894, %v243
        %v955 = vmul.f32 %v898, %v244
        %v956 = vmul.f32 %v898, %v245
        %v957 = vmul.f32 %v902, %v246
        %v958 = vmul.f32 %v902, %v247
        %v959 = vmul.f32 %v906, %v240
        %v960 = vmul.f32 %v906, %v241
        %v961 = vmul.f32 %v910, %v242
        %v962 = vmul.f32 %v910, %v243
        %v963 = vmul.f32 %v914, %v244
        %v964 = vmul.f32 %v914, %v245
        %v965 = vmul.f32 %v918, %v246
        %v966 = vmul.f32 %v918, %v247
        %v967 = vmul.f32 %v922, %v240
        %v968 = vmul.f32 %v922, %v241
        %v969 = vmul.f32 %v926, %v242
        %v970 = vmul.f32 %v926, %v243
        %v971 = vmul.f32 %v930, %v244
        %v972 = vmul.f32 %v930, %v245
        %v973 = vmul.f32 %v934, %v246
        %v974 = vmul.f32 %v934, %v247
        %v975 = vmul.f32 %v938, %v240
        %v976 = vmul.f32 %v938, %v241
        %v977 = vmul.f32 %v942, %v242
        %v978 = vmul.f32 %v942, %v243
        %v979 = vmul.f32 %v946, %v244
        %v980 = vmul.f32 %v946, %v245
        %v981 = vmul.f32 %v950, %v246
        %v982 = vmul.f32 %v950, %v247
        %vm983 = vcmask 130049
        %v984 = vsel %vm983, %v951, 0.0
        %v985 = vsel %vm983, %v953, 0.0
        %v986 = vadd.f32 %v984, %v985
        %v987 = vsel %vm983, %v955, 0.0
        %v988 = vadd.f32 %v986, %v987
        %v989 = vsel %vm983, %v957, 0.0
        %v990 = vadd.f32 %v988, %v989
        %vm991 = vcmask 122880
        %v992 = vsel %vm991, %v952, 0.0
        %v993 = vsel %vm991, %v954, 0.0
        %v994 = vadd.f32 %v992, %v993
        %v995 = vsel %vm991, %v956, 0.0
        %v996 = vadd.f32 %v994, %v995
        %v997 = vsel %vm991, %v958, 0.0
        %v998 = vadd.f32 %v996, %v997
        %v999 = vsel %vm983, %v959, 0.0
        %v1000 = vsel %vm983, %v961, 0.0
        %v1001 = vadd.f32 %v999, %v1000
        %v1002 = vsel %vm983, %v963, 0.0
        %v1003 = vadd.f32 %v1001, %v1002
        %v1004 = vsel %vm983, %v965, 0.0
        %v1005 = vadd.f32 %v1003, %v1004
        %v1006 = vsel %vm991, %v960, 0.0
        %v1007 = vsel %vm991, %v962, 0.0
        %v1008 = vadd.f32 %v1006, %v1007
        %v1009 = vsel %vm991, %v964, 0.0
        %v1010 = vadd.f32 %v1008, %v1009
        %v1011 = vsel %vm991, %v966, 0.0
        %v1012 = vadd.f32 %v1010, %v1011
        %v1013 = vsel %vm983, %v967, 0.0
        %v1014 = vsel %vm983, %v969, 0.0
        %v1015 = vadd.f32 %v1013, %v1014
        %v1016 = vsel %vm983, %v971, 0.0
        %v1017 = vadd.f32 %v1015, %v1016
        %v1018 = vsel %vm983, %v973, 0.0
        %v1019 = vadd.f32 %v1017, %v1018
        %v1020 = vsel %vm991, %v968, 0.0
        %v1021 = vsel %vm991, %v970, 0.0
        %v1022 = vadd.f32 %v1020, %v1021
        %v1023 = vsel %vm991, %v972, 0.0
        %v1024 = vadd.f32 %v1022, %v1023
        %v1025 = vsel %vm991, %v974, 0.0
        %v1026 = vadd.f32 %v1024, %v1025
        %v1027 = vsel %vm983, %v975, 0.0
        %v1028 = vsel %vm983, %v977, 0.0
        %v1029 = vadd.f32 %v1027, %v1028
        %v1030 = vsel %vm983, %v979, 0.0
        %v1031 = vadd.f32 %v1029, %v1030
        %v1032 = vsel %vm983, %v981, 0.0
        %v1033 = vadd.f32 %v1031, %v1032
        %v1034 = vsel %vm991, %v976, 0.0
        %v1035 = vsel %vm991, %v978, 0.0
        %v1036 = vadd.f32 %v1034, %v1035
        %v1037 = vsel %vm991, %v980, 0.0
        %v1038 = vadd.f32 %v1036, %v1037
        %v1039 = vsel %vm991, %v982, 0.0
        %v1040 = vadd.f32 %v1038, %v1039
        %vm1049 = vcmask 1046528
        %v1050 = vrot.slane %v990, 1
        %v1051 = vrot.slane %v998, 1
        %v1052 = vsel %vm1049, %v1050, %v1051
        %v1053 = vrot.slane %v1005, 1
        %v1054 = vrot.slane %v1012, 1
        %v1055 = vsel %vm1049, %v1053, %v1054
        %v1056 = vrot.slane %v1019, 1
        %v1057 = vrot.slane %v1026, 1
        %v1058 = vsel %vm1049, %v1056, %v1057
        %v1059 = vrot.slane %v1033, 1
        %v1060 = vrot.slane %v1040, 1
        %v1061 = vsel %vm1049, %v1059, %v1060
        %v1066 = vadd.f32 %v558, %v1052
        %v1067 = vadd.f32 %v559, %v1055
        %v1068 = vadd.f32 %v560, %v1058
        %v1069 = vadd.f32 %v561, %v1061
        %v1070 = vlaneseq
        %v1071 = vshrl.u32 %v1070, 7
        %v1072 = vsub.s32 0, %v1071
        %v1073 = vrot.slane %v256, %v1072
        %1075 = vbcast.lane.b32.xlu0 %v1073, 256
        %v1076 = vpop.permute.xlu0 %1075
        %v1077 = vlaneseq
        %v1078 = vshrl.u32 %v1077, 7
        %v1079 = vsub.s32 1, %v1078
        %v1080 = vrot.slane %v256, %v1079
        %1082 = vbcast.lane.b32.xlu0 %v1080, 256
        %v1083 = vpop.permute.xlu0 %1082
        %v1084 = vlaneseq
        %v1085 = vshrl.u32 %v1084, 7
        %v1086 = vsub.s32 2, %v1085
        %v1087 = vrot.slane %v256, %v1086
        %1089 = vbcast.lane.b32.xlu0 %v1087, 256
        %v1090 = vpop.permute.xlu0 %1089
        %v1091 = vlaneseq
        %v1092 = vshrl.u32 %v1091, 7
        %v1093 = vsub.s32 3, %v1092
        %v1094 = vrot.slane %v256, %v1093
        %1096 = vbcast.lane.b32.xlu0 %v1094, 256
        %v1097 = vpop.permute.xlu0 %1096
        %v1098 = vlaneseq
        %v1099 = vshrl.u32 %v1098, 7
        %v1100 = vsub.s32 0, %v1099
        %v1101 = vrot.slane %v1076, %v1100
        %v1102 = vlaneseq
        %v1103 = vshrl.u32 %v1102, 7
        %v1104 = vsub.s32 1, %v1103
        %v1105 = vrot.slane %v1076, %v1104
        %v1106 = vlaneseq
        %v1107 = vshrl.u32 %v1106, 7
        %v1108 = vsub.s32 2, %v1107
        %v1109 = vrot.slane %v1076, %v1108
        %v1110 = vlaneseq
        %v1111 = vshrl.u32 %v1110, 7
        %v1112 = vsub.s32 3, %v1111
        %v1113 = vrot.slane %v1076, %v1112
        %v1114 = vlaneseq
        %v1115 = vshrl.u32 %v1114, 7
        %v1116 = vsub.s32 0, %v1115
        %v1117 = vrot.slane %v1083, %v1116
        %v1118 = vlaneseq
        %v1119 = vshrl.u32 %v1118, 7
        %v1120 = vsub.s32 1, %v1119
        %v1121 = vrot.slane %v1083, %v1120
        %v1122 = vlaneseq
        %v1123 = vshrl.u32 %v1122, 7
        %v1124 = vsub.s32 2, %v1123
        %v1125 = vrot.slane %v1083, %v1124
        %v1126 = vlaneseq
        %v1127 = vshrl.u32 %v1126, 7
        %v1128 = vsub.s32 3, %v1127
        %v1129 = vrot.slane %v1083, %v1128
        %v1130 = vlaneseq
        %v1131 = vshrl.u32 %v1130, 7
        %v1132 = vsub.s32 0, %v1131
        %v1133 = vrot.slane %v1090, %v1132
        %v1134 = vlaneseq
        %v1135 = vshrl.u32 %v1134, 7
        %v1136 = vsub.s32 1, %v1135
        %v1137 = vrot.slane %v1090, %v1136
        %v1138 = vlaneseq
        %v1139 = vshrl.u32 %v1138, 7
        %v1140 = vsub.s32 2, %v1139
        %v1141 = vrot.slane %v1090, %v1140
        %v1142 = vlaneseq
        %v1143 = vshrl.u32 %v1142, 7
        %v1144 = vsub.s32 3, %v1143
        %v1145 = vrot.slane %v1090, %v1144
        %v1146 = vlaneseq
        %v1147 = vshrl.u32 %v1146, 7
        %v1148 = vsub.s32 0, %v1147
        %v1149 = vrot.slane %v1097, %v1148
        %v1150 = vlaneseq
        %v1151 = vshrl.u32 %v1150, 7
        %v1152 = vsub.s32 1, %v1151
        %v1153 = vrot.slane %v1097, %v1152
        %v1154 = vlaneseq
        %v1155 = vshrl.u32 %v1154, 7
        %v1156 = vsub.s32 2, %v1155
        %v1157 = vrot.slane %v1097, %v1156
        %v1158 = vlaneseq
        %v1159 = vshrl.u32 %v1158, 7
        %v1160 = vsub.s32 3, %v1159
        %v1161 = vrot.slane %v1097, %v1160
        %v1162 = vmul.f32 %v1101, %v240
        %v1163 = vmul.f32 %v1101, %v241
        %v1164 = vmul.f32 %v1105, %v242
        %v1165 = vmul.f32 %v1105, %v243
        %v1166 = vmul.f32 %v1109, %v244
        %v1167 = vmul.f32 %v1109, %v245
        %v1168 = vmul.f32 %v1113, %v246
        %v1169 = vmul.f32 %v1113, %v247
        %v1170 = vmul.f32 %v1117, %v240
        %v1171 = vmul.f32 %v1117, %v241
        %v1172 = vmul.f32 %v1121, %v242
        %v1173 = vmul.f32 %v1121, %v243
        %v1174 = vmul.f32 %v1125, %v244
        %v1175 = vmul.f32 %v1125, %v245
        %v1176 = vmul.f32 %v1129, %v246
        %v1177 = vmul.f32 %v1129, %v247
        %v1178 = vmul.f32 %v1133, %v240
        %v1179 = vmul.f32 %v1133, %v241
        %v1180 = vmul.f32 %v1137, %v242
        %v1181 = vmul.f32 %v1137, %v243
        %v1182 = vmul.f32 %v1141, %v244
        %v1183 = vmul.f32 %v1141, %v245
        %v1184 = vmul.f32 %v1145, %v246
        %v1185 = vmul.f32 %v1145, %v247
        %v1186 = vmul.f32 %v1149, %v240
        %v1187 = vmul.f32 %v1149, %v241
        %v1188 = vmul.f32 %v1153, %v242
        %v1189 = vmul.f32 %v1153, %v243
        %v1190 = vmul.f32 %v1157, %v244
        %v1191 = vmul.f32 %v1157, %v245
        %v1192 = vmul.f32 %v1161, %v246
        %v1193 = vmul.f32 %v1161, %v247
        %v1194 = vsel %vm983, %v1162, 0.0
        %v1195 = vsel %vm983, %v1164, 0.0
        %v1196 = vadd.f32 %v1194, %v1195
        %v1197 = vsel %vm983, %v1166, 0.0
        %v1198 = vadd.f32 %v1196, %v1197
        %v1199 = vsel %vm983, %v1168, 0.0
        %v1200 = vadd.f32 %v1198, %v1199
        %v1201 = vsel %vm991, %v1163, 0.0
        %v1202 = vsel %vm991, %v1165, 0.0
        %v1203 = vadd.f32 %v1201, %v1202
        %v1204 = vsel %vm991, %v1167, 0.0
        %v1205 = vadd.f32 %v1203, %v1204
        %v1206 = vsel %vm991, %v1169, 0.0
        %v1207 = vadd.f32 %v1205, %v1206
        %v1208 = vsel %vm983, %v1170, 0.0
        %v1209 = vsel %vm983, %v1172, 0.0
        %v1210 = vadd.f32 %v1208, %v1209
        %v1211 = vsel %vm983, %v1174, 0.0
        %v1212 = vadd.f32 %v1210, %v1211
        %v1213 = vsel %vm983, %v1176, 0.0
        %v1214 = vadd.f32 %v1212, %v1213
        %v1215 = vsel %vm991, %v1171, 0.0
        %v1216 = vsel %vm991, %v1173, 0.0
        %v1217 = vadd.f32 %v1215, %v1216
        %v1218 = vsel %vm991, %v1175, 0.0
        %v1219 = vadd.f32 %v1217, %v1218
        %v1220 = vsel %vm991, %v1177, 0.0
        %v1221 = vadd.f32 %v1219, %v1220
        %v1222 = vsel %vm983, %v1178, 0.0
        %v1223 = vsel %vm983, %v1180, 0.0
        %v1224 = vadd.f32 %v1222, %v1223
        %v1225 = vsel %vm983, %v1182, 0.0
        %v1226 = vadd.f32 %v1224, %v1225
        %v1227 = vsel %vm983, %v1184, 0.0
        %v1228 = vadd.f32 %v1226, %v1227
        %v1229 = vsel %vm991, %v1179, 0.0
        %v1230 = vsel %vm991, %v1181, 0.0
        %v1231 = vadd.f32 %v1229, %v1230
        %v1232 = vsel %vm991, %v1183, 0.0
        %v1233 = vadd.f32 %v1231, %v1232
        %v1234 = vsel %vm991, %v1185, 0.0
        %v1235 = vadd.f32 %v1233, %v1234
        %v1236 = vsel %vm983, %v1186, 0.0
        %v1237 = vsel %vm983, %v1188, 0.0
        %v1238 = vadd.f32 %v1236, %v1237
        %v1239 = vsel %vm983, %v1190, 0.0
        %v1240 = vadd.f32 %v1238, %v1239
        %v1241 = vsel %vm983, %v1192, 0.0
        %v1242 = vadd.f32 %v1240, %v1241
        %v1243 = vsel %vm991, %v1187, 0.0
        %v1244 = vsel %vm991, %v1189, 0.0
        %v1245 = vadd.f32 %v1243, %v1244
        %v1246 = vsel %vm991, %v1191, 0.0
        %v1247 = vadd.f32 %v1245, %v1246
        %v1248 = vsel %vm991, %v1193, 0.0
        %v1249 = vadd.f32 %v1247, %v1248
        %v1250 = vadd.f32 %v1200, 0.0
        %v1251 = vadd.f32 %v1207, 0.0
        %v1252 = vadd.f32 %v1214, 0.0
        %v1253 = vadd.f32 %v1221, 0.0
        %v1254 = vadd.f32 %v1228, 0.0
        %v1255 = vadd.f32 %v1235, 0.0
        %v1256 = vadd.f32 %v1242, 0.0
        %v1257 = vadd.f32 %v1249, 0.0
        %v1258 = vlaneseq
        %v1259 = vshrl.u32 %v1258, 7
        %v1260 = vsub.s32 0, %v1259
        %v1261 = vrot.slane %v251, %v1260
        %1263 = vbcast.lane.b32.xlu0 %v1261, 256
        %v1264 = vpop.permute.xlu0 %1263
        %v1265 = vlaneseq
        %v1266 = vshrl.u32 %v1265, 7
        %v1267 = vsub.s32 1, %v1266
        %v1268 = vrot.slane %v251, %v1267
        %1270 = vbcast.lane.b32.xlu0 %v1268, 256
        %v1271 = vpop.permute.xlu0 %1270
        %v1272 = vlaneseq
        %v1273 = vshrl.u32 %v1272, 7
        %v1274 = vsub.s32 2, %v1273
        %v1275 = vrot.slane %v251, %v1274
        %1277 = vbcast.lane.b32.xlu0 %v1275, 256
        %v1278 = vpop.permute.xlu0 %1277
        %v1279 = vlaneseq
        %v1280 = vshrl.u32 %v1279, 7
        %v1281 = vsub.s32 3, %v1280
        %v1282 = vrot.slane %v251, %v1281
        %1284 = vbcast.lane.b32.xlu0 %v1282, 256
        %v1285 = vpop.permute.xlu0 %1284
        %v1286 = vlaneseq
        %v1287 = vshrl.u32 %v1286, 7
        %v1288 = vsub.s32 0, %v1287
        %v1289 = vrot.slane %v1264, %v1288
        %v1290 = vlaneseq
        %v1291 = vshrl.u32 %v1290, 7
        %v1292 = vsub.s32 1, %v1291
        %v1293 = vrot.slane %v1264, %v1292
        %v1294 = vlaneseq
        %v1295 = vshrl.u32 %v1294, 7
        %v1296 = vsub.s32 2, %v1295
        %v1297 = vrot.slane %v1264, %v1296
        %v1298 = vlaneseq
        %v1299 = vshrl.u32 %v1298, 7
        %v1300 = vsub.s32 3, %v1299
        %v1301 = vrot.slane %v1264, %v1300
        %v1302 = vlaneseq
        %v1303 = vshrl.u32 %v1302, 7
        %v1304 = vsub.s32 0, %v1303
        %v1305 = vrot.slane %v1271, %v1304
        %v1306 = vlaneseq
        %v1307 = vshrl.u32 %v1306, 7
        %v1308 = vsub.s32 1, %v1307
        %v1309 = vrot.slane %v1271, %v1308
        %v1310 = vlaneseq
        %v1311 = vshrl.u32 %v1310, 7
        %v1312 = vsub.s32 2, %v1311
        %v1313 = vrot.slane %v1271, %v1312
        %v1314 = vlaneseq
        %v1315 = vshrl.u32 %v1314, 7
        %v1316 = vsub.s32 3, %v1315
        %v1317 = vrot.slane %v1271, %v1316
        %v1318 = vlaneseq
        %v1319 = vshrl.u32 %v1318, 7
        %v1320 = vsub.s32 0, %v1319
        %v1321 = vrot.slane %v1278, %v1320
        %v1322 = vlaneseq
        %v1323 = vshrl.u32 %v1322, 7
        %v1324 = vsub.s32 1, %v1323
        %v1325 = vrot.slane %v1278, %v1324
        %v1326 = vlaneseq
        %v1327 = vshrl.u32 %v1326, 7
        %v1328 = vsub.s32 2, %v1327
        %v1329 = vrot.slane %v1278, %v1328
        %v1330 = vlaneseq
        %v1331 = vshrl.u32 %v1330, 7
        %v1332 = vsub.s32 3, %v1331
        %v1333 = vrot.slane %v1278, %v1332
        %v1334 = vlaneseq
        %v1335 = vshrl.u32 %v1334, 7
        %v1336 = vsub.s32 0, %v1335
        %v1337 = vrot.slane %v1285, %v1336
        %v1338 = vlaneseq
        %v1339 = vshrl.u32 %v1338, 7
        %v1340 = vsub.s32 1, %v1339
        %v1341 = vrot.slane %v1285, %v1340
        %v1342 = vlaneseq
        %v1343 = vshrl.u32 %v1342, 7
        %v1344 = vsub.s32 2, %v1343
        %v1345 = vrot.slane %v1285, %v1344
        %v1346 = vlaneseq
        %v1347 = vshrl.u32 %v1346, 7
        %v1348 = vsub.s32 3, %v1347
        %v1349 = vrot.slane %v1285, %v1348
        %v1350 = vmul.f32 %v1289, %v240
        %v1351 = vmul.f32 %v1289, %v241
        %v1352 = vmul.f32 %v1293, %v242
        %v1353 = vmul.f32 %v1293, %v243
        %v1354 = vmul.f32 %v1297, %v244
        %v1355 = vmul.f32 %v1297, %v245
        %v1356 = vmul.f32 %v1301, %v246
        %v1357 = vmul.f32 %v1301, %v247
        %v1358 = vmul.f32 %v1305, %v240
        %v1359 = vmul.f32 %v1305, %v241
        %v1360 = vmul.f32 %v1309, %v242
        %v1361 = vmul.f32 %v1309, %v243
        %v1362 = vmul.f32 %v1313, %v244
        %v1363 = vmul.f32 %v1313, %v245
        %v1364 = vmul.f32 %v1317, %v246
        %v1365 = vmul.f32 %v1317, %v247
        %v1366 = vmul.f32 %v1321, %v240
        %v1367 = vmul.f32 %v1321, %v241
        %v1368 = vmul.f32 %v1325, %v242
        %v1369 = vmul.f32 %v1325, %v243
        %v1370 = vmul.f32 %v1329, %v244
        %v1371 = vmul.f32 %v1329, %v245
        %v1372 = vmul.f32 %v1333, %v246
        %v1373 = vmul.f32 %v1333, %v247
        %v1374 = vmul.f32 %v1337, %v240
        %v1375 = vmul.f32 %v1337, %v241
        %v1376 = vmul.f32 %v1341, %v242
        %v1377 = vmul.f32 %v1341, %v243
        %v1378 = vmul.f32 %v1345, %v244
        %v1379 = vmul.f32 %v1345, %v245
        %v1380 = vmul.f32 %v1349, %v246
        %v1381 = vmul.f32 %v1349, %v247
        %vm1382 = vcmask 138249
        %v1383 = vsel %vm1382, %v1350, 0.0
        %v1384 = vsel %vm1382, %v1352, 0.0
        %v1385 = vadd.f32 %v1383, %v1384
        %v1386 = vsel %vm1382, %v1354, 0.0
        %v1387 = vadd.f32 %v1385, %v1386
        %v1388 = vsel %vm1382, %v1356, 0.0
        %v1389 = vadd.f32 %v1387, %v1388
        %vm1390 = vcmask 131080
        %v1391 = vsel %vm1390, %v1351, 0.0
        %v1392 = vsel %vm1390, %v1353, 0.0
        %v1393 = vadd.f32 %v1391, %v1392
        %v1394 = vsel %vm1390, %v1355, 0.0
        %v1395 = vadd.f32 %v1393, %v1394
        %v1396 = vsel %vm1390, %v1357, 0.0
        %v1397 = vadd.f32 %v1395, %v1396
        %v1398 = vsel %vm1382, %v1358, 0.0
        %v1399 = vsel %vm1382, %v1360, 0.0
        %v1400 = vadd.f32 %v1398, %v1399
        %v1401 = vsel %vm1382, %v1362, 0.0
        %v1402 = vadd.f32 %v1400, %v1401
        %v1403 = vsel %vm1382, %v1364, 0.0
        %v1404 = vadd.f32 %v1402, %v1403
        %v1405 = vsel %vm1390, %v1359, 0.0
        %v1406 = vsel %vm1390, %v1361, 0.0
        %v1407 = vadd.f32 %v1405, %v1406
        %v1408 = vsel %vm1390, %v1363, 0.0
        %v1409 = vadd.f32 %v1407, %v1408
        %v1410 = vsel %vm1390, %v1365, 0.0
        %v1411 = vadd.f32 %v1409, %v1410
        %v1412 = vsel %vm1382, %v1366, 0.0
        %v1413 = vsel %vm1382, %v1368, 0.0
        %v1414 = vadd.f32 %v1412, %v1413
        %v1415 = vsel %vm1382, %v1370, 0.0
        %v1416 = vadd.f32 %v1414, %v1415
        %v1417 = vsel %vm1382, %v1372, 0.0
        %v1418 = vadd.f32 %v1416, %v1417
        %v1419 = vsel %vm1390, %v1367, 0.0
        %v1420 = vsel %vm1390, %v1369, 0.0
        %v1421 = vadd.f32 %v1419, %v1420
        %v1422 = vsel %vm1390, %v1371, 0.0
        %v1423 = vadd.f32 %v1421, %v1422
        %v1424 = vsel %vm1390, %v1373, 0.0
        %v1425 = vadd.f32 %v1423, %v1424
        %v1426 = vsel %vm1382, %v1374, 0.0
        %v1427 = vsel %vm1382, %v1376, 0.0
        %v1428 = vadd.f32 %v1426, %v1427
        %v1429 = vsel %vm1382, %v1378, 0.0
        %v1430 = vadd.f32 %v1428, %v1429
        %v1431 = vsel %vm1382, %v1380, 0.0
        %v1432 = vadd.f32 %v1430, %v1431
        %v1433 = vsel %vm1390, %v1375, 0.0
        %v1434 = vsel %vm1390, %v1377, 0.0
        %v1435 = vadd.f32 %v1433, %v1434
        %v1436 = vsel %vm1390, %v1379, 0.0
        %v1437 = vadd.f32 %v1435, %v1436
        %v1438 = vsel %vm1390, %v1381, 0.0
        %v1439 = vadd.f32 %v1437, %v1438
        %v1448 = vrot.slane %v1389, 1
        %v1449 = vrot.slane %v1397, 1
        %v1450 = vsel %vm1049, %v1448, %v1449
        %v1451 = vrot.slane %v1404, 1
        %v1452 = vrot.slane %v1411, 1
        %v1453 = vsel %vm1049, %v1451, %v1452
        %v1454 = vrot.slane %v1418, 1
        %v1455 = vrot.slane %v1425, 1
        %v1456 = vsel %vm1049, %v1454, %v1455
        %v1457 = vrot.slane %v1432, 1
        %v1458 = vrot.slane %v1439, 1
        %v1459 = vsel %vm1049, %v1457, %v1458
        %1460 = vrot.lane.b32.xlu0 %v1450, 127
        %v1461 = vpop.permute.xlu0 %1460
        %1462 = vrot.lane.b32.xlu0 %v1453, 127
        %v1463 = vpop.permute.xlu0 %1462
        %1464 = vrot.lane.b32.xlu0 %v1456, 127
        %v1465 = vpop.permute.xlu0 %1464
        %1466 = vrot.lane.b32.xlu0 %v1459, 127
        %v1467 = vpop.permute.xlu0 %1466
        %v1472 = vadd.f32 %v1066, %v1461
        %v1473 = vadd.f32 %v1067, %v1463
        %v1474 = vadd.f32 %v1068, %v1465
        %v1475 = vadd.f32 %v1069, %v1467
        %v1476 = vlaneseq
        %v1477 = vshrl.u32 %v1476, 7
        %v1478 = vsub.s32 0, %v1477
        %v1479 = vrot.slane %v254, %v1478
        %1481 = vbcast.lane.b32.xlu0 %v1479, 256
        %v1482 = vpop.permute.xlu0 %1481
        %v1483 = vlaneseq
        %v1484 = vshrl.u32 %v1483, 7
        %v1485 = vsub.s32 1, %v1484
        %v1486 = vrot.slane %v254, %v1485
        %1488 = vbcast.lane.b32.xlu0 %v1486, 256
        %v1489 = vpop.permute.xlu0 %1488
        %v1490 = vlaneseq
        %v1491 = vshrl.u32 %v1490, 7
        %v1492 = vsub.s32 2, %v1491
        %v1493 = vrot.slane %v254, %v1492
        %1495 = vbcast.lane.b32.xlu0 %v1493, 256
        %v1496 = vpop.permute.xlu0 %1495
        %v1497 = vlaneseq
        %v1498 = vshrl.u32 %v1497, 7
        %v1499 = vsub.s32 3, %v1498
        %v1500 = vrot.slane %v254, %v1499
        %1502 = vbcast.lane.b32.xlu0 %v1500, 256
        %v1503 = vpop.permute.xlu0 %1502
        %v1504 = vlaneseq
        %v1505 = vshrl.u32 %v1504, 7
        %v1506 = vsub.s32 0, %v1505
        %v1507 = vrot.slane %v1482, %v1506
        %v1508 = vlaneseq
        %v1509 = vshrl.u32 %v1508, 7
        %v1510 = vsub.s32 1, %v1509
        %v1511 = vrot.slane %v1482, %v1510
        %v1512 = vlaneseq
        %v1513 = vshrl.u32 %v1512, 7
        %v1514 = vsub.s32 2, %v1513
        %v1515 = vrot.slane %v1482, %v1514
        %v1516 = vlaneseq
        %v1517 = vshrl.u32 %v1516, 7
        %v1518 = vsub.s32 3, %v1517
        %v1519 = vrot.slane %v1482, %v1518
        %v1520 = vlaneseq
        %v1521 = vshrl.u32 %v1520, 7
        %v1522 = vsub.s32 0, %v1521
        %v1523 = vrot.slane %v1489, %v1522
        %v1524 = vlaneseq
        %v1525 = vshrl.u32 %v1524, 7
        %v1526 = vsub.s32 1, %v1525
        %v1527 = vrot.slane %v1489, %v1526
        %v1528 = vlaneseq
        %v1529 = vshrl.u32 %v1528, 7
        %v1530 = vsub.s32 2, %v1529
        %v1531 = vrot.slane %v1489, %v1530
        %v1532 = vlaneseq
        %v1533 = vshrl.u32 %v1532, 7
        %v1534 = vsub.s32 3, %v1533
        %v1535 = vrot.slane %v1489, %v1534
        %v1536 = vlaneseq
        %v1537 = vshrl.u32 %v1536, 7
        %v1538 = vsub.s32 0, %v1537
        %v1539 = vrot.slane %v1496, %v1538
        %v1540 = vlaneseq
        %v1541 = vshrl.u32 %v1540, 7
        %v1542 = vsub.s32 1, %v1541
        %v1543 = vrot.slane %v1496, %v1542
        %v1544 = vlaneseq
        %v1545 = vshrl.u32 %v1544, 7
        %v1546 = vsub.s32 2, %v1545
        %v1547 = vrot.slane %v1496, %v1546
        %v1548 = vlaneseq
        %v1549 = vshrl.u32 %v1548, 7
        %v1550 = vsub.s32 3, %v1549
        %v1551 = vrot.slane %v1496, %v1550
        %v1552 = vlaneseq
        %v1553 = vshrl.u32 %v1552, 7
        %v1554 = vsub.s32 0, %v1553
        %v1555 = vrot.slane %v1503, %v1554
        %v1556 = vlaneseq
        %v1557 = vshrl.u32 %v1556, 7
        %v1558 = vsub.s32 1, %v1557
        %v1559 = vrot.slane %v1503, %v1558
        %v1560 = vlaneseq
        %v1561 = vshrl.u32 %v1560, 7
        %v1562 = vsub.s32 2, %v1561
        %v1563 = vrot.slane %v1503, %v1562
        %v1564 = vlaneseq
        %v1565 = vshrl.u32 %v1564, 7
        %v1566 = vsub.s32 3, %v1565
        %v1567 = vrot.slane %v1503, %v1566
        %v1568 = vmul.f32 %v1507, %v240
        %v1569 = vmul.f32 %v1507, %v241
        %v1570 = vmul.f32 %v1511, %v242
        %v1571 = vmul.f32 %v1511, %v243
        %v1572 = vmul.f32 %v1515, %v244
        %v1573 = vmul.f32 %v1515, %v245
        %v1574 = vmul.f32 %v1519, %v246
        %v1575 = vmul.f32 %v1519, %v247
        %v1576 = vmul.f32 %v1523, %v240
        %v1577 = vmul.f32 %v1523, %v241
        %v1578 = vmul.f32 %v1527, %v242
        %v1579 = vmul.f32 %v1527, %v243
        %v1580 = vmul.f32 %v1531, %v244
        %v1581 = vmul.f32 %v1531, %v245
        %v1582 = vmul.f32 %v1535, %v246
        %v1583 = vmul.f32 %v1535, %v247
        %v1584 = vmul.f32 %v1539, %v240
        %v1585 = vmul.f32 %v1539, %v241
        %v1586 = vmul.f32 %v1543, %v242
        %v1587 = vmul.f32 %v1543, %v243
        %v1588 = vmul.f32 %v1547, %v244
        %v1589 = vmul.f32 %v1547, %v245
        %v1590 = vmul.f32 %v1551, %v246
        %v1591 = vmul.f32 %v1551, %v247
        %v1592 = vmul.f32 %v1555, %v240
        %v1593 = vmul.f32 %v1555, %v241
        %v1594 = vmul.f32 %v1559, %v242
        %v1595 = vmul.f32 %v1559, %v243
        %v1596 = vmul.f32 %v1563, %v244
        %v1597 = vmul.f32 %v1563, %v245
        %v1598 = vmul.f32 %v1567, %v246
        %v1599 = vmul.f32 %v1567, %v247
        %v1600 = vsel %vm1382, %v1568, 0.0
        %v1601 = vsel %vm1382, %v1570, 0.0
        %v1602 = vadd.f32 %v1600, %v1601
        %v1603 = vsel %vm1382, %v1572, 0.0
        %v1604 = vadd.f32 %v1602, %v1603
        %v1605 = vsel %vm1382, %v1574, 0.0
        %v1606 = vadd.f32 %v1604, %v1605
        %v1607 = vsel %vm1390, %v1569, 0.0
        %v1608 = vsel %vm1390, %v1571, 0.0
        %v1609 = vadd.f32 %v1607, %v1608
        %v1610 = vsel %vm1390, %v1573, 0.0
        %v1611 = vadd.f32 %v1609, %v1610
        %v1612 = vsel %vm1390, %v1575, 0.0
        %v1613 = vadd.f32 %v1611, %v1612
        %v1614 = vsel %vm1382, %v1576, 0.0
        %v1615 = vsel %vm1382, %v1578, 0.0
        %v1616 = vadd.f32 %v1614, %v1615
        %v1617 = vsel %vm1382, %v1580, 0.0
        %v1618 = vadd.f32 %v1616, %v1617
        %v1619 = vsel %vm1382, %v1582, 0.0
        %v1620 = vadd.f32 %v1618, %v1619
        %v1621 = vsel %vm1390, %v1577, 0.0
        %v1622 = vsel %vm1390, %v1579, 0.0
        %v1623 = vadd.f32 %v1621, %v1622
        %v1624 = vsel %vm1390, %v1581, 0.0
        %v1625 = vadd.f32 %v1623, %v1624
        %v1626 = vsel %vm1390, %v1583, 0.0
        %v1627 = vadd.f32 %v1625, %v1626
        %v1628 = vsel %vm1382, %v1584, 0.0
        %v1629 = vsel %vm1382, %v1586, 0.0
        %v1630 = vadd.f32 %v1628, %v1629
        %v1631 = vsel %vm1382, %v1588, 0.0
        %v1632 = vadd.f32 %v1630, %v1631
        %v1633 = vsel %vm1382, %v1590, 0.0
        %v1634 = vadd.f32 %v1632, %v1633
        %v1635 = vsel %vm1390, %v1585, 0.0
        %v1636 = vsel %vm1390, %v1587, 0.0
        %v1637 = vadd.f32 %v1635, %v1636
        %v1638 = vsel %vm1390, %v1589, 0.0
        %v1639 = vadd.f32 %v1637, %v1638
        %v1640 = vsel %vm1390, %v1591, 0.0
        %v1641 = vadd.f32 %v1639, %v1640
        %v1642 = vsel %vm1382, %v1592, 0.0
        %v1643 = vsel %vm1382, %v1594, 0.0
        %v1644 = vadd.f32 %v1642, %v1643
        %v1645 = vsel %vm1382, %v1596, 0.0
        %v1646 = vadd.f32 %v1644, %v1645
        %v1647 = vsel %vm1382, %v1598, 0.0
        %v1648 = vadd.f32 %v1646, %v1647
        %v1649 = vsel %vm1390, %v1593, 0.0
        %v1650 = vsel %vm1390, %v1595, 0.0
        %v1651 = vadd.f32 %v1649, %v1650
        %v1652 = vsel %vm1390, %v1597, 0.0
        %v1653 = vadd.f32 %v1651, %v1652
        %v1654 = vsel %vm1390, %v1599, 0.0
        %v1655 = vadd.f32 %v1653, %v1654
        %v1664 = vrot.slane %v1606, 1
        %v1665 = vrot.slane %v1613, 1
        %v1666 = vsel %vm1049, %v1664, %v1665
        %v1667 = vrot.slane %v1620, 1
        %v1668 = vrot.slane %v1627, 1
        %v1669 = vsel %vm1049, %v1667, %v1668
        %v1670 = vrot.slane %v1634, 1
        %v1671 = vrot.slane %v1641, 1
        %v1672 = vsel %vm1049, %v1670, %v1671
        %v1673 = vrot.slane %v1648, 1
        %v1674 = vrot.slane %v1655, 1
        %v1675 = vsel %vm1049, %v1673, %v1674
        %v1680 = vadd.f32 %v855, %v1666
        %v1681 = vadd.f32 %v856, %v1669
        %v1682 = vadd.f32 %v857, %v1672
        %v1683 = vadd.f32 %v858, %v1675
        %v1684 = vlaneseq
        %v1685 = vshrl.u32 %v1684, 7
        %v1686 = vsub.s32 0, %v1685
        %v1687 = vrot.slane %v257, %v1686
        %1689 = vbcast.lane.b32.xlu0 %v1687, 256
        %v1690 = vpop.permute.xlu0 %1689
        %v1691 = vlaneseq
        %v1692 = vshrl.u32 %v1691, 7
        %v1693 = vsub.s32 1, %v1692
        %v1694 = vrot.slane %v257, %v1693
        %1696 = vbcast.lane.b32.xlu0 %v1694, 256
        %v1697 = vpop.permute.xlu0 %1696
        %v1698 = vlaneseq
        %v1699 = vshrl.u32 %v1698, 7
        %v1700 = vsub.s32 2, %v1699
        %v1701 = vrot.slane %v257, %v1700
        %1703 = vbcast.lane.b32.xlu0 %v1701, 256
        %v1704 = vpop.permute.xlu0 %1703
        %v1705 = vlaneseq
        %v1706 = vshrl.u32 %v1705, 7
        %v1707 = vsub.s32 3, %v1706
        %v1708 = vrot.slane %v257, %v1707
        %1710 = vbcast.lane.b32.xlu0 %v1708, 256
        %v1711 = vpop.permute.xlu0 %1710
        %v1712 = vlaneseq
        %v1713 = vshrl.u32 %v1712, 7
        %v1714 = vsub.s32 0, %v1713
        %v1715 = vrot.slane %v1690, %v1714
        %v1716 = vlaneseq
        %v1717 = vshrl.u32 %v1716, 7
        %v1718 = vsub.s32 1, %v1717
        %v1719 = vrot.slane %v1690, %v1718
        %v1720 = vlaneseq
        %v1721 = vshrl.u32 %v1720, 7
        %v1722 = vsub.s32 2, %v1721
        %v1723 = vrot.slane %v1690, %v1722
        %v1724 = vlaneseq
        %v1725 = vshrl.u32 %v1724, 7
        %v1726 = vsub.s32 3, %v1725
        %v1727 = vrot.slane %v1690, %v1726
        %v1728 = vlaneseq
        %v1729 = vshrl.u32 %v1728, 7
        %v1730 = vsub.s32 0, %v1729
        %v1731 = vrot.slane %v1697, %v1730
        %v1732 = vlaneseq
        %v1733 = vshrl.u32 %v1732, 7
        %v1734 = vsub.s32 1, %v1733
        %v1735 = vrot.slane %v1697, %v1734
        %v1736 = vlaneseq
        %v1737 = vshrl.u32 %v1736, 7
        %v1738 = vsub.s32 2, %v1737
        %v1739 = vrot.slane %v1697, %v1738
        %v1740 = vlaneseq
        %v1741 = vshrl.u32 %v1740, 7
        %v1742 = vsub.s32 3, %v1741
        %v1743 = vrot.slane %v1697, %v1742
        %v1744 = vlaneseq
        %v1745 = vshrl.u32 %v1744, 7
        %v1746 = vsub.s32 0, %v1745
        %v1747 = vrot.slane %v1704, %v1746
        %v1748 = vlaneseq
        %v1749 = vshrl.u32 %v1748, 7
        %v1750 = vsub.s32 1, %v1749
        %v1751 = vrot.slane %v1704, %v1750
        %v1752 = vlaneseq
        %v1753 = vshrl.u32 %v1752, 7
        %v1754 = vsub.s32 2, %v1753
        %v1755 = vrot.slane %v1704, %v1754
        %v1756 = vlaneseq
        %v1757 = vshrl.u32 %v1756, 7
        %v1758 = vsub.s32 3, %v1757
        %v1759 = vrot.slane %v1704, %v1758
        %v1760 = vlaneseq
        %v1761 = vshrl.u32 %v1760, 7
        %v1762 = vsub.s32 0, %v1761
        %v1763 = vrot.slane %v1711, %v1762
        %v1764 = vlaneseq
        %v1765 = vshrl.u32 %v1764, 7
        %v1766 = vsub.s32 1, %v1765
        %v1767 = vrot.slane %v1711, %v1766
        %v1768 = vlaneseq
        %v1769 = vshrl.u32 %v1768, 7
        %v1770 = vsub.s32 2, %v1769
        %v1771 = vrot.slane %v1711, %v1770
        %v1772 = vlaneseq
        %v1773 = vshrl.u32 %v1772, 7
        %v1774 = vsub.s32 3, %v1773
        %v1775 = vrot.slane %v1711, %v1774
        %v1776 = vmul.f32 %v1715, %v240
        %v1777 = vmul.f32 %v1715, %v241
        %v1778 = vmul.f32 %v1719, %v242
        %v1779 = vmul.f32 %v1719, %v243
        %v1780 = vmul.f32 %v1723, %v244
        %v1781 = vmul.f32 %v1723, %v245
        %v1782 = vmul.f32 %v1727, %v246
        %v1783 = vmul.f32 %v1727, %v247
        %v1784 = vmul.f32 %v1731, %v240
        %v1785 = vmul.f32 %v1731, %v241
        %v1786 = vmul.f32 %v1735, %v242
        %v1787 = vmul.f32 %v1735, %v243
        %v1788 = vmul.f32 %v1739, %v244
        %v1789 = vmul.f32 %v1739, %v245
        %v1790 = vmul.f32 %v1743, %v246
        %v1791 = vmul.f32 %v1743, %v247
        %v1792 = vmul.f32 %v1747, %v240
        %v1793 = vmul.f32 %v1747, %v241
        %v1794 = vmul.f32 %v1751, %v242
        %v1795 = vmul.f32 %v1751, %v243
        %v1796 = vmul.f32 %v1755, %v244
        %v1797 = vmul.f32 %v1755, %v245
        %v1798 = vmul.f32 %v1759, %v246
        %v1799 = vmul.f32 %v1759, %v247
        %v1800 = vmul.f32 %v1763, %v240
        %v1801 = vmul.f32 %v1763, %v241
        %v1802 = vmul.f32 %v1767, %v242
        %v1803 = vmul.f32 %v1767, %v243
        %v1804 = vmul.f32 %v1771, %v244
        %v1805 = vmul.f32 %v1771, %v245
        %v1806 = vmul.f32 %v1775, %v246
        %v1807 = vmul.f32 %v1775, %v247
        %v1808 = vsel %vm1382, %v1776, 0.0
        %v1809 = vsel %vm1382, %v1778, 0.0
        %v1810 = vadd.f32 %v1808, %v1809
        %v1811 = vsel %vm1382, %v1780, 0.0
        %v1812 = vadd.f32 %v1810, %v1811
        %v1813 = vsel %vm1382, %v1782, 0.0
        %v1814 = vadd.f32 %v1812, %v1813
        %v1815 = vsel %vm1390, %v1777, 0.0
        %v1816 = vsel %vm1390, %v1779, 0.0
        %v1817 = vadd.f32 %v1815, %v1816
        %v1818 = vsel %vm1390, %v1781, 0.0
        %v1819 = vadd.f32 %v1817, %v1818
        %v1820 = vsel %vm1390, %v1783, 0.0
        %v1821 = vadd.f32 %v1819, %v1820
        %v1822 = vsel %vm1382, %v1784, 0.0
        %v1823 = vsel %vm1382, %v1786, 0.0
        %v1824 = vadd.f32 %v1822, %v1823
        %v1825 = vsel %vm1382, %v1788, 0.0
        %v1826 = vadd.f32 %v1824, %v1825
        %v1827 = vsel %vm1382, %v1790, 0.0
        %v1828 = vadd.f32 %v1826, %v1827
        %v1829 = vsel %vm1390, %v1785, 0.0
        %v1830 = vsel %vm1390, %v1787, 0.0
        %v1831 = vadd.f32 %v1829, %v1830
        %v1832 = vsel %vm1390, %v1789, 0.0
        %v1833 = vadd.f32 %v1831, %v1832
        %v1834 = vsel %vm1390, %v1791, 0.0
        %v1835 = vadd.f32 %v1833, %v1834
        %v1836 = vsel %vm1382, %v1792, 0.0
        %v1837 = vsel %vm1382, %v1794, 0.0
        %v1838 = vadd.f32 %v1836, %v1837
        %v1839 = vsel %vm1382, %v1796, 0.0
        %v1840 = vadd.f32 %v1838, %v1839
        %v1841 = vsel %vm1382, %v1798, 0.0
        %v1842 = vadd.f32 %v1840, %v1841
        %v1843 = vsel %vm1390, %v1793, 0.0
        %v1844 = vsel %vm1390, %v1795, 0.0
        %v1845 = vadd.f32 %v1843, %v1844
        %v1846 = vsel %vm1390, %v1797, 0.0
        %v1847 = vadd.f32 %v1845, %v1846
        %v1848 = vsel %vm1390, %v1799, 0.0
        %v1849 = vadd.f32 %v1847, %v1848
        %v1850 = vsel %vm1382, %v1800, 0.0
        %v1851 = vsel %vm1382, %v1802, 0.0
        %v1852 = vadd.f32 %v1850, %v1851
        %v1853 = vsel %vm1382, %v1804, 0.0
        %v1854 = vadd.f32 %v1852, %v1853
        %v1855 = vsel %vm1382, %v1806, 0.0
        %v1856 = vadd.f32 %v1854, %v1855
        %v1857 = vsel %vm1390, %v1801, 0.0
        %v1858 = vsel %vm1390, %v1803, 0.0
        %v1859 = vadd.f32 %v1857, %v1858
        %v1860 = vsel %vm1390, %v1805, 0.0
        %v1861 = vadd.f32 %v1859, %v1860
        %v1862 = vsel %vm1390, %v1807, 0.0
        %v1863 = vadd.f32 %v1861, %v1862
        %1872 = vrot.lane.b32.xlu0 %v1814, 127
        %v1873 = vpop.permute.xlu0 %1872
        %1874 = vrot.lane.b32.xlu0 %v1821, 127
        %v1875 = vpop.permute.xlu0 %1874
        %1876 = vrot.lane.b32.xlu0 %v1828, 127
        %v1877 = vpop.permute.xlu0 %1876
        %1878 = vrot.lane.b32.xlu0 %v1835, 127
        %v1879 = vpop.permute.xlu0 %1878
        %1880 = vrot.lane.b32.xlu0 %v1842, 127
        %v1881 = vpop.permute.xlu0 %1880
        %1882 = vrot.lane.b32.xlu0 %v1849, 127
        %v1883 = vpop.permute.xlu0 %1882
        %1884 = vrot.lane.b32.xlu0 %v1856, 127
        %v1885 = vpop.permute.xlu0 %1884
        %1886 = vrot.lane.b32.xlu0 %v1863, 127
        %v1887 = vpop.permute.xlu0 %1886
        %v1896 = vadd.f32 %v1250, %v1873
        %v1897 = vadd.f32 %v1251, %v1875
        %v1898 = vadd.f32 %v1252, %v1877
        %v1899 = vadd.f32 %v1253, %v1879
        %v1900 = vadd.f32 %v1254, %v1881
        %v1901 = vadd.f32 %v1255, %v1883
        %v1902 = vadd.f32 %v1256, %v1885
        %v1903 = vadd.f32 %v1257, %v1887
        %v1904 = vlaneseq
        %v1905 = vshrl.u32 %v1904, 7
        %v1906 = vsub.s32 0, %v1905
        %v1907 = vrot.slane %v260, %v1906
        %1909 = vbcast.lane.b32.xlu0 %v1907, 256
        %v1910 = vpop.permute.xlu0 %1909
        %v1911 = vlaneseq
        %v1912 = vshrl.u32 %v1911, 7
        %v1913 = vsub.s32 1, %v1912
        %v1914 = vrot.slane %v260, %v1913
        %1916 = vbcast.lane.b32.xlu0 %v1914, 256
        %v1917 = vpop.permute.xlu0 %1916
        %v1918 = vlaneseq
        %v1919 = vshrl.u32 %v1918, 7
        %v1920 = vsub.s32 2, %v1919
        %v1921 = vrot.slane %v260, %v1920
        %1923 = vbcast.lane.b32.xlu0 %v1921, 256
        %v1924 = vpop.permute.xlu0 %1923
        %v1925 = vlaneseq
        %v1926 = vshrl.u32 %v1925, 7
        %v1927 = vsub.s32 3, %v1926
        %v1928 = vrot.slane %v260, %v1927
        %1930 = vbcast.lane.b32.xlu0 %v1928, 256
        %v1931 = vpop.permute.xlu0 %1930
        %v1932 = vlaneseq
        %v1933 = vshrl.u32 %v1932, 7
        %v1934 = vsub.s32 0, %v1933
        %v1935 = vrot.slane %v1910, %v1934
        %v1936 = vlaneseq
        %v1937 = vshrl.u32 %v1936, 7
        %v1938 = vsub.s32 1, %v1937
        %v1939 = vrot.slane %v1910, %v1938
        %v1940 = vlaneseq
        %v1941 = vshrl.u32 %v1940, 7
        %v1942 = vsub.s32 2, %v1941
        %v1943 = vrot.slane %v1910, %v1942
        %v1944 = vlaneseq
        %v1945 = vshrl.u32 %v1944, 7
        %v1946 = vsub.s32 3, %v1945
        %v1947 = vrot.slane %v1910, %v1946
        %v1948 = vlaneseq
        %v1949 = vshrl.u32 %v1948, 7
        %v1950 = vsub.s32 0, %v1949
        %v1951 = vrot.slane %v1917, %v1950
        %v1952 = vlaneseq
        %v1953 = vshrl.u32 %v1952, 7
        %v1954 = vsub.s32 1, %v1953
        %v1955 = vrot.slane %v1917, %v1954
        %v1956 = vlaneseq
        %v1957 = vshrl.u32 %v1956, 7
        %v1958 = vsub.s32 2, %v1957
        %v1959 = vrot.slane %v1917, %v1958
        %v1960 = vlaneseq
        %v1961 = vshrl.u32 %v1960, 7
        %v1962 = vsub.s32 3, %v1961
        %v1963 = vrot.slane %v1917, %v1962
        %v1964 = vlaneseq
        %v1965 = vshrl.u32 %v1964, 7
        %v1966 = vsub.s32 0, %v1965
        %v1967 = vrot.slane %v1924, %v1966
        %v1968 = vlaneseq
        %v1969 = vshrl.u32 %v1968, 7
        %v1970 = vsub.s32 1, %v1969
        %v1971 = vrot.slane %v1924, %v1970
        %v1972 = vlaneseq
        %v1973 = vshrl.u32 %v1972, 7
        %v1974 = vsub.s32 2, %v1973
        %v1975 = vrot.slane %v1924, %v1974
        %v1976 = vlaneseq
        %v1977 = vshrl.u32 %v1976, 7
        %v1978 = vsub.s32 3, %v1977
        %v1979 = vrot.slane %v1924, %v1978
        %v1980 = vlaneseq
        %v1981 = vshrl.u32 %v1980, 7
        %v1982 = vsub.s32 0, %v1981
        %v1983 = vrot.slane %v1931, %v1982
        %v1984 = vlaneseq
        %v1985 = vshrl.u32 %v1984, 7
        %v1986 = vsub.s32 1, %v1985
        %v1987 = vrot.slane %v1931, %v1986
        %v1988 = vlaneseq
        %v1989 = vshrl.u32 %v1988, 7
        %v1990 = vsub.s32 2, %v1989
        %v1991 = vrot.slane %v1931, %v1990
        %v1992 = vlaneseq
        %v1993 = vshrl.u32 %v1992, 7
        %v1994 = vsub.s32 3, %v1993
        %v1995 = vrot.slane %v1931, %v1994
        %v1996 = vmul.f32 %v1935, %v240
        %v1997 = vmul.f32 %v1935, %v241
        %v1998 = vmul.f32 %v1939, %v242
        %v1999 = vmul.f32 %v1939, %v243
        %v2000 = vmul.f32 %v1943, %v244
        %v2001 = vmul.f32 %v1943, %v245
        %v2002 = vmul.f32 %v1947, %v246
        %v2003 = vmul.f32 %v1947, %v247
        %v2004 = vmul.f32 %v1951, %v240
        %v2005 = vmul.f32 %v1951, %v241
        %v2006 = vmul.f32 %v1955, %v242
        %v2007 = vmul.f32 %v1955, %v243
        %v2008 = vmul.f32 %v1959, %v244
        %v2009 = vmul.f32 %v1959, %v245
        %v2010 = vmul.f32 %v1963, %v246
        %v2011 = vmul.f32 %v1963, %v247
        %v2012 = vmul.f32 %v1967, %v240
        %v2013 = vmul.f32 %v1967, %v241
        %v2014 = vmul.f32 %v1971, %v242
        %v2015 = vmul.f32 %v1971, %v243
        %v2016 = vmul.f32 %v1975, %v244
        %v2017 = vmul.f32 %v1975, %v245
        %v2018 = vmul.f32 %v1979, %v246
        %v2019 = vmul.f32 %v1979, %v247
        %v2020 = vmul.f32 %v1983, %v240
        %v2021 = vmul.f32 %v1983, %v241
        %v2022 = vmul.f32 %v1987, %v242
        %v2023 = vmul.f32 %v1987, %v243
        %v2024 = vmul.f32 %v1991, %v244
        %v2025 = vmul.f32 %v1991, %v245
        %v2026 = vmul.f32 %v1995, %v246
        %v2027 = vmul.f32 %v1995, %v247
        %v2028 = vsel %vm1382, %v1996, 0.0
        %v2029 = vsel %vm1382, %v1998, 0.0
        %v2030 = vadd.f32 %v2028, %v2029
        %v2031 = vsel %vm1382, %v2000, 0.0
        %v2032 = vadd.f32 %v2030, %v2031
        %v2033 = vsel %vm1382, %v2002, 0.0
        %v2034 = vadd.f32 %v2032, %v2033
        %v2035 = vsel %vm1390, %v1997, 0.0
        %v2036 = vsel %vm1390, %v1999, 0.0
        %v2037 = vadd.f32 %v2035, %v2036
        %v2038 = vsel %vm1390, %v2001, 0.0
        %v2039 = vadd.f32 %v2037, %v2038
        %v2040 = vsel %vm1390, %v2003, 0.0
        %v2041 = vadd.f32 %v2039, %v2040
        %v2042 = vsel %vm1382, %v2004, 0.0
        %v2043 = vsel %vm1382, %v2006, 0.0
        %v2044 = vadd.f32 %v2042, %v2043
        %v2045 = vsel %vm1382, %v2008, 0.0
        %v2046 = vadd.f32 %v2044, %v2045
        %v2047 = vsel %vm1382, %v2010, 0.0
        %v2048 = vadd.f32 %v2046, %v2047
        %v2049 = vsel %vm1390, %v2005, 0.0
        %v2050 = vsel %vm1390, %v2007, 0.0
        %v2051 = vadd.f32 %v2049, %v2050
        %v2052 = vsel %vm1390, %v2009, 0.0
        %v2053 = vadd.f32 %v2051, %v2052
        %v2054 = vsel %vm1390, %v2011, 0.0
        %v2055 = vadd.f32 %v2053, %v2054
        %v2056 = vsel %vm1382, %v2012, 0.0
        %v2057 = vsel %vm1382, %v2014, 0.0
        %v2058 = vadd.f32 %v2056, %v2057
        %v2059 = vsel %vm1382, %v2016, 0.0
        %v2060 = vadd.f32 %v2058, %v2059
        %v2061 = vsel %vm1382, %v2018, 0.0
        %v2062 = vadd.f32 %v2060, %v2061
        %v2063 = vsel %vm1390, %v2013, 0.0
        %v2064 = vsel %vm1390, %v2015, 0.0
        %v2065 = vadd.f32 %v2063, %v2064
        %v2066 = vsel %vm1390, %v2017, 0.0
        %v2067 = vadd.f32 %v2065, %v2066
        %v2068 = vsel %vm1390, %v2019, 0.0
        %v2069 = vadd.f32 %v2067, %v2068
        %v2070 = vsel %vm1382, %v2020, 0.0
        %v2071 = vsel %vm1382, %v2022, 0.0
        %v2072 = vadd.f32 %v2070, %v2071
        %v2073 = vsel %vm1382, %v2024, 0.0
        %v2074 = vadd.f32 %v2072, %v2073
        %v2075 = vsel %vm1382, %v2026, 0.0
        %v2076 = vadd.f32 %v2074, %v2075
        %v2077 = vsel %vm1390, %v2021, 0.0
        %v2078 = vsel %vm1390, %v2023, 0.0
        %v2079 = vadd.f32 %v2077, %v2078
        %v2080 = vsel %vm1390, %v2025, 0.0
        %v2081 = vadd.f32 %v2079, %v2080
        %v2082 = vsel %vm1390, %v2027, 0.0
        %v2083 = vadd.f32 %v2081, %v2082
        %v2084 = vadd.f32 %v2034, 0.0
        %v2085 = vadd.f32 %v2041, 0.0
        %v2086 = vadd.f32 %v2048, 0.0
        %v2087 = vadd.f32 %v2055, 0.0
        %v2088 = vadd.f32 %v2062, 0.0
        %v2089 = vadd.f32 %v2069, 0.0
        %v2090 = vadd.f32 %v2076, 0.0
        %v2091 = vadd.f32 %v2083, 0.0
        %v2092 = vlaneseq
        %v2093 = vshrl.u32 %v2092, 7
        %v2094 = vsub.s32 0, %v2093
        %v2095 = vrot.slane %v255, %v2094
        %2097 = vbcast.lane.b32.xlu0 %v2095, 256
        %v2098 = vpop.permute.xlu0 %2097
        %v2099 = vlaneseq
        %v2100 = vshrl.u32 %v2099, 7
        %v2101 = vsub.s32 1, %v2100
        %v2102 = vrot.slane %v255, %v2101
        %2104 = vbcast.lane.b32.xlu0 %v2102, 256
        %v2105 = vpop.permute.xlu0 %2104
        %v2106 = vlaneseq
        %v2107 = vshrl.u32 %v2106, 7
        %v2108 = vsub.s32 2, %v2107
        %v2109 = vrot.slane %v255, %v2108
        %2111 = vbcast.lane.b32.xlu0 %v2109, 256
        %v2112 = vpop.permute.xlu0 %2111
        %v2113 = vlaneseq
        %v2114 = vshrl.u32 %v2113, 7
        %v2115 = vsub.s32 3, %v2114
        %v2116 = vrot.slane %v255, %v2115
        %2118 = vbcast.lane.b32.xlu0 %v2116, 256
        %v2119 = vpop.permute.xlu0 %2118
        %v2120 = vlaneseq
        %v2121 = vshrl.u32 %v2120, 7
        %v2122 = vsub.s32 0, %v2121
        %v2123 = vrot.slane %v2098, %v2122
        %v2124 = vlaneseq
        %v2125 = vshrl.u32 %v2124, 7
        %v2126 = vsub.s32 1, %v2125
        %v2127 = vrot.slane %v2098, %v2126
        %v2128 = vlaneseq
        %v2129 = vshrl.u32 %v2128, 7
        %v2130 = vsub.s32 2, %v2129
        %v2131 = vrot.slane %v2098, %v2130
        %v2132 = vlaneseq
        %v2133 = vshrl.u32 %v2132, 7
        %v2134 = vsub.s32 3, %v2133
        %v2135 = vrot.slane %v2098, %v2134
        %v2136 = vlaneseq
        %v2137 = vshrl.u32 %v2136, 7
        %v2138 = vsub.s32 0, %v2137
        %v2139 = vrot.slane %v2105, %v2138
        %v2140 = vlaneseq
        %v2141 = vshrl.u32 %v2140, 7
        %v2142 = vsub.s32 1, %v2141
        %v2143 = vrot.slane %v2105, %v2142
        %v2144 = vlaneseq
        %v2145 = vshrl.u32 %v2144, 7
        %v2146 = vsub.s32 2, %v2145
        %v2147 = vrot.slane %v2105, %v2146
        %v2148 = vlaneseq
        %v2149 = vshrl.u32 %v2148, 7
        %v2150 = vsub.s32 3, %v2149
        %v2151 = vrot.slane %v2105, %v2150
        %v2152 = vlaneseq
        %v2153 = vshrl.u32 %v2152, 7
        %v2154 = vsub.s32 0, %v2153
        %v2155 = vrot.slane %v2112, %v2154
        %v2156 = vlaneseq
        %v2157 = vshrl.u32 %v2156, 7
        %v2158 = vsub.s32 1, %v2157
        %v2159 = vrot.slane %v2112, %v2158
        %v2160 = vlaneseq
        %v2161 = vshrl.u32 %v2160, 7
        %v2162 = vsub.s32 2, %v2161
        %v2163 = vrot.slane %v2112, %v2162
        %v2164 = vlaneseq
        %v2165 = vshrl.u32 %v2164, 7
        %v2166 = vsub.s32 3, %v2165
        %v2167 = vrot.slane %v2112, %v2166
        %v2168 = vlaneseq
        %v2169 = vshrl.u32 %v2168, 7
        %v2170 = vsub.s32 0, %v2169
        %v2171 = vrot.slane %v2119, %v2170
        %v2172 = vlaneseq
        %v2173 = vshrl.u32 %v2172, 7
        %v2174 = vsub.s32 1, %v2173
        %v2175 = vrot.slane %v2119, %v2174
        %v2176 = vlaneseq
        %v2177 = vshrl.u32 %v2176, 7
        %v2178 = vsub.s32 2, %v2177
        %v2179 = vrot.slane %v2119, %v2178
        %v2180 = vlaneseq
        %v2181 = vshrl.u32 %v2180, 7
        %v2182 = vsub.s32 3, %v2181
        %v2183 = vrot.slane %v2119, %v2182
        %v2184 = vmul.f32 %v2123, %v240
        %v2185 = vmul.f32 %v2123, %v241
        %v2186 = vmul.f32 %v2127, %v242
        %v2187 = vmul.f32 %v2127, %v243
        %v2188 = vmul.f32 %v2131, %v244
        %v2189 = vmul.f32 %v2131, %v245
        %v2190 = vmul.f32 %v2135, %v246
        %v2191 = vmul.f32 %v2135, %v247
        %v2192 = vmul.f32 %v2139, %v240
        %v2193 = vmul.f32 %v2139, %v241
        %v2194 = vmul.f32 %v2143, %v242
        %v2195 = vmul.f32 %v2143, %v243
        %v2196 = vmul.f32 %v2147, %v244
        %v2197 = vmul.f32 %v2147, %v245
        %v2198 = vmul.f32 %v2151, %v246
        %v2199 = vmul.f32 %v2151, %v247
        %v2200 = vmul.f32 %v2155, %v240
        %v2201 = vmul.f32 %v2155, %v241
        %v2202 = vmul.f32 %v2159, %v242
        %v2203 = vmul.f32 %v2159, %v243
        %v2204 = vmul.f32 %v2163, %v244
        %v2205 = vmul.f32 %v2163, %v245
        %v2206 = vmul.f32 %v2167, %v246
        %v2207 = vmul.f32 %v2167, %v247
        %v2208 = vmul.f32 %v2171, %v240
        %v2209 = vmul.f32 %v2171, %v241
        %v2210 = vmul.f32 %v2175, %v242
        %v2211 = vmul.f32 %v2175, %v243
        %v2212 = vmul.f32 %v2179, %v244
        %v2213 = vmul.f32 %v2179, %v245
        %v2214 = vmul.f32 %v2183, %v246
        %v2215 = vmul.f32 %v2183, %v247
        %vm2216 = vcmask 146449
        %v2217 = vsel %vm2216, %v2184, 0.0
        %v2218 = vsel %vm2216, %v2186, 0.0
        %v2219 = vadd.f32 %v2217, %v2218
        %v2220 = vsel %vm2216, %v2188, 0.0
        %v2221 = vadd.f32 %v2219, %v2220
        %v2222 = vsel %vm2216, %v2190, 0.0
        %v2223 = vadd.f32 %v2221, %v2222
        %vm2224 = vcmask 139280
        %v2225 = vsel %vm2224, %v2185, 0.0
        %v2226 = vsel %vm2224, %v2187, 0.0
        %v2227 = vadd.f32 %v2225, %v2226
        %v2228 = vsel %vm2224, %v2189, 0.0
        %v2229 = vadd.f32 %v2227, %v2228
        %v2230 = vsel %vm2224, %v2191, 0.0
        %v2231 = vadd.f32 %v2229, %v2230
        %v2232 = vsel %vm2216, %v2192, 0.0
        %v2233 = vsel %vm2216, %v2194, 0.0
        %v2234 = vadd.f32 %v2232, %v2233
        %v2235 = vsel %vm2216, %v2196, 0.0
        %v2236 = vadd.f32 %v2234, %v2235
        %v2237 = vsel %vm2216, %v2198, 0.0
        %v2238 = vadd.f32 %v2236, %v2237
        %v2239 = vsel %vm2224, %v2193, 0.0
        %v2240 = vsel %vm2224, %v2195, 0.0
        %v2241 = vadd.f32 %v2239, %v2240
        %v2242 = vsel %vm2224, %v2197, 0.0
        %v2243 = vadd.f32 %v2241, %v2242
        %v2244 = vsel %vm2224, %v2199, 0.0
        %v2245 = vadd.f32 %v2243, %v2244
        %v2246 = vsel %vm2216, %v2200, 0.0
        %v2247 = vsel %vm2216, %v2202, 0.0
        %v2248 = vadd.f32 %v2246, %v2247
        %v2249 = vsel %vm2216, %v2204, 0.0
        %v2250 = vadd.f32 %v2248, %v2249
        %v2251 = vsel %vm2216, %v2206, 0.0
        %v2252 = vadd.f32 %v2250, %v2251
        %v2253 = vsel %vm2224, %v2201, 0.0
        %v2254 = vsel %vm2224, %v2203, 0.0
        %v2255 = vadd.f32 %v2253, %v2254
        %v2256 = vsel %vm2224, %v2205, 0.0
        %v2257 = vadd.f32 %v2255, %v2256
        %v2258 = vsel %vm2224, %v2207, 0.0
        %v2259 = vadd.f32 %v2257, %v2258
        %v2260 = vsel %vm2216, %v2208, 0.0
        %v2261 = vsel %vm2216, %v2210, 0.0
        %v2262 = vadd.f32 %v2260, %v2261
        %v2263 = vsel %vm2216, %v2212, 0.0
        %v2264 = vadd.f32 %v2262, %v2263
        %v2265 = vsel %vm2216, %v2214, 0.0
        %v2266 = vadd.f32 %v2264, %v2265
        %v2267 = vsel %vm2224, %v2209, 0.0
        %v2268 = vsel %vm2224, %v2211, 0.0
        %v2269 = vadd.f32 %v2267, %v2268
        %v2270 = vsel %vm2224, %v2213, 0.0
        %v2271 = vadd.f32 %v2269, %v2270
        %v2272 = vsel %vm2224, %v2215, 0.0
        %v2273 = vadd.f32 %v2271, %v2272
        %v2282 = vrot.slane %v2223, 1
        %v2283 = vrot.slane %v2231, 1
        %v2284 = vsel %vm1049, %v2282, %v2283
        %v2285 = vrot.slane %v2238, 1
        %v2286 = vrot.slane %v2245, 1
        %v2287 = vsel %vm1049, %v2285, %v2286
        %v2288 = vrot.slane %v2252, 1
        %v2289 = vrot.slane %v2259, 1
        %v2290 = vsel %vm1049, %v2288, %v2289
        %v2291 = vrot.slane %v2266, 1
        %v2292 = vrot.slane %v2273, 1
        %v2293 = vsel %vm1049, %v2291, %v2292
        %2294 = vrot.lane.b32.xlu0 %v2284, 127
        %v2295 = vpop.permute.xlu0 %2294
        %2296 = vrot.lane.b32.xlu0 %v2287, 127
        %v2297 = vpop.permute.xlu0 %2296
        %2298 = vrot.lane.b32.xlu0 %v2290, 127
        %v2299 = vpop.permute.xlu0 %2298
        %2300 = vrot.lane.b32.xlu0 %v2293, 127
        %v2301 = vpop.permute.xlu0 %2300
        %v2306 = vadd.f32 %v1680, %v2295
        %v2307 = vadd.f32 %v1681, %v2297
        %v2308 = vadd.f32 %v1682, %v2299
        %v2309 = vadd.f32 %v1683, %v2301
        %v2310 = vlaneseq
        %v2311 = vshrl.u32 %v2310, 7
        %v2312 = vsub.s32 0, %v2311
        %v2313 = vrot.slane %v261, %v2312
        %2315 = vbcast.lane.b32.xlu0 %v2313, 256
        %v2316 = vpop.permute.xlu0 %2315
        %v2317 = vlaneseq
        %v2318 = vshrl.u32 %v2317, 7
        %v2319 = vsub.s32 1, %v2318
        %v2320 = vrot.slane %v261, %v2319
        %2322 = vbcast.lane.b32.xlu0 %v2320, 256
        %v2323 = vpop.permute.xlu0 %2322
        %v2324 = vlaneseq
        %v2325 = vshrl.u32 %v2324, 7
        %v2326 = vsub.s32 2, %v2325
        %v2327 = vrot.slane %v261, %v2326
        %2329 = vbcast.lane.b32.xlu0 %v2327, 256
        %v2330 = vpop.permute.xlu0 %2329
        %v2331 = vlaneseq
        %v2332 = vshrl.u32 %v2331, 7
        %v2333 = vsub.s32 3, %v2332
        %v2334 = vrot.slane %v261, %v2333
        %2336 = vbcast.lane.b32.xlu0 %v2334, 256
        %v2337 = vpop.permute.xlu0 %2336
        %v2338 = vlaneseq
        %v2339 = vshrl.u32 %v2338, 7
        %v2340 = vsub.s32 0, %v2339
        %v2341 = vrot.slane %v2316, %v2340
        %v2342 = vlaneseq
        %v2343 = vshrl.u32 %v2342, 7
        %v2344 = vsub.s32 1, %v2343
        %v2345 = vrot.slane %v2316, %v2344
        %v2346 = vlaneseq
        %v2347 = vshrl.u32 %v2346, 7
        %v2348 = vsub.s32 2, %v2347
        %v2349 = vrot.slane %v2316, %v2348
        %v2350 = vlaneseq
        %v2351 = vshrl.u32 %v2350, 7
        %v2352 = vsub.s32 3, %v2351
        %v2353 = vrot.slane %v2316, %v2352
        %v2354 = vlaneseq
        %v2355 = vshrl.u32 %v2354, 7
        %v2356 = vsub.s32 0, %v2355
        %v2357 = vrot.slane %v2323, %v2356
        %v2358 = vlaneseq
        %v2359 = vshrl.u32 %v2358, 7
        %v2360 = vsub.s32 1, %v2359
        %v2361 = vrot.slane %v2323, %v2360
        %v2362 = vlaneseq
        %v2363 = vshrl.u32 %v2362, 7
        %v2364 = vsub.s32 2, %v2363
        %v2365 = vrot.slane %v2323, %v2364
        %v2366 = vlaneseq
        %v2367 = vshrl.u32 %v2366, 7
        %v2368 = vsub.s32 3, %v2367
        %v2369 = vrot.slane %v2323, %v2368
        %v2370 = vlaneseq
        %v2371 = vshrl.u32 %v2370, 7
        %v2372 = vsub.s32 0, %v2371
        %v2373 = vrot.slane %v2330, %v2372
        %v2374 = vlaneseq
        %v2375 = vshrl.u32 %v2374, 7
        %v2376 = vsub.s32 1, %v2375
        %v2377 = vrot.slane %v2330, %v2376
        %v2378 = vlaneseq
        %v2379 = vshrl.u32 %v2378, 7
        %v2380 = vsub.s32 2, %v2379
        %v2381 = vrot.slane %v2330, %v2380
        %v2382 = vlaneseq
        %v2383 = vshrl.u32 %v2382, 7
        %v2384 = vsub.s32 3, %v2383
        %v2385 = vrot.slane %v2330, %v2384
        %v2386 = vlaneseq
        %v2387 = vshrl.u32 %v2386, 7
        %v2388 = vsub.s32 0, %v2387
        %v2389 = vrot.slane %v2337, %v2388
        %v2390 = vlaneseq
        %v2391 = vshrl.u32 %v2390, 7
        %v2392 = vsub.s32 1, %v2391
        %v2393 = vrot.slane %v2337, %v2392
        %v2394 = vlaneseq
        %v2395 = vshrl.u32 %v2394, 7
        %v2396 = vsub.s32 2, %v2395
        %v2397 = vrot.slane %v2337, %v2396
        %v2398 = vlaneseq
        %v2399 = vshrl.u32 %v2398, 7
        %v2400 = vsub.s32 3, %v2399
        %v2401 = vrot.slane %v2337, %v2400
        %v2402 = vmul.f32 %v2341, %v240
        %v2403 = vmul.f32 %v2341, %v241
        %v2404 = vmul.f32 %v2345, %v242
        %v2405 = vmul.f32 %v2345, %v243
        %v2406 = vmul.f32 %v2349, %v244
        %v2407 = vmul.f32 %v2349, %v245
        %v2408 = vmul.f32 %v2353, %v246
        %v2409 = vmul.f32 %v2353, %v247
        %v2410 = vmul.f32 %v2357, %v240
        %v2411 = vmul.f32 %v2357, %v241
        %v2412 = vmul.f32 %v2361, %v242
        %v2413 = vmul.f32 %v2361, %v243
        %v2414 = vmul.f32 %v2365, %v244
        %v2415 = vmul.f32 %v2365, %v245
        %v2416 = vmul.f32 %v2369, %v246
        %v2417 = vmul.f32 %v2369, %v247
        %v2418 = vmul.f32 %v2373, %v240
        %v2419 = vmul.f32 %v2373, %v241
        %v2420 = vmul.f32 %v2377, %v242
        %v2421 = vmul.f32 %v2377, %v243
        %v2422 = vmul.f32 %v2381, %v244
        %v2423 = vmul.f32 %v2381, %v245
        %v2424 = vmul.f32 %v2385, %v246
        %v2425 = vmul.f32 %v2385, %v247
        %v2426 = vmul.f32 %v2389, %v240
        %v2427 = vmul.f32 %v2389, %v241
        %v2428 = vmul.f32 %v2393, %v242
        %v2429 = vmul.f32 %v2393, %v243
        %v2430 = vmul.f32 %v2397, %v244
        %v2431 = vmul.f32 %v2397, %v245
        %v2432 = vmul.f32 %v2401, %v246
        %v2433 = vmul.f32 %v2401, %v247
        %v2434 = vsel %vm2216, %v2402, 0.0
        %v2435 = vsel %vm2216, %v2404, 0.0
        %v2436 = vadd.f32 %v2434, %v2435
        %v2437 = vsel %vm2216, %v2406, 0.0
        %v2438 = vadd.f32 %v2436, %v2437
        %v2439 = vsel %vm2216, %v2408, 0.0
        %v2440 = vadd.f32 %v2438, %v2439
        %v2441 = vsel %vm2224, %v2403, 0.0
        %v2442 = vsel %vm2224, %v2405, 0.0
        %v2443 = vadd.f32 %v2441, %v2442
        %v2444 = vsel %vm2224, %v2407, 0.0
        %v2445 = vadd.f32 %v2443, %v2444
        %v2446 = vsel %vm2224, %v2409, 0.0
        %v2447 = vadd.f32 %v2445, %v2446
        %v2448 = vsel %vm2216, %v2410, 0.0
        %v2449 = vsel %vm2216, %v2412, 0.0
        %v2450 = vadd.f32 %v2448, %v2449
        %v2451 = vsel %vm2216, %v2414, 0.0
        %v2452 = vadd.f32 %v2450, %v2451
        %v2453 = vsel %vm2216, %v2416, 0.0
        %v2454 = vadd.f32 %v2452, %v2453
        %v2455 = vsel %vm2224, %v2411, 0.0
        %v2456 = vsel %vm2224, %v2413, 0.0
        %v2457 = vadd.f32 %v2455, %v2456
        %v2458 = vsel %vm2224, %v2415, 0.0
        %v2459 = vadd.f32 %v2457, %v2458
        %v2460 = vsel %vm2224, %v2417, 0.0
        %v2461 = vadd.f32 %v2459, %v2460
        %v2462 = vsel %vm2216, %v2418, 0.0
        %v2463 = vsel %vm2216, %v2420, 0.0
        %v2464 = vadd.f32 %v2462, %v2463
        %v2465 = vsel %vm2216, %v2422, 0.0
        %v2466 = vadd.f32 %v2464, %v2465
        %v2467 = vsel %vm2216, %v2424, 0.0
        %v2468 = vadd.f32 %v2466, %v2467
        %v2469 = vsel %vm2224, %v2419, 0.0
        %v2470 = vsel %vm2224, %v2421, 0.0
        %v2471 = vadd.f32 %v2469, %v2470
        %v2472 = vsel %vm2224, %v2423, 0.0
        %v2473 = vadd.f32 %v2471, %v2472
        %v2474 = vsel %vm2224, %v2425, 0.0
        %v2475 = vadd.f32 %v2473, %v2474
        %v2476 = vsel %vm2216, %v2426, 0.0
        %v2477 = vsel %vm2216, %v2428, 0.0
        %v2478 = vadd.f32 %v2476, %v2477
        %v2479 = vsel %vm2216, %v2430, 0.0
        %v2480 = vadd.f32 %v2478, %v2479
        %v2481 = vsel %vm2216, %v2432, 0.0
        %v2482 = vadd.f32 %v2480, %v2481
        %v2483 = vsel %vm2224, %v2427, 0.0
        %v2484 = vsel %vm2224, %v2429, 0.0
        %v2485 = vadd.f32 %v2483, %v2484
        %v2486 = vsel %vm2224, %v2431, 0.0
        %v2487 = vadd.f32 %v2485, %v2486
        %v2488 = vsel %vm2224, %v2433, 0.0
        %v2489 = vadd.f32 %v2487, %v2488
        %2498 = vrot.lane.b32.xlu0 %v2440, 127
        %v2499 = vpop.permute.xlu0 %2498
        %2500 = vrot.lane.b32.xlu0 %v2447, 127
        %v2501 = vpop.permute.xlu0 %2500
        %2502 = vrot.lane.b32.xlu0 %v2454, 127
        %v2503 = vpop.permute.xlu0 %2502
        %2504 = vrot.lane.b32.xlu0 %v2461, 127
        %v2505 = vpop.permute.xlu0 %2504
        %2506 = vrot.lane.b32.xlu0 %v2468, 127
        %v2507 = vpop.permute.xlu0 %2506
        %2508 = vrot.lane.b32.xlu0 %v2475, 127
        %v2509 = vpop.permute.xlu0 %2508
        %2510 = vrot.lane.b32.xlu0 %v2482, 127
        %v2511 = vpop.permute.xlu0 %2510
        %2512 = vrot.lane.b32.xlu0 %v2489, 127
        %v2513 = vpop.permute.xlu0 %2512
        %v2522 = vadd.f32 %v2084, %v2499
        %v2523 = vadd.f32 %v2085, %v2501
        %v2524 = vadd.f32 %v2086, %v2503
        %v2525 = vadd.f32 %v2087, %v2505
        %v2526 = vadd.f32 %v2088, %v2507
        %v2527 = vadd.f32 %v2089, %v2509
        %v2528 = vadd.f32 %v2090, %v2511
        %v2529 = vadd.f32 %v2091, %v2513
        %v2530 = vlaneseq
        %v2531 = vshrl.u32 %v2530, 7
        %v2532 = vsub.s32 0, %v2531
        %v2533 = vrot.slane %v258, %v2532
        %2535 = vbcast.lane.b32.xlu0 %v2533, 256
        %v2536 = vpop.permute.xlu0 %2535
        %v2537 = vlaneseq
        %v2538 = vshrl.u32 %v2537, 7
        %v2539 = vsub.s32 1, %v2538
        %v2540 = vrot.slane %v258, %v2539
        %2542 = vbcast.lane.b32.xlu0 %v2540, 256
        %v2543 = vpop.permute.xlu0 %2542
        %v2544 = vlaneseq
        %v2545 = vshrl.u32 %v2544, 7
        %v2546 = vsub.s32 2, %v2545
        %v2547 = vrot.slane %v258, %v2546
        %2549 = vbcast.lane.b32.xlu0 %v2547, 256
        %v2550 = vpop.permute.xlu0 %2549
        %v2551 = vlaneseq
        %v2552 = vshrl.u32 %v2551, 7
        %v2553 = vsub.s32 3, %v2552
        %v2554 = vrot.slane %v258, %v2553
        %2556 = vbcast.lane.b32.xlu0 %v2554, 256
        %v2557 = vpop.permute.xlu0 %2556
        %v2558 = vlaneseq
        %v2559 = vshrl.u32 %v2558, 7
        %v2560 = vsub.s32 0, %v2559
        %v2561 = vrot.slane %v2536, %v2560
        %v2562 = vlaneseq
        %v2563 = vshrl.u32 %v2562, 7
        %v2564 = vsub.s32 1, %v2563
        %v2565 = vrot.slane %v2536, %v2564
        %v2566 = vlaneseq
        %v2567 = vshrl.u32 %v2566, 7
        %v2568 = vsub.s32 2, %v2567
        %v2569 = vrot.slane %v2536, %v2568
        %v2570 = vlaneseq
        %v2571 = vshrl.u32 %v2570, 7
        %v2572 = vsub.s32 3, %v2571
        %v2573 = vrot.slane %v2536, %v2572
        %v2574 = vlaneseq
        %v2575 = vshrl.u32 %v2574, 7
        %v2576 = vsub.s32 0, %v2575
        %v2577 = vrot.slane %v2543, %v2576
        %v2578 = vlaneseq
        %v2579 = vshrl.u32 %v2578, 7
        %v2580 = vsub.s32 1, %v2579
        %v2581 = vrot.slane %v2543, %v2580
        %v2582 = vlaneseq
        %v2583 = vshrl.u32 %v2582, 7
        %v2584 = vsub.s32 2, %v2583
        %v2585 = vrot.slane %v2543, %v2584
        %v2586 = vlaneseq
        %v2587 = vshrl.u32 %v2586, 7
        %v2588 = vsub.s32 3, %v2587
        %v2589 = vrot.slane %v2543, %v2588
        %v2590 = vlaneseq
        %v2591 = vshrl.u32 %v2590, 7
        %v2592 = vsub.s32 0, %v2591
        %v2593 = vrot.slane %v2550, %v2592
        %v2594 = vlaneseq
        %v2595 = vshrl.u32 %v2594, 7
        %v2596 = vsub.s32 1, %v2595
        %v2597 = vrot.slane %v2550, %v2596
        %v2598 = vlaneseq
        %v2599 = vshrl.u32 %v2598, 7
        %v2600 = vsub.s32 2, %v2599
        %v2601 = vrot.slane %v2550, %v2600
        %v2602 = vlaneseq
        %v2603 = vshrl.u32 %v2602, 7
        %v2604 = vsub.s32 3, %v2603
        %v2605 = vrot.slane %v2550, %v2604
        %v2606 = vlaneseq
        %v2607 = vshrl.u32 %v2606, 7
        %v2608 = vsub.s32 0, %v2607
        %v2609 = vrot.slane %v2557, %v2608
        %v2610 = vlaneseq
        %v2611 = vshrl.u32 %v2610, 7
        %v2612 = vsub.s32 1, %v2611
        %v2613 = vrot.slane %v2557, %v2612
        %v2614 = vlaneseq
        %v2615 = vshrl.u32 %v2614, 7
        %v2616 = vsub.s32 2, %v2615
        %v2617 = vrot.slane %v2557, %v2616
        %v2618 = vlaneseq
        %v2619 = vshrl.u32 %v2618, 7
        %v2620 = vsub.s32 3, %v2619
        %v2621 = vrot.slane %v2557, %v2620
        %v2622 = vmul.f32 %v2561, %v240
        %v2623 = vmul.f32 %v2561, %v241
        %v2624 = vmul.f32 %v2565, %v242
        %v2625 = vmul.f32 %v2565, %v243
        %v2626 = vmul.f32 %v2569, %v244
        %v2627 = vmul.f32 %v2569, %v245
        %v2628 = vmul.f32 %v2573, %v246
        %v2629 = vmul.f32 %v2573, %v247
        %v2630 = vmul.f32 %v2577, %v240
        %v2631 = vmul.f32 %v2577, %v241
        %v2632 = vmul.f32 %v2581, %v242
        %v2633 = vmul.f32 %v2581, %v243
        %v2634 = vmul.f32 %v2585, %v244
        %v2635 = vmul.f32 %v2585, %v245
        %v2636 = vmul.f32 %v2589, %v246
        %v2637 = vmul.f32 %v2589, %v247
        %v2638 = vmul.f32 %v2593, %v240
        %v2639 = vmul.f32 %v2593, %v241
        %v2640 = vmul.f32 %v2597, %v242
        %v2641 = vmul.f32 %v2597, %v243
        %v2642 = vmul.f32 %v2601, %v244
        %v2643 = vmul.f32 %v2601, %v245
        %v2644 = vmul.f32 %v2605, %v246
        %v2645 = vmul.f32 %v2605, %v247
        %v2646 = vmul.f32 %v2609, %v240
        %v2647 = vmul.f32 %v2609, %v241
        %v2648 = vmul.f32 %v2613, %v242
        %v2649 = vmul.f32 %v2613, %v243
        %v2650 = vmul.f32 %v2617, %v244
        %v2651 = vmul.f32 %v2617, %v245
        %v2652 = vmul.f32 %v2621, %v246
        %v2653 = vmul.f32 %v2621, %v247
        %vm2654 = vcmask 130050
        %v2655 = vsel %vm2654, %v2622, 0.0
        %v2656 = vsel %vm2654, %v2624, 0.0
        %v2657 = vadd.f32 %v2655, %v2656
        %v2658 = vsel %vm2654, %v2626, 0.0
        %v2659 = vadd.f32 %v2657, %v2658
        %v2660 = vsel %vm2654, %v2628, 0.0
        %v2661 = vadd.f32 %v2659, %v2660
        %vm2662 = vcmask 123904
        %v2663 = vsel %vm2662, %v2623, 0.0
        %v2664 = vsel %vm2662, %v2625, 0.0
        %v2665 = vadd.f32 %v2663, %v2664
        %v2666 = vsel %vm2662, %v2627, 0.0
        %v2667 = vadd.f32 %v2665, %v2666
        %v2668 = vsel %vm2662, %v2629, 0.0
        %v2669 = vadd.f32 %v2667, %v2668
        %v2670 = vsel %vm2654, %v2630, 0.0
        %v2671 = vsel %vm2654, %v2632, 0.0
        %v2672 = vadd.f32 %v2670, %v2671
        %v2673 = vsel %vm2654, %v2634, 0.0
        %v2674 = vadd.f32 %v2672, %v2673
        %v2675 = vsel %vm2654, %v2636, 0.0
        %v2676 = vadd.f32 %v2674, %v2675
        %v2677 = vsel %vm2662, %v2631, 0.0
        %v2678 = vsel %vm2662, %v2633, 0.0
        %v2679 = vadd.f32 %v2677, %v2678
        %v2680 = vsel %vm2662, %v2635, 0.0
        %v2681 = vadd.f32 %v2679, %v2680
        %v2682 = vsel %vm2662, %v2637, 0.0
        %v2683 = vadd.f32 %v2681, %v2682
        %v2684 = vsel %vm2654, %v2638, 0.0
        %v2685 = vsel %vm2654, %v2640, 0.0
        %v2686 = vadd.f32 %v2684, %v2685
        %v2687 = vsel %vm2654, %v2642, 0.0
        %v2688 = vadd.f32 %v2686, %v2687
        %v2689 = vsel %vm2654, %v2644, 0.0
        %v2690 = vadd.f32 %v2688, %v2689
        %v2691 = vsel %vm2662, %v2639, 0.0
        %v2692 = vsel %vm2662, %v2641, 0.0
        %v2693 = vadd.f32 %v2691, %v2692
        %v2694 = vsel %vm2662, %v2643, 0.0
        %v2695 = vadd.f32 %v2693, %v2694
        %v2696 = vsel %vm2662, %v2645, 0.0
        %v2697 = vadd.f32 %v2695, %v2696
        %v2698 = vsel %vm2654, %v2646, 0.0
        %v2699 = vsel %vm2654, %v2648, 0.0
        %v2700 = vadd.f32 %v2698, %v2699
        %v2701 = vsel %vm2654, %v2650, 0.0
        %v2702 = vadd.f32 %v2700, %v2701
        %v2703 = vsel %vm2654, %v2652, 0.0
        %v2704 = vadd.f32 %v2702, %v2703
        %v2705 = vsel %vm2662, %v2647, 0.0
        %v2706 = vsel %vm2662, %v2649, 0.0
        %v2707 = vadd.f32 %v2705, %v2706
        %v2708 = vsel %vm2662, %v2651, 0.0
        %v2709 = vadd.f32 %v2707, %v2708
        %v2710 = vsel %vm2662, %v2653, 0.0
        %v2711 = vadd.f32 %v2709, %v2710
        %v2720 = vrot.slane %v2661, 1
        %v2721 = vrot.slane %v2669, 1
        %v2722 = vsel %vm1049, %v2720, %v2721
        %v2723 = vrot.slane %v2676, 1
        %v2724 = vrot.slane %v2683, 1
        %v2725 = vsel %vm1049, %v2723, %v2724
        %v2726 = vrot.slane %v2690, 1
        %v2727 = vrot.slane %v2697, 1
        %v2728 = vsel %vm1049, %v2726, %v2727
        %v2729 = vrot.slane %v2704, 1
        %v2730 = vrot.slane %v2711, 1
        %v2731 = vsel %vm1049, %v2729, %v2730
        %v2740 = vadd.f32 %v1896, %v2722
        %v2741 = vadd.f32 %v1897, %v2721
        %v2742 = vadd.f32 %v1898, %v2725
        %v2743 = vadd.f32 %v1899, %v2724
        %v2744 = vadd.f32 %v1900, %v2728
        %v2745 = vadd.f32 %v1901, %v2727
        %v2746 = vadd.f32 %v1902, %v2731
        %v2747 = vadd.f32 %v1903, %v2730
        %v2748 = vlaneseq
        %v2749 = vshrl.u32 %v2748, 7
        %v2750 = vsub.s32 0, %v2749
        %v2751 = vrot.slane %v259, %v2750
        %2753 = vbcast.lane.b32.xlu0 %v2751, 256
        %v2754 = vpop.permute.xlu0 %2753
        %v2755 = vlaneseq
        %v2756 = vshrl.u32 %v2755, 7
        %v2757 = vsub.s32 1, %v2756
        %v2758 = vrot.slane %v259, %v2757
        %2760 = vbcast.lane.b32.xlu0 %v2758, 256
        %v2761 = vpop.permute.xlu0 %2760
        %v2762 = vlaneseq
        %v2763 = vshrl.u32 %v2762, 7
        %v2764 = vsub.s32 2, %v2763
        %v2765 = vrot.slane %v259, %v2764
        %2767 = vbcast.lane.b32.xlu0 %v2765, 256
        %v2768 = vpop.permute.xlu0 %2767
        %v2769 = vlaneseq
        %v2770 = vshrl.u32 %v2769, 7
        %v2771 = vsub.s32 3, %v2770
        %v2772 = vrot.slane %v259, %v2771
        %2774 = vbcast.lane.b32.xlu0 %v2772, 256
        %v2775 = vpop.permute.xlu0 %2774
        %v2776 = vlaneseq
        %v2777 = vshrl.u32 %v2776, 7
        %v2778 = vsub.s32 0, %v2777
        %v2779 = vrot.slane %v2754, %v2778
        %v2780 = vlaneseq
        %v2781 = vshrl.u32 %v2780, 7
        %v2782 = vsub.s32 1, %v2781
        %v2783 = vrot.slane %v2754, %v2782
        %v2784 = vlaneseq
        %v2785 = vshrl.u32 %v2784, 7
        %v2786 = vsub.s32 2, %v2785
        %v2787 = vrot.slane %v2754, %v2786
        %v2788 = vlaneseq
        %v2789 = vshrl.u32 %v2788, 7
        %v2790 = vsub.s32 3, %v2789
        %v2791 = vrot.slane %v2754, %v2790
        %v2792 = vlaneseq
        %v2793 = vshrl.u32 %v2792, 7
        %v2794 = vsub.s32 0, %v2793
        %v2795 = vrot.slane %v2761, %v2794
        %v2796 = vlaneseq
        %v2797 = vshrl.u32 %v2796, 7
        %v2798 = vsub.s32 1, %v2797
        %v2799 = vrot.slane %v2761, %v2798
        %v2800 = vlaneseq
        %v2801 = vshrl.u32 %v2800, 7
        %v2802 = vsub.s32 2, %v2801
        %v2803 = vrot.slane %v2761, %v2802
        %v2804 = vlaneseq
        %v2805 = vshrl.u32 %v2804, 7
        %v2806 = vsub.s32 3, %v2805
        %v2807 = vrot.slane %v2761, %v2806
        %v2808 = vlaneseq
        %v2809 = vshrl.u32 %v2808, 7
        %v2810 = vsub.s32 0, %v2809
        %v2811 = vrot.slane %v2768, %v2810
        %v2812 = vlaneseq
        %v2813 = vshrl.u32 %v2812, 7
        %v2814 = vsub.s32 1, %v2813
        %v2815 = vrot.slane %v2768, %v2814
        %v2816 = vlaneseq
        %v2817 = vshrl.u32 %v2816, 7
        %v2818 = vsub.s32 2, %v2817
        %v2819 = vrot.slane %v2768, %v2818
        %v2820 = vlaneseq
        %v2821 = vshrl.u32 %v2820, 7
        %v2822 = vsub.s32 3, %v2821
        %v2823 = vrot.slane %v2768, %v2822
        %v2824 = vlaneseq
        %v2825 = vshrl.u32 %v2824, 7
        %v2826 = vsub.s32 0, %v2825
        %v2827 = vrot.slane %v2775, %v2826
        %v2828 = vlaneseq
        %v2829 = vshrl.u32 %v2828, 7
        %v2830 = vsub.s32 1, %v2829
        %v2831 = vrot.slane %v2775, %v2830
        %v2832 = vlaneseq
        %v2833 = vshrl.u32 %v2832, 7
        %v2834 = vsub.s32 2, %v2833
        %v2835 = vrot.slane %v2775, %v2834
        %v2836 = vlaneseq
        %v2837 = vshrl.u32 %v2836, 7
        %v2838 = vsub.s32 3, %v2837
        %v2839 = vrot.slane %v2775, %v2838
        %v2840 = vmul.f32 %v2779, %v240
        %v2841 = vmul.f32 %v2779, %v241
        %v2842 = vmul.f32 %v2783, %v242
        %v2843 = vmul.f32 %v2783, %v243
        %v2844 = vmul.f32 %v2787, %v244
        %v2845 = vmul.f32 %v2787, %v245
        %v2846 = vmul.f32 %v2791, %v246
        %v2847 = vmul.f32 %v2791, %v247
        %v2848 = vmul.f32 %v2795, %v240
        %v2849 = vmul.f32 %v2795, %v241
        %v2850 = vmul.f32 %v2799, %v242
        %v2851 = vmul.f32 %v2799, %v243
        %v2852 = vmul.f32 %v2803, %v244
        %v2853 = vmul.f32 %v2803, %v245
        %v2854 = vmul.f32 %v2807, %v246
        %v2855 = vmul.f32 %v2807, %v247
        %v2856 = vmul.f32 %v2811, %v240
        %v2857 = vmul.f32 %v2811, %v241
        %v2858 = vmul.f32 %v2815, %v242
        %v2859 = vmul.f32 %v2815, %v243
        %v2860 = vmul.f32 %v2819, %v244
        %v2861 = vmul.f32 %v2819, %v245
        %v2862 = vmul.f32 %v2823, %v246
        %v2863 = vmul.f32 %v2823, %v247
        %v2864 = vmul.f32 %v2827, %v240
        %v2865 = vmul.f32 %v2827, %v241
        %v2866 = vmul.f32 %v2831, %v242
        %v2867 = vmul.f32 %v2831, %v243
        %v2868 = vmul.f32 %v2835, %v244
        %v2869 = vmul.f32 %v2835, %v245
        %v2870 = vmul.f32 %v2839, %v246
        %v2871 = vmul.f32 %v2839, %v247
        %vm2872 = vcmask 138250
        %v2873 = vsel %vm2872, %v2840, 0.0
        %v2874 = vsel %vm2872, %v2842, 0.0
        %v2875 = vadd.f32 %v2873, %v2874
        %v2876 = vsel %vm2872, %v2844, 0.0
        %v2877 = vadd.f32 %v2875, %v2876
        %v2878 = vsel %vm2872, %v2846, 0.0
        %v2879 = vadd.f32 %v2877, %v2878
        %vm2880 = vcmask 132104
        %v2881 = vsel %vm2880, %v2841, 0.0
        %v2882 = vsel %vm2880, %v2843, 0.0
        %v2883 = vadd.f32 %v2881, %v2882
        %v2884 = vsel %vm2880, %v2845, 0.0
        %v2885 = vadd.f32 %v2883, %v2884
        %v2886 = vsel %vm2880, %v2847, 0.0
        %v2887 = vadd.f32 %v2885, %v2886
        %v2888 = vsel %vm2872, %v2848, 0.0
        %v2889 = vsel %vm2872, %v2850, 0.0
        %v2890 = vadd.f32 %v2888, %v2889
        %v2891 = vsel %vm2872, %v2852, 0.0
        %v2892 = vadd.f32 %v2890, %v2891
        %v2893 = vsel %vm2872, %v2854, 0.0
        %v2894 = vadd.f32 %v2892, %v2893
        %v2895 = vsel %vm2880, %v2849, 0.0
        %v2896 = vsel %vm2880, %v2851, 0.0
        %v2897 = vadd.f32 %v2895, %v2896
        %v2898 = vsel %vm2880, %v2853, 0.0
        %v2899 = vadd.f32 %v2897, %v2898
        %v2900 = vsel %vm2880, %v2855, 0.0
        %v2901 = vadd.f32 %v2899, %v2900
        %v2902 = vsel %vm2872, %v2856, 0.0
        %v2903 = vsel %vm2872, %v2858, 0.0
        %v2904 = vadd.f32 %v2902, %v2903
        %v2905 = vsel %vm2872, %v2860, 0.0
        %v2906 = vadd.f32 %v2904, %v2905
        %v2907 = vsel %vm2872, %v2862, 0.0
        %v2908 = vadd.f32 %v2906, %v2907
        %v2909 = vsel %vm2880, %v2857, 0.0
        %v2910 = vsel %vm2880, %v2859, 0.0
        %v2911 = vadd.f32 %v2909, %v2910
        %v2912 = vsel %vm2880, %v2861, 0.0
        %v2913 = vadd.f32 %v2911, %v2912
        %v2914 = vsel %vm2880, %v2863, 0.0
        %v2915 = vadd.f32 %v2913, %v2914
        %v2916 = vsel %vm2872, %v2864, 0.0
        %v2917 = vsel %vm2872, %v2866, 0.0
        %v2918 = vadd.f32 %v2916, %v2917
        %v2919 = vsel %vm2872, %v2868, 0.0
        %v2920 = vadd.f32 %v2918, %v2919
        %v2921 = vsel %vm2872, %v2870, 0.0
        %v2922 = vadd.f32 %v2920, %v2921
        %v2923 = vsel %vm2880, %v2865, 0.0
        %v2924 = vsel %vm2880, %v2867, 0.0
        %v2925 = vadd.f32 %v2923, %v2924
        %v2926 = vsel %vm2880, %v2869, 0.0
        %v2927 = vadd.f32 %v2925, %v2926
        %v2928 = vsel %vm2880, %v2871, 0.0
        %v2929 = vadd.f32 %v2927, %v2928
        %v2938 = vrot.slane %v2879, 1
        %v2939 = vrot.slane %v2887, 1
        %v2940 = vsel %vm1049, %v2938, %v2939
        %v2941 = vrot.slane %v2894, 1
        %v2942 = vrot.slane %v2901, 1
        %v2943 = vsel %vm1049, %v2941, %v2942
        %v2944 = vrot.slane %v2908, 1
        %v2945 = vrot.slane %v2915, 1
        %v2946 = vsel %vm1049, %v2944, %v2945
        %v2947 = vrot.slane %v2922, 1
        %v2948 = vrot.slane %v2929, 1
        %v2949 = vsel %vm1049, %v2947, %v2948
        %2950 = vrot.lane.b32.xlu0 %v2940, 127
        %v2951 = vpop.permute.xlu0 %2950
        %2952 = vrot.lane.b32.xlu0 %v2939, 127
        %v2953 = vpop.permute.xlu0 %2952
        %2954 = vrot.lane.b32.xlu0 %v2943, 127
        %v2955 = vpop.permute.xlu0 %2954
        %2956 = vrot.lane.b32.xlu0 %v2942, 127
        %v2957 = vpop.permute.xlu0 %2956
        %2958 = vrot.lane.b32.xlu0 %v2946, 127
        %v2959 = vpop.permute.xlu0 %2958
        %2960 = vrot.lane.b32.xlu0 %v2945, 127
        %v2961 = vpop.permute.xlu0 %2960
        %2962 = vrot.lane.b32.xlu0 %v2949, 127
        %v2963 = vpop.permute.xlu0 %2962
        %2964 = vrot.lane.b32.xlu0 %v2948, 127
        %v2965 = vpop.permute.xlu0 %2964
        %v2974 = vadd.f32 %v2740, %v2951
        %v2975 = vadd.f32 %v2741, %v2953
        %v2976 = vadd.f32 %v2742, %v2955
        %v2977 = vadd.f32 %v2743, %v2957
        %v2978 = vadd.f32 %v2744, %v2959
        %v2979 = vadd.f32 %v2745, %v2961
        %v2980 = vadd.f32 %v2746, %v2963
        %v2981 = vadd.f32 %v2747, %v2965
        %v2982 = vlaneseq
        %v2983 = vshrl.u32 %v2982, 7
        %v2984 = vsub.s32 0, %v2983
        %v2985 = vrot.slane %v262, %v2984
        %2987 = vbcast.lane.b32.xlu0 %v2985, 256
        %v2988 = vpop.permute.xlu0 %2987
        %v2989 = vlaneseq
        %v2990 = vshrl.u32 %v2989, 7
        %v2991 = vsub.s32 1, %v2990
        %v2992 = vrot.slane %v262, %v2991
        %2994 = vbcast.lane.b32.xlu0 %v2992, 256
        %v2995 = vpop.permute.xlu0 %2994
        %v2996 = vlaneseq
        %v2997 = vshrl.u32 %v2996, 7
        %v2998 = vsub.s32 2, %v2997
        %v2999 = vrot.slane %v262, %v2998
        %3001 = vbcast.lane.b32.xlu0 %v2999, 256
        %v3002 = vpop.permute.xlu0 %3001
        %v3003 = vlaneseq
        %v3004 = vshrl.u32 %v3003, 7
        %v3005 = vsub.s32 3, %v3004
        %v3006 = vrot.slane %v262, %v3005
        %3008 = vbcast.lane.b32.xlu0 %v3006, 256
        %v3009 = vpop.permute.xlu0 %3008
        %v3010 = vlaneseq
        %v3011 = vshrl.u32 %v3010, 7
        %v3012 = vsub.s32 0, %v3011
        %v3013 = vrot.slane %v2988, %v3012
        %v3014 = vlaneseq
        %v3015 = vshrl.u32 %v3014, 7
        %v3016 = vsub.s32 1, %v3015
        %v3017 = vrot.slane %v2988, %v3016
        %v3018 = vlaneseq
        %v3019 = vshrl.u32 %v3018, 7
        %v3020 = vsub.s32 2, %v3019
        %v3021 = vrot.slane %v2988, %v3020
        %v3022 = vlaneseq
        %v3023 = vshrl.u32 %v3022, 7
        %v3024 = vsub.s32 3, %v3023
        %v3025 = vrot.slane %v2988, %v3024
        %v3026 = vlaneseq
        %v3027 = vshrl.u32 %v3026, 7
        %v3028 = vsub.s32 0, %v3027
        %v3029 = vrot.slane %v2995, %v3028
        %v3030 = vlaneseq
        %v3031 = vshrl.u32 %v3030, 7
        %v3032 = vsub.s32 1, %v3031
        %v3033 = vrot.slane %v2995, %v3032
        %v3034 = vlaneseq
        %v3035 = vshrl.u32 %v3034, 7
        %v3036 = vsub.s32 2, %v3035
        %v3037 = vrot.slane %v2995, %v3036
        %v3038 = vlaneseq
        %v3039 = vshrl.u32 %v3038, 7
        %v3040 = vsub.s32 3, %v3039
        %v3041 = vrot.slane %v2995, %v3040
        %v3042 = vlaneseq
        %v3043 = vshrl.u32 %v3042, 7
        %v3044 = vsub.s32 0, %v3043
        %v3045 = vrot.slane %v3002, %v3044
        %v3046 = vlaneseq
        %v3047 = vshrl.u32 %v3046, 7
        %v3048 = vsub.s32 1, %v3047
        %v3049 = vrot.slane %v3002, %v3048
        %v3050 = vlaneseq
        %v3051 = vshrl.u32 %v3050, 7
        %v3052 = vsub.s32 2, %v3051
        %v3053 = vrot.slane %v3002, %v3052
        %v3054 = vlaneseq
        %v3055 = vshrl.u32 %v3054, 7
        %v3056 = vsub.s32 3, %v3055
        %v3057 = vrot.slane %v3002, %v3056
        %v3058 = vlaneseq
        %v3059 = vshrl.u32 %v3058, 7
        %v3060 = vsub.s32 0, %v3059
        %v3061 = vrot.slane %v3009, %v3060
        %v3062 = vlaneseq
        %v3063 = vshrl.u32 %v3062, 7
        %v3064 = vsub.s32 1, %v3063
        %v3065 = vrot.slane %v3009, %v3064
        %v3066 = vlaneseq
        %v3067 = vshrl.u32 %v3066, 7
        %v3068 = vsub.s32 2, %v3067
        %v3069 = vrot.slane %v3009, %v3068
        %v3070 = vlaneseq
        %v3071 = vshrl.u32 %v3070, 7
        %v3072 = vsub.s32 3, %v3071
        %v3073 = vrot.slane %v3009, %v3072
        %v3074 = vmul.f32 %v3013, %v240
        %v3075 = vmul.f32 %v3013, %v241
        %v3076 = vmul.f32 %v3017, %v242
        %v3077 = vmul.f32 %v3017, %v243
        %v3078 = vmul.f32 %v3021, %v244
        %v3079 = vmul.f32 %v3021, %v245
        %v3080 = vmul.f32 %v3025, %v246
        %v3081 = vmul.f32 %v3025, %v247
        %v3082 = vmul.f32 %v3029, %v240
        %v3083 = vmul.f32 %v3029, %v241
        %v3084 = vmul.f32 %v3033, %v242
        %v3085 = vmul.f32 %v3033, %v243
        %v3086 = vmul.f32 %v3037, %v244
        %v3087 = vmul.f32 %v3037, %v245
        %v3088 = vmul.f32 %v3041, %v246
        %v3089 = vmul.f32 %v3041, %v247
        %v3090 = vmul.f32 %v3045, %v240
        %v3091 = vmul.f32 %v3045, %v241
        %v3092 = vmul.f32 %v3049, %v242
        %v3093 = vmul.f32 %v3049, %v243
        %v3094 = vmul.f32 %v3053, %v244
        %v3095 = vmul.f32 %v3053, %v245
        %v3096 = vmul.f32 %v3057, %v246
        %v3097 = vmul.f32 %v3057, %v247
        %v3098 = vmul.f32 %v3061, %v240
        %v3099 = vmul.f32 %v3061, %v241
        %v3100 = vmul.f32 %v3065, %v242
        %v3101 = vmul.f32 %v3065, %v243
        %v3102 = vmul.f32 %v3069, %v244
        %v3103 = vmul.f32 %v3069, %v245
        %v3104 = vmul.f32 %v3073, %v246
        %v3105 = vmul.f32 %v3073, %v247
        %v3106 = vsel %vm2872, %v3074, 0.0
        %v3107 = vsel %vm2872, %v3076, 0.0
        %v3108 = vadd.f32 %v3106, %v3107
        %v3109 = vsel %vm2872, %v3078, 0.0
        %v3110 = vadd.f32 %v3108, %v3109
        %v3111 = vsel %vm2872, %v3080, 0.0
        %v3112 = vadd.f32 %v3110, %v3111
        %v3113 = vsel %vm2880, %v3075, 0.0
        %v3114 = vsel %vm2880, %v3077, 0.0
        %v3115 = vadd.f32 %v3113, %v3114
        %v3116 = vsel %vm2880, %v3079, 0.0
        %v3117 = vadd.f32 %v3115, %v3116
        %v3118 = vsel %vm2880, %v3081, 0.0
        %v3119 = vadd.f32 %v3117, %v3118
        %v3120 = vsel %vm2872, %v3082, 0.0
        %v3121 = vsel %vm2872, %v3084, 0.0
        %v3122 = vadd.f32 %v3120, %v3121
        %v3123 = vsel %vm2872, %v3086, 0.0
        %v3124 = vadd.f32 %v3122, %v3123
        %v3125 = vsel %vm2872, %v3088, 0.0
        %v3126 = vadd.f32 %v3124, %v3125
        %v3127 = vsel %vm2880, %v3083, 0.0
        %v3128 = vsel %vm2880, %v3085, 0.0
        %v3129 = vadd.f32 %v3127, %v3128
        %v3130 = vsel %vm2880, %v3087, 0.0
        %v3131 = vadd.f32 %v3129, %v3130
        %v3132 = vsel %vm2880, %v3089, 0.0
        %v3133 = vadd.f32 %v3131, %v3132
        %v3134 = vsel %vm2872, %v3090, 0.0
        %v3135 = vsel %vm2872, %v3092, 0.0
        %v3136 = vadd.f32 %v3134, %v3135
        %v3137 = vsel %vm2872, %v3094, 0.0
        %v3138 = vadd.f32 %v3136, %v3137
        %v3139 = vsel %vm2872, %v3096, 0.0
        %v3140 = vadd.f32 %v3138, %v3139
        %v3141 = vsel %vm2880, %v3091, 0.0
        %v3142 = vsel %vm2880, %v3093, 0.0
        %v3143 = vadd.f32 %v3141, %v3142
        %v3144 = vsel %vm2880, %v3095, 0.0
        %v3145 = vadd.f32 %v3143, %v3144
        %v3146 = vsel %vm2880, %v3097, 0.0
        %v3147 = vadd.f32 %v3145, %v3146
        %v3148 = vsel %vm2872, %v3098, 0.0
        %v3149 = vsel %vm2872, %v3100, 0.0
        %v3150 = vadd.f32 %v3148, %v3149
        %v3151 = vsel %vm2872, %v3102, 0.0
        %v3152 = vadd.f32 %v3150, %v3151
        %v3153 = vsel %vm2872, %v3104, 0.0
        %v3154 = vadd.f32 %v3152, %v3153
        %v3155 = vsel %vm2880, %v3099, 0.0
        %v3156 = vsel %vm2880, %v3101, 0.0
        %v3157 = vadd.f32 %v3155, %v3156
        %v3158 = vsel %vm2880, %v3103, 0.0
        %v3159 = vadd.f32 %v3157, %v3158
        %v3160 = vsel %vm2880, %v3105, 0.0
        %v3161 = vadd.f32 %v3159, %v3160
        %v3170 = vrot.slane %v3112, 1
        %v3171 = vrot.slane %v3119, 1
        %v3172 = vsel %vm1049, %v3170, %v3171
        %v3173 = vrot.slane %v3126, 1
        %v3174 = vrot.slane %v3133, 1
        %v3175 = vsel %vm1049, %v3173, %v3174
        %v3176 = vrot.slane %v3140, 1
        %v3177 = vrot.slane %v3147, 1
        %v3178 = vsel %vm1049, %v3176, %v3177
        %v3179 = vrot.slane %v3154, 1
        %v3180 = vrot.slane %v3161, 1
        %v3181 = vsel %vm1049, %v3179, %v3180
        %v3190 = vadd.f32 %v2522, %v3172
        %v3191 = vadd.f32 %v2523, %v3171
        %v3192 = vadd.f32 %v2524, %v3175
        %v3193 = vadd.f32 %v2525, %v3174
        %v3194 = vadd.f32 %v2526, %v3178
        %v3195 = vadd.f32 %v2527, %v3177
        %v3196 = vadd.f32 %v2528, %v3181
        %v3197 = vadd.f32 %v2529, %v3180
        %v3198 = vlaneseq
        %v3199 = vshrl.u32 %v3198, 7
        %v3200 = vsub.s32 0, %v3199
        %v3201 = vrot.slane %v263, %v3200
        %3203 = vbcast.lane.b32.xlu0 %v3201, 256
        %v3204 = vpop.permute.xlu0 %3203
        %v3205 = vlaneseq
        %v3206 = vshrl.u32 %v3205, 7
        %v3207 = vsub.s32 1, %v3206
        %v3208 = vrot.slane %v263, %v3207
        %3210 = vbcast.lane.b32.xlu0 %v3208, 256
        %v3211 = vpop.permute.xlu0 %3210
        %v3212 = vlaneseq
        %v3213 = vshrl.u32 %v3212, 7
        %v3214 = vsub.s32 2, %v3213
        %v3215 = vrot.slane %v263, %v3214
        %3217 = vbcast.lane.b32.xlu0 %v3215, 256
        %v3218 = vpop.permute.xlu0 %3217
        %v3219 = vlaneseq
        %v3220 = vshrl.u32 %v3219, 7
        %v3221 = vsub.s32 3, %v3220
        %v3222 = vrot.slane %v263, %v3221
        %3224 = vbcast.lane.b32.xlu0 %v3222, 256
        %v3225 = vpop.permute.xlu0 %3224
        %v3226 = vlaneseq
        %v3227 = vshrl.u32 %v3226, 7
        %v3228 = vsub.s32 0, %v3227
        %v3229 = vrot.slane %v3204, %v3228
        %v3230 = vlaneseq
        %v3231 = vshrl.u32 %v3230, 7
        %v3232 = vsub.s32 1, %v3231
        %v3233 = vrot.slane %v3204, %v3232
        %v3234 = vlaneseq
        %v3235 = vshrl.u32 %v3234, 7
        %v3236 = vsub.s32 2, %v3235
        %v3237 = vrot.slane %v3204, %v3236
        %v3238 = vlaneseq
        %v3239 = vshrl.u32 %v3238, 7
        %v3240 = vsub.s32 3, %v3239
        %v3241 = vrot.slane %v3204, %v3240
        %v3242 = vlaneseq
        %v3243 = vshrl.u32 %v3242, 7
        %v3244 = vsub.s32 0, %v3243
        %v3245 = vrot.slane %v3211, %v3244
        %v3246 = vlaneseq
        %v3247 = vshrl.u32 %v3246, 7
        %v3248 = vsub.s32 1, %v3247
        %v3249 = vrot.slane %v3211, %v3248
        %v3250 = vlaneseq
        %v3251 = vshrl.u32 %v3250, 7
        %v3252 = vsub.s32 2, %v3251
        %v3253 = vrot.slane %v3211, %v3252
        %v3254 = vlaneseq
        %v3255 = vshrl.u32 %v3254, 7
        %v3256 = vsub.s32 3, %v3255
        %v3257 = vrot.slane %v3211, %v3256
        %v3258 = vlaneseq
        %v3259 = vshrl.u32 %v3258, 7
        %v3260 = vsub.s32 0, %v3259
        %v3261 = vrot.slane %v3218, %v3260
        %v3262 = vlaneseq
        %v3263 = vshrl.u32 %v3262, 7
        %v3264 = vsub.s32 1, %v3263
        %v3265 = vrot.slane %v3218, %v3264
        %v3266 = vlaneseq
        %v3267 = vshrl.u32 %v3266, 7
        %v3268 = vsub.s32 2, %v3267
        %v3269 = vrot.slane %v3218, %v3268
        %v3270 = vlaneseq
        %v3271 = vshrl.u32 %v3270, 7
        %v3272 = vsub.s32 3, %v3271
        %v3273 = vrot.slane %v3218, %v3272
        %v3274 = vlaneseq
        %v3275 = vshrl.u32 %v3274, 7
        %v3276 = vsub.s32 0, %v3275
        %v3277 = vrot.slane %v3225, %v3276
        %v3278 = vlaneseq
        %v3279 = vshrl.u32 %v3278, 7
        %v3280 = vsub.s32 1, %v3279
        %v3281 = vrot.slane %v3225, %v3280
        %v3282 = vlaneseq
        %v3283 = vshrl.u32 %v3282, 7
        %v3284 = vsub.s32 2, %v3283
        %v3285 = vrot.slane %v3225, %v3284
        %v3286 = vlaneseq
        %v3287 = vshrl.u32 %v3286, 7
        %v3288 = vsub.s32 3, %v3287
        %v3289 = vrot.slane %v3225, %v3288
        %v3290 = vmul.f32 %v3229, %v240
        %v3291 = vmul.f32 %v3229, %v241
        %v3292 = vmul.f32 %v3233, %v242
        %v3293 = vmul.f32 %v3233, %v243
        %v3294 = vmul.f32 %v3237, %v244
        %v3295 = vmul.f32 %v3237, %v245
        %v3296 = vmul.f32 %v3241, %v246
        %v3297 = vmul.f32 %v3241, %v247
        %v3298 = vmul.f32 %v3245, %v240
        %v3299 = vmul.f32 %v3245, %v241
        %v3300 = vmul.f32 %v3249, %v242
        %v3301 = vmul.f32 %v3249, %v243
        %v3302 = vmul.f32 %v3253, %v244
        %v3303 = vmul.f32 %v3253, %v245
        %v3304 = vmul.f32 %v3257, %v246
        %v3305 = vmul.f32 %v3257, %v247
        %v3306 = vmul.f32 %v3261, %v240
        %v3307 = vmul.f32 %v3261, %v241
        %v3308 = vmul.f32 %v3265, %v242
        %v3309 = vmul.f32 %v3265, %v243
        %v3310 = vmul.f32 %v3269, %v244
        %v3311 = vmul.f32 %v3269, %v245
        %v3312 = vmul.f32 %v3273, %v246
        %v3313 = vmul.f32 %v3273, %v247
        %v3314 = vmul.f32 %v3277, %v240
        %v3315 = vmul.f32 %v3277, %v241
        %v3316 = vmul.f32 %v3281, %v242
        %v3317 = vmul.f32 %v3281, %v243
        %v3318 = vmul.f32 %v3285, %v244
        %v3319 = vmul.f32 %v3285, %v245
        %v3320 = vmul.f32 %v3289, %v246
        %v3321 = vmul.f32 %v3289, %v247
        %vm3322 = vcmask 146450
        %v3323 = vsel %vm3322, %v3290, 0.0
        %v3324 = vsel %vm3322, %v3292, 0.0
        %v3325 = vadd.f32 %v3323, %v3324
        %v3326 = vsel %vm3322, %v3294, 0.0
        %v3327 = vadd.f32 %v3325, %v3326
        %v3328 = vsel %vm3322, %v3296, 0.0
        %v3329 = vadd.f32 %v3327, %v3328
        %vm3330 = vcmask 140304
        %v3331 = vsel %vm3330, %v3291, 0.0
        %v3332 = vsel %vm3330, %v3293, 0.0
        %v3333 = vadd.f32 %v3331, %v3332
        %v3334 = vsel %vm3330, %v3295, 0.0
        %v3335 = vadd.f32 %v3333, %v3334
        %v3336 = vsel %vm3330, %v3297, 0.0
        %v3337 = vadd.f32 %v3335, %v3336
        %v3338 = vsel %vm3322, %v3298, 0.0
        %v3339 = vsel %vm3322, %v3300, 0.0
        %v3340 = vadd.f32 %v3338, %v3339
        %v3341 = vsel %vm3322, %v3302, 0.0
        %v3342 = vadd.f32 %v3340, %v3341
        %v3343 = vsel %vm3322, %v3304, 0.0
        %v3344 = vadd.f32 %v3342, %v3343
        %v3345 = vsel %vm3330, %v3299, 0.0
        %v3346 = vsel %vm3330, %v3301, 0.0
        %v3347 = vadd.f32 %v3345, %v3346
        %v3348 = vsel %vm3330, %v3303, 0.0
        %v3349 = vadd.f32 %v3347, %v3348
        %v3350 = vsel %vm3330, %v3305, 0.0
        %v3351 = vadd.f32 %v3349, %v3350
        %v3352 = vsel %vm3322, %v3306, 0.0
        %v3353 = vsel %vm3322, %v3308, 0.0
        %v3354 = vadd.f32 %v3352, %v3353
        %v3355 = vsel %vm3322, %v3310, 0.0
        %v3356 = vadd.f32 %v3354, %v3355
        %v3357 = vsel %vm3322, %v3312, 0.0
        %v3358 = vadd.f32 %v3356, %v3357
        %v3359 = vsel %vm3330, %v3307, 0.0
        %v3360 = vsel %vm3330, %v3309, 0.0
        %v3361 = vadd.f32 %v3359, %v3360
        %v3362 = vsel %vm3330, %v3311, 0.0
        %v3363 = vadd.f32 %v3361, %v3362
        %v3364 = vsel %vm3330, %v3313, 0.0
        %v3365 = vadd.f32 %v3363, %v3364
        %v3366 = vsel %vm3322, %v3314, 0.0
        %v3367 = vsel %vm3322, %v3316, 0.0
        %v3368 = vadd.f32 %v3366, %v3367
        %v3369 = vsel %vm3322, %v3318, 0.0
        %v3370 = vadd.f32 %v3368, %v3369
        %v3371 = vsel %vm3322, %v3320, 0.0
        %v3372 = vadd.f32 %v3370, %v3371
        %v3373 = vsel %vm3330, %v3315, 0.0
        %v3374 = vsel %vm3330, %v3317, 0.0
        %v3375 = vadd.f32 %v3373, %v3374
        %v3376 = vsel %vm3330, %v3319, 0.0
        %v3377 = vadd.f32 %v3375, %v3376
        %v3378 = vsel %vm3330, %v3321, 0.0
        %v3379 = vadd.f32 %v3377, %v3378
        %v3388 = vrot.slane %v3329, 1
        %v3389 = vrot.slane %v3337, 1
        %v3390 = vsel %vm1049, %v3388, %v3389
        %v3391 = vrot.slane %v3344, 1
        %v3392 = vrot.slane %v3351, 1
        %v3393 = vsel %vm1049, %v3391, %v3392
        %v3394 = vrot.slane %v3358, 1
        %v3395 = vrot.slane %v3365, 1
        %v3396 = vsel %vm1049, %v3394, %v3395
        %v3397 = vrot.slane %v3372, 1
        %v3398 = vrot.slane %v3379, 1
        %v3399 = vsel %vm1049, %v3397, %v3398
        %3400 = vrot.lane.b32.xlu0 %v3390, 127
        %v3401 = vpop.permute.xlu0 %3400
        %3402 = vrot.lane.b32.xlu0 %v3389, 127
        %v3403 = vpop.permute.xlu0 %3402
        %3404 = vrot.lane.b32.xlu0 %v3393, 127
        %v3405 = vpop.permute.xlu0 %3404
        %3406 = vrot.lane.b32.xlu0 %v3392, 127
        %v3407 = vpop.permute.xlu0 %3406
        %3408 = vrot.lane.b32.xlu0 %v3396, 127
        %v3409 = vpop.permute.xlu0 %3408
        %3410 = vrot.lane.b32.xlu0 %v3395, 127
        %v3411 = vpop.permute.xlu0 %3410
        %3412 = vrot.lane.b32.xlu0 %v3399, 127
        %v3413 = vpop.permute.xlu0 %3412
        %3414 = vrot.lane.b32.xlu0 %v3398, 127
        %v3415 = vpop.permute.xlu0 %3414
        %v3424 = vadd.f32 %v3190, %v3401
        %v3425 = vadd.f32 %v3191, %v3403
        %v3426 = vadd.f32 %v3192, %v3405
        %v3427 = vadd.f32 %v3193, %v3407
        %v3428 = vadd.f32 %v3194, %v3409
        %v3429 = vadd.f32 %v3195, %v3411
        %v3430 = vadd.f32 %v3196, %v3413
        %v3431 = vadd.f32 %v3197, %v3415
        %v3432 = vld [vmem:[%s3] sm:$0xff]
        %v3433 = vld [vmem:[%s3 + $0x8] sm:$0xff]
        %s3434 = scalar_lea.vmem %s3, 16
        %v3435 = vld [vmem:[%s3434] sm:$0xff]
        %v3436 = vld [vmem:[%s3434 + $0x8] sm:$0xff]
        %3441 = vrot.lane.b32.xlu0 %v2306, 127
        %v3442 = vpop.permute.xlu0 %3441
        %3443 = vrot.lane.b32.xlu0 %v2307, 127
        %v3444 = vpop.permute.xlu0 %3443
        %3445 = vrot.lane.b32.xlu0 %v2308, 127
        %v3446 = vpop.permute.xlu0 %3445
        %3447 = vrot.lane.b32.xlu0 %v2309, 127
        %v3448 = vpop.permute.xlu0 %3447
        %v3449 = vsel %vm372, %v3442, 0
        %v3451 = vsel %vm372, %v3444, 0
        %v3453 = vsel %vm372, %v3446, 0
        %v3455 = vsel %vm372, %v3448, 0
        %3457 = vmatprep.subr.mxu0 0.0
        %3458 = vmatpush1.msra.mxu0 0.0
        %3459 = vmatprep.subr.mxu0 0.0
        %3460 = vmatpush1.msra.mxu0 0.0
        %3461 = vmatprep.subr.mxu0 0.0
        %3462 = vmatpush1.msra.mxu0 0.0
        %3463 = vmatprep.subr.mxu0 0.0
        %3464 = vmatpush1.msra.mxu0 0.0
        %3465 = vmatprep.subr.mxu0 0.0
        %3466 = vmatpush1.msra.mxu0 0.0
        %3467 = vmatprep.subr.mxu0 0.0
        %3468 = vmatpush1.msra.mxu0 0.0
        %3469 = vmatprep.subr.mxu0 0.0
        %3470 = vmatpush1.msra.mxu0 0.0
        %3471 = vmatprep.subr.mxu0 0.0
        %3472 = vmatpush1.msra.mxu0 0.0
        %3473 = vmatprep.subr.mxu0 0.0
        %3474 = vmatpush1.msra.mxu0 0.0
        %3475 = vmatprep.subr.mxu0 0.0
        %3476 = vmatpush1.msra.mxu0 0.0
        %3477 = vmatprep.subr.mxu0 0.0
        %3478 = vmatpush1.msra.mxu0 0.0
        %3479 = vmatprep.subr.mxu0 0.0
        %3480 = vmatpush1.msra.mxu0 0.0
        %3481 = vmatprep.subr.mxu0 0.0
        %3482 = vmatpush1.msra.mxu0 0.0
        %3483 = vmatprep.subr.mxu0 0.0
        %3484 = vmatpush1.msra.mxu0 0.0
        %3485 = vmatprep.subr.mxu0 0.0
        %3486 = vmatpush1.msra.mxu0 %v3436
        %3487 = vmatprep.subr.mxu0 0.0
        %3488 = vmatpush1.msra.mxu0 %v3435
        %3489 = vmatprep.subr.mxu0 0.0
        %3490 = vmatpush2.msra.mxu0 0.0
        %3491 = vmatprep.subr.mxu0 0.0
        %3492 = vmatpush2.msra.mxu0 0.0
        %3493 = vmatprep.subr.mxu0 0.0
        %3494 = vmatpush2.msra.mxu0 0.0
        %3495 = vmatprep.subr.mxu0 0.0
        %3496 = vmatpush2.msra.mxu0 0.0
        %3497 = vmatprep.subr.mxu0 0.0
        %3498 = vmatpush2.msra.mxu0 0.0
        %3499 = vmatprep.subr.mxu0 0.0
        %3500 = vmatpush2.msra.mxu0 0.0
        %3501 = vmatprep.subr.mxu0 0.0
        %3502 = vmatpush2.msra.mxu0 0.0
        %3503 = vmatprep.subr.mxu0 0.0
        %3504 = vmatpush2.msra.mxu0 0.0
        %3505 = vmatprep.subr.mxu0 0.0
        %3506 = vmatpush2.msra.mxu0 0.0
        %3507 = vmatprep.subr.mxu0 0.0
        %3508 = vmatpush2.msra.mxu0 0.0
        %3509 = vmatprep.subr.mxu0 0.0
        %3510 = vmatpush2.msra.mxu0 0.0
        %3511 = vmatprep.subr.mxu0 0.0
        %3512 = vmatpush2.msra.mxu0 0.0
        %3513 = vmatprep.subr.mxu0 0.0
        %3514 = vmatpush2.msra.mxu0 0.0
        %3515 = vmatprep.subr.mxu0 0.0
        %3516 = vmatpush2.msra.mxu0 0.0
        %3517 = vmatprep.subr.mxu0 0.0
        %3518 = vmatpush2.msra.mxu0 0.0
        %3519 = vmatprep.subr.mxu0 0.0
        %3520 = vmatpush2.msra.mxu0 0.0
        %3521 = vmatprep.mubr.f32.mxu0 0.0
        %3522 = vmatmul.mubr.f32.gmra.mxu0 %v3449
        %v3523 = vpop.f32.mrf.mxu0
        %v3524 = vadd.f32 0.0, %v3523
        %v3525 = vpop.f32.mrf.mxu0
        %3526 = vmatprep.mubr.f32.mxu0 0.0
        %3527 = vmatmul.mubr.f32.gmra.mxu0 %v3451
        %v3528 = vpop.f32.mrf.mxu0
        %v3529 = vadd.f32 0.0, %v3528
        %v3530 = vpop.f32.mrf.mxu0
        %3531 = vmatprep.mubr.f32.mxu0 0.0
        %3532 = vmatmul.mubr.f32.gmra.mxu0 %v3453
        %v3533 = vpop.f32.mrf.mxu0
        %v3534 = vadd.f32 0.0, %v3533
        %v3535 = vpop.f32.mrf.mxu0
        %3536 = vmatprep.mubr.f32.mxu0 0.0
        %3537 = vmatmul.mubr.f32.gmra.mxu0 %v3455
        %v3538 = vpop.f32.mrf.mxu0
        %v3539 = vadd.f32 0.0, %v3538
        %v3540 = vpop.f32.mrf.mxu0
        %3541 = vdwg.mxu0
        %v3543 = vsel %vm372, %v1472, 0
        %v3546 = vsel %vm372, %v1473, 0
        %v3549 = vsel %vm372, %v1474, 0
        %v3552 = vsel %vm372, %v1475, 0
        %3554 = vmatprep.subr.mxu0 0.0
        %3555 = vmatpush1.msra.mxu0 0.0
        %3556 = vmatprep.subr.mxu0 0.0
        %3557 = vmatpush1.msra.mxu0 0.0
        %3558 = vmatprep.subr.mxu0 0.0
        %3559 = vmatpush1.msra.mxu0 0.0
        %3560 = vmatprep.subr.mxu0 0.0
        %3561 = vmatpush1.msra.mxu0 0.0
        %3562 = vmatprep.subr.mxu0 0.0
        %3563 = vmatpush1.msra.mxu0 0.0
        %3564 = vmatprep.subr.mxu0 0.0
        %3565 = vmatpush1.msra.mxu0 0.0
        %3566 = vmatprep.subr.mxu0 0.0
        %3567 = vmatpush1.msra.mxu0 0.0
        %3568 = vmatprep.subr.mxu0 0.0
        %3569 = vmatpush1.msra.mxu0 0.0
        %3570 = vmatprep.subr.mxu0 0.0
        %3571 = vmatpush1.msra.mxu0 0.0
        %3572 = vmatprep.subr.mxu0 0.0
        %3573 = vmatpush1.msra.mxu0 0.0
        %3574 = vmatprep.subr.mxu0 0.0
        %3575 = vmatpush1.msra.mxu0 0.0
        %3576 = vmatprep.subr.mxu0 0.0
        %3577 = vmatpush1.msra.mxu0 0.0
        %3578 = vmatprep.subr.mxu0 0.0
        %3579 = vmatpush1.msra.mxu0 0.0
        %3580 = vmatprep.subr.mxu0 0.0
        %3581 = vmatpush1.msra.mxu0 0.0
        %3582 = vmatprep.subr.mxu0 0.0
        %3583 = vmatpush1.msra.mxu0 %v3433
        %3584 = vmatprep.subr.mxu0 0.0
        %3585 = vmatpush1.msra.mxu0 %v3432
        %3586 = vmatprep.subr.mxu0 0.0
        %3587 = vmatpush2.msra.mxu0 0.0
        %3588 = vmatprep.subr.mxu0 0.0
        %3589 = vmatpush2.msra.mxu0 0.0
        %3590 = vmatprep.subr.mxu0 0.0
        %3591 = vmatpush2.msra.mxu0 0.0
        %3592 = vmatprep.subr.mxu0 0.0
        %3593 = vmatpush2.msra.mxu0 0.0
        %3594 = vmatprep.subr.mxu0 0.0
        %3595 = vmatpush2.msra.mxu0 0.0
        %3596 = vmatprep.subr.mxu0 0.0
        %3597 = vmatpush2.msra.mxu0 0.0
        %3598 = vmatprep.subr.mxu0 0.0
        %3599 = vmatpush2.msra.mxu0 0.0
        %3600 = vmatprep.subr.mxu0 0.0
        %3601 = vmatpush2.msra.mxu0 0.0
        %3602 = vmatprep.subr.mxu0 0.0
        %3603 = vmatpush2.msra.mxu0 0.0
        %3604 = vmatprep.subr.mxu0 0.0
        %3605 = vmatpush2.msra.mxu0 0.0
        %3606 = vmatprep.subr.mxu0 0.0
        %3607 = vmatpush2.msra.mxu0 0.0
        %3608 = vmatprep.subr.mxu0 0.0
        %3609 = vmatpush2.msra.mxu0 0.0
        %3610 = vmatprep.subr.mxu0 0.0
        %3611 = vmatpush2.msra.mxu0 0.0
        %3612 = vmatprep.subr.mxu0 0.0
        %3613 = vmatpush2.msra.mxu0 0.0
        %3614 = vmatprep.subr.mxu0 0.0
        %3615 = vmatpush2.msra.mxu0 0.0
        %3616 = vmatprep.subr.mxu0 0.0
        %3617 = vmatpush2.msra.mxu0 0.0
        %3618 = vmatprep.mubr.f32.mxu0 0.0
        %3619 = vmatmul.mubr.f32.gmra.mxu0 %v3543
        %v3620 = vpop.f32.mrf.mxu0
        %v3621 = vadd.f32 %v3524, %v3620
        %v3622 = vpop.f32.mrf.mxu0
        %3623 = vmatprep.mubr.f32.mxu0 0.0
        %3624 = vmatmul.mubr.f32.gmra.mxu0 %v3546
        %v3625 = vpop.f32.mrf.mxu0
        %v3626 = vadd.f32 %v3529, %v3625
        %v3627 = vpop.f32.mrf.mxu0
        %3628 = vmatprep.mubr.f32.mxu0 0.0
        %3629 = vmatmul.mubr.f32.gmra.mxu0 %v3549
        %v3630 = vpop.f32.mrf.mxu0
        %v3631 = vadd.f32 %v3534, %v3630
        %v3632 = vpop.f32.mrf.mxu0
        %3633 = vmatprep.mubr.f32.mxu0 0.0
        %3634 = vmatmul.mubr.f32.gmra.mxu0 %v3552
        %v3635 = vpop.f32.mrf.mxu0
        %v3636 = vadd.f32 %v3539, %v3635
        %v3637 = vpop.f32.mrf.mxu0
        %3638 = vdwg.mxu0
        %v3647 = vrot.slane %v2974, 1
        %v3648 = vrot.slane %v2975, 1
        %v3649 = vsel %vm1049, %v3647, %v3648
        %v3650 = vrot.slane %v2976, 1
        %v3651 = vrot.slane %v2977, 1
        %v3652 = vsel %vm1049, %v3650, %v3651
        %v3653 = vrot.slane %v2978, 1
        %v3654 = vrot.slane %v2979, 1
        %v3655 = vsel %vm1049, %v3653, %v3654
        %v3656 = vrot.slane %v2980, 1
        %v3657 = vrot.slane %v2981, 1
        %v3658 = vsel %vm1049, %v3656, %v3657
        %v3667 = vrot.slane %v3424, 1
        %v3668 = vrot.slane %v3425, 1
        %v3669 = vsel %vm1049, %v3667, %v3668
        %v3670 = vrot.slane %v3426, 1
        %v3671 = vrot.slane %v3427, 1
        %v3672 = vsel %vm1049, %v3670, %v3671
        %v3673 = vrot.slane %v3428, 1
        %v3674 = vrot.slane %v3429, 1
        %v3675 = vsel %vm1049, %v3673, %v3674
        %v3676 = vrot.slane %v3430, 1
        %v3677 = vrot.slane %v3431, 1
        %v3678 = vsel %vm1049, %v3676, %v3677
        %3679 = vrot.lane.b32.xlu0 %v3669, 127
        %v3680 = vpop.permute.xlu0 %3679
        %3681 = vrot.lane.b32.xlu0 %v3672, 127
        %v3682 = vpop.permute.xlu0 %3681
        %3683 = vrot.lane.b32.xlu0 %v3675, 127
        %v3684 = vpop.permute.xlu0 %3683
        %3685 = vrot.lane.b32.xlu0 %v3678, 127
        %v3686 = vpop.permute.xlu0 %3685
        %v3687 = vsel %vm372, %v3680, 0
        %v3689 = vsel %vm372, %v3682, 0
        %v3691 = vsel %vm372, %v3684, 0
        %v3693 = vsel %vm372, %v3686, 0
        %3695 = vmatprep.subr.mxu0 0.0
        %3696 = vmatpush1.msra.mxu0 0.0
        %3697 = vmatprep.subr.mxu0 0.0
        %3698 = vmatpush1.msra.mxu0 0.0
        %3699 = vmatprep.subr.mxu0 0.0
        %3700 = vmatpush1.msra.mxu0 0.0
        %3701 = vmatprep.subr.mxu0 0.0
        %3702 = vmatpush1.msra.mxu0 0.0
        %3703 = vmatprep.subr.mxu0 0.0
        %3704 = vmatpush1.msra.mxu0 0.0
        %3705 = vmatprep.subr.mxu0 0.0
        %3706 = vmatpush1.msra.mxu0 0.0
        %3707 = vmatprep.subr.mxu0 0.0
        %3708 = vmatpush1.msra.mxu0 0.0
        %3709 = vmatprep.subr.mxu0 0.0
        %3710 = vmatpush1.msra.mxu0 0.0
        %3711 = vmatprep.subr.mxu0 0.0
        %3712 = vmatpush1.msra.mxu0 0.0
        %3713 = vmatprep.subr.mxu0 0.0
        %3714 = vmatpush1.msra.mxu0 0.0
        %3715 = vmatprep.subr.mxu0 0.0
        %3716 = vmatpush1.msra.mxu0 0.0
        %3717 = vmatprep.subr.mxu0 0.0
        %3718 = vmatpush1.msra.mxu0 0.0
        %3719 = vmatprep.subr.mxu0 0.0
        %3720 = vmatpush1.msra.mxu0 0.0
        %3721 = vmatprep.subr.mxu0 0.0
        %3722 = vmatpush1.msra.mxu0 0.0
        %3723 = vmatprep.subr.mxu0 0.0
        %3724 = vmatpush1.msra.mxu0 %v3436
        %3725 = vmatprep.subr.mxu0 0.0
        %3726 = vmatpush1.msra.mxu0 %v3435
        %3727 = vmatprep.subr.mxu0 0.0
        %3728 = vmatpush2.msra.mxu0 0.0
        %3729 = vmatprep.subr.mxu0 0.0
        %3730 = vmatpush2.msra.mxu0 0.0
        %3731 = vmatprep.subr.mxu0 0.0
        %3732 = vmatpush2.msra.mxu0 0.0
        %3733 = vmatprep.subr.mxu0 0.0
        %3734 = vmatpush2.msra.mxu0 0.0
        %3735 = vmatprep.subr.mxu0 0.0
        %3736 = vmatpush2.msra.mxu0 0.0
        %3737 = vmatprep.subr.mxu0 0.0
        %3738 = vmatpush2.msra.mxu0 0.0
        %3739 = vmatprep.subr.mxu0 0.0
        %3740 = vmatpush2.msra.mxu0 0.0
        %3741 = vmatprep.subr.mxu0 0.0
        %3742 = vmatpush2.msra.mxu0 0.0
        %3743 = vmatprep.subr.mxu0 0.0
        %3744 = vmatpush2.msra.mxu0 0.0
        %3745 = vmatprep.subr.mxu0 0.0
        %3746 = vmatpush2.msra.mxu0 0.0
        %3747 = vmatprep.subr.mxu0 0.0
        %3748 = vmatpush2.msra.mxu0 0.0
        %3749 = vmatprep.subr.mxu0 0.0
        %3750 = vmatpush2.msra.mxu0 0.0
        %3751 = vmatprep.subr.mxu0 0.0
        %3752 = vmatpush2.msra.mxu0 0.0
        %3753 = vmatprep.subr.mxu0 0.0
        %3754 = vmatpush2.msra.mxu0 0.0
        %3755 = vmatprep.subr.mxu0 0.0
        %3756 = vmatpush2.msra.mxu0 0.0
        %3757 = vmatprep.subr.mxu0 0.0
        %3758 = vmatpush2.msra.mxu0 0.0
        %3759 = vmatprep.mubr.f32.mxu0 0.0
        %3760 = vmatmul.mubr.f32.gmra.mxu0 %v3687
        %v3761 = vpop.f32.mrf.mxu0
        %v3762 = vadd.f32 0.0, %v3761
        %v3763 = vpop.f32.mrf.mxu0
        %3764 = vmatprep.mubr.f32.mxu0 0.0
        %3765 = vmatmul.mubr.f32.gmra.mxu0 %v3689
        %v3766 = vpop.f32.mrf.mxu0
        %v3767 = vadd.f32 0.0, %v3766
        %v3768 = vpop.f32.mrf.mxu0
        %3769 = vmatprep.mubr.f32.mxu0 0.0
        %3770 = vmatmul.mubr.f32.gmra.mxu0 %v3691
        %v3771 = vpop.f32.mrf.mxu0
        %v3772 = vadd.f32 0.0, %v3771
        %v3773 = vpop.f32.mrf.mxu0
        %3774 = vmatprep.mubr.f32.mxu0 0.0
        %3775 = vmatmul.mubr.f32.gmra.mxu0 %v3693
        %v3776 = vpop.f32.mrf.mxu0
        %v3777 = vadd.f32 0.0, %v3776
        %v3778 = vpop.f32.mrf.mxu0
        %3779 = vdwg.mxu0
        %v3780 = vsel %vm372, %v3649, 0
        %v3782 = vsel %vm372, %v3652, 0
        %v3784 = vsel %vm372, %v3655, 0
        %v3786 = vsel %vm372, %v3658, 0
        %3788 = vmatprep.subr.mxu0 0.0
        %3789 = vmatpush1.msra.mxu0 0.0
        %3790 = vmatprep.subr.mxu0 0.0
        %3791 = vmatpush1.msra.mxu0 0.0
        %3792 = vmatprep.subr.mxu0 0.0
        %3793 = vmatpush1.msra.mxu0 0.0
        %3794 = vmatprep.subr.mxu0 0.0
        %3795 = vmatpush1.msra.mxu0 0.0
        %3796 = vmatprep.subr.mxu0 0.0
        %3797 = vmatpush1.msra.mxu0 0.0
        %3798 = vmatprep.subr.mxu0 0.0
        %3799 = vmatpush1.msra.mxu0 0.0
        %3800 = vmatprep.subr.mxu0 0.0
        %3801 = vmatpush1.msra.mxu0 0.0
        %3802 = vmatprep.subr.mxu0 0.0
        %3803 = vmatpush1.msra.mxu0 0.0
        %3804 = vmatprep.subr.mxu0 0.0
        %3805 = vmatpush1.msra.mxu0 0.0
        %3806 = vmatprep.subr.mxu0 0.0
        %3807 = vmatpush1.msra.mxu0 0.0
        %3808 = vmatprep.subr.mxu0 0.0
        %3809 = vmatpush1.msra.mxu0 0.0
        %3810 = vmatprep.subr.mxu0 0.0
        %3811 = vmatpush1.msra.mxu0 0.0
        %3812 = vmatprep.subr.mxu0 0.0
        %3813 = vmatpush1.msra.mxu0 0.0
        %3814 = vmatprep.subr.mxu0 0.0
        %3815 = vmatpush1.msra.mxu0 0.0
        %3816 = vmatprep.subr.mxu0 0.0
        %3817 = vmatpush1.msra.mxu0 %v3433
        %3818 = vmatprep.subr.mxu0 0.0
        %3819 = vmatpush1.msra.mxu0 %v3432
        %3820 = vmatprep.subr.mxu0 0.0
        %3821 = vmatpush2.msra.mxu0 0.0
        %3822 = vmatprep.subr.mxu0 0.0
        %3823 = vmatpush2.msra.mxu0 0.0
        %3824 = vmatprep.subr.mxu0 0.0
        %3825 = vmatpush2.msra.mxu0 0.0
        %3826 = vmatprep.subr.mxu0 0.0
        %3827 = vmatpush2.msra.mxu0 0.0
        %3828 = vmatprep.subr.mxu0 0.0
        %3829 = vmatpush2.msra.mxu0 0.0
        %3830 = vmatprep.subr.mxu0 0.0
        %3831 = vmatpush2.msra.mxu0 0.0
        %3832 = vmatprep.subr.mxu0 0.0
        %3833 = vmatpush2.msra.mxu0 0.0
        %3834 = vmatprep.subr.mxu0 0.0
        %3835 = vmatpush2.msra.mxu0 0.0
        %3836 = vmatprep.subr.mxu0 0.0
        %3837 = vmatpush2.msra.mxu0 0.0
        %3838 = vmatprep.subr.mxu0 0.0
        %3839 = vmatpush2.msra.mxu0 0.0
        %3840 = vmatprep.subr.mxu0 0.0
        %3841 = vmatpush2.msra.mxu0 0.0
        %3842 = vmatprep.subr.mxu0 0.0
        %3843 = vmatpush2.msra.mxu0 0.0
        %3844 = vmatprep.subr.mxu0 0.0
        %3845 = vmatpush2.msra.mxu0 0.0
        %3846 = vmatprep.subr.mxu0 0.0
        %3847 = vmatpush2.msra.mxu0 0.0
        %3848 = vmatprep.subr.mxu0 0.0
        %3849 = vmatpush2.msra.mxu0 0.0
        %3850 = vmatprep.subr.mxu0 0.0
        %3851 = vmatpush2.msra.mxu0 0.0
        %3852 = vmatprep.mubr.f32.mxu0 0.0
        %3853 = vmatmul.mubr.f32.gmra.mxu0 %v3780
        %v3854 = vpop.f32.mrf.mxu0
        %v3855 = vadd.f32 %v3762, %v3854
        %v3856 = vpop.f32.mrf.mxu0
        %3857 = vmatprep.mubr.f32.mxu0 0.0
        %3858 = vmatmul.mubr.f32.gmra.mxu0 %v3782
        %v3859 = vpop.f32.mrf.mxu0
        %v3860 = vadd.f32 %v3767, %v3859
        %v3861 = vpop.f32.mrf.mxu0
        %3862 = vmatprep.mubr.f32.mxu0 0.0
        %3863 = vmatmul.mubr.f32.gmra.mxu0 %v3784
        %v3864 = vpop.f32.mrf.mxu0
        %v3865 = vadd.f32 %v3772, %v3864
        %v3866 = vpop.f32.mrf.mxu0
        %3867 = vmatprep.mubr.f32.mxu0 0.0
        %3868 = vmatmul.mubr.f32.gmra.mxu0 %v3786
        %v3869 = vpop.f32.mrf.mxu0
        %v3870 = vadd.f32 %v3777, %v3869
        %v3871 = vpop.f32.mrf.mxu0
        %3872 = vdwg.mxu0
        %v3873 = vld [vmem:[%s4] sm:$0xff]
        %s3874 = scalar_lea.vmem %s4, 8
        %v3875 = vld [vmem:[%s3874] sm:$0xff]
        %3876 = vxpose.xlu0.b32.start [1/16] %v3621, 128
        %3877 = vxpose.xlu0.b32.cont [2/16] 0.0, 128
        %3878 = vxpose.xlu0.b32.cont [3/16] 0.0, 128
        %3879 = vxpose.xlu0.b32.cont [4/16] 0.0, 128
        %3880 = vxpose.xlu0.b32.cont [5/16] 0.0, 128
        %3881 = vxpose.xlu0.b32.cont [6/16] 0.0, 128
        %3882 = vxpose.xlu0.b32.cont [7/16] 0.0, 128
        %3883 = vxpose.xlu0.b32.cont [8/16] 0.0, 128
        %3884 = vxpose.xlu0.b32.cont [9/16] 0.0, 128
        %3885 = vxpose.xlu0.b32.cont [10/16] 0.0, 128
        %3886 = vxpose.xlu0.b32.cont [11/16] 0.0, 128
        %3887 = vxpose.xlu0.b32.cont [12/16] 0.0, 128
        %3888 = vxpose.xlu0.b32.cont [13/16] 0.0, 128
        %3889 = vxpose.xlu0.b32.cont [14/16] 0.0, 128
        %3890 = vxpose.xlu0.b32.cont [15/16] 0.0, 128
        %3891 = vxpose.xlu0.b32.end [16/16] 0.0, 128
        %v3892 = vpop.trf.xlu0
        %v3893 = vpop.trf.xlu0
        %v3894 = vpop.trf.xlu0
        %v3895 = vpop.trf.xlu0
        %v3896 = vpop.trf.xlu0
        %v3897 = vpop.trf.xlu0
        %v3898 = vpop.trf.xlu0
        %v3899 = vpop.trf.xlu0
        %v3900 = vpop.trf.xlu0
        %v3901 = vpop.trf.xlu0
        %v3902 = vpop.trf.xlu0
        %v3903 = vpop.trf.xlu0
        %v3904 = vpop.trf.xlu0
        %v3905 = vpop.trf.xlu0
        %v3906 = vpop.trf.xlu0
        %v3907 = vpop.trf.xlu0
        %3908 = vxpose.xlu0.b32.start [1/16] %v3626, 128
        %3909 = vxpose.xlu0.b32.cont [2/16] 0.0, 128
        %3910 = vxpose.xlu0.b32.cont [3/16] 0.0, 128
        %3911 = vxpose.xlu0.b32.cont [4/16] 0.0, 128
        %3912 = vxpose.xlu0.b32.cont [5/16] 0.0, 128
        %3913 = vxpose.xlu0.b32.cont [6/16] 0.0, 128
        %3914 = vxpose.xlu0.b32.cont [7/16] 0.0, 128
        %3915 = vxpose.xlu0.b32.cont [8/16] 0.0, 128
        %3916 = vxpose.xlu0.b32.cont [9/16] 0.0, 128
        %3917 = vxpose.xlu0.b32.cont [10/16] 0.0, 128
        %3918 = vxpose.xlu0.b32.cont [11/16] 0.0, 128
        %3919 = vxpose.xlu0.b32.cont [12/16] 0.0, 128
        %3920 = vxpose.xlu0.b32.cont [13/16] 0.0, 128
        %3921 = vxpose.xlu0.b32.cont [14/16] 0.0, 128
        %3922 = vxpose.xlu0.b32.cont [15/16] 0.0, 128
        %3923 = vxpose.xlu0.b32.end [16/16] 0.0, 128
        %v3924 = vpop.trf.xlu0
        %v3925 = vpop.trf.xlu0
        %v3926 = vpop.trf.xlu0
        %v3927 = vpop.trf.xlu0
        %v3928 = vpop.trf.xlu0
        %v3929 = vpop.trf.xlu0
        %v3930 = vpop.trf.xlu0
        %v3931 = vpop.trf.xlu0
        %v3932 = vpop.trf.xlu0
        %v3933 = vpop.trf.xlu0
        %v3934 = vpop.trf.xlu0
        %v3935 = vpop.trf.xlu0
        %v3936 = vpop.trf.xlu0
        %v3937 = vpop.trf.xlu0
        %v3938 = vpop.trf.xlu0
        %v3939 = vpop.trf.xlu0
        %3940 = vxpose.xlu0.b32.start [1/16] %v3631, 128
        %3941 = vxpose.xlu0.b32.cont [2/16] 0.0, 128
        %3942 = vxpose.xlu0.b32.cont [3/16] 0.0, 128
        %3943 = vxpose.xlu0.b32.cont [4/16] 0.0, 128
        %3944 = vxpose.xlu0.b32.cont [5/16] 0.0, 128
        %3945 = vxpose.xlu0.b32.cont [6/16] 0.0, 128
        %3946 = vxpose.xlu0.b32.cont [7/16] 0.0, 128
        %3947 = vxpose.xlu0.b32.cont [8/16] 0.0, 128
        %3948 = vxpose.xlu0.b32.cont [9/16] 0.0, 128
        %3949 = vxpose.xlu0.b32.cont [10/16] 0.0, 128
        %3950 = vxpose.xlu0.b32.cont [11/16] 0.0, 128
        %3951 = vxpose.xlu0.b32.cont [12/16] 0.0, 128
        %3952 = vxpose.xlu0.b32.cont [13/16] 0.0, 128
        %3953 = vxpose.xlu0.b32.cont [14/16] 0.0, 128
        %3954 = vxpose.xlu0.b32.cont [15/16] 0.0, 128
        %3955 = vxpose.xlu0.b32.end [16/16] 0.0, 128
        %v3956 = vpop.trf.xlu0
        %v3957 = vpop.trf.xlu0
        %v3958 = vpop.trf.xlu0
        %v3959 = vpop.trf.xlu0
        %v3960 = vpop.trf.xlu0
        %v3961 = vpop.trf.xlu0
        %v3962 = vpop.trf.xlu0
        %v3963 = vpop.trf.xlu0
        %v3964 = vpop.trf.xlu0
        %v3965 = vpop.trf.xlu0
        %v3966 = vpop.trf.xlu0
        %v3967 = vpop.trf.xlu0
        %v3968 = vpop.trf.xlu0
        %v3969 = vpop.trf.xlu0
        %v3970 = vpop.trf.xlu0
        %v3971 = vpop.trf.xlu0
        %3972 = vxpose.xlu0.b32.start [1/16] %v3636, 128
        %3973 = vxpose.xlu0.b32.cont [2/16] 0.0, 128
        %3974 = vxpose.xlu0.b32.cont [3/16] 0.0, 128
        %3975 = vxpose.xlu0.b32.cont [4/16] 0.0, 128
        %3976 = vxpose.xlu0.b32.cont [5/16] 0.0, 128
        %3977 = vxpose.xlu0.b32.cont [6/16] 0.0, 128
        %3978 = vxpose.xlu0.b32.cont [7/16] 0.0, 128
        %3979 = vxpose.xlu0.b32.cont [8/16] 0.0, 128
        %3980 = vxpose.xlu0.b32.cont [9/16] 0.0, 128
        %3981 = vxpose.xlu0.b32.cont [10/16] 0.0, 128
        %3982 = vxpose.xlu0.b32.cont [11/16] 0.0, 128
        %3983 = vxpose.xlu0.b32.cont [12/16] 0.0, 128
        %3984 = vxpose.xlu0.b32.cont [13/16] 0.0, 128
        %3985 = vxpose.xlu0.b32.cont [14/16] 0.0, 128
        %3986 = vxpose.xlu0.b32.cont [15/16] 0.0, 128
        %3987 = vxpose.xlu0.b32.end [16/16] 0.0, 128
        %v3988 = vpop.trf.xlu0
        %v3989 = vpop.trf.xlu0
        %v3990 = vpop.trf.xlu0
        %v3991 = vpop.trf.xlu0
        %v3992 = vpop.trf.xlu0
        %v3993 = vpop.trf.xlu0
        %v3994 = vpop.trf.xlu0
        %v3995 = vpop.trf.xlu0
        %v3996 = vpop.trf.xlu0
        %v3997 = vpop.trf.xlu0
        %v3998 = vpop.trf.xlu0
        %v3999 = vpop.trf.xlu0
        %v4000 = vpop.trf.xlu0
        %v4001 = vpop.trf.xlu0
        %v4002 = vpop.trf.xlu0
        %v4003 = vpop.trf.xlu0
        %4004 = vxpose.xlu0.b32.start [1/16] %v3855, 128
        %4005 = vxpose.xlu0.b32.cont [2/16] 0.0, 128
        %4006 = vxpose.xlu0.b32.cont [3/16] 0.0, 128
        %4007 = vxpose.xlu0.b32.cont [4/16] 0.0, 128
        %4008 = vxpose.xlu0.b32.cont [5/16] 0.0, 128
        %4009 = vxpose.xlu0.b32.cont [6/16] 0.0, 128
        %4010 = vxpose.xlu0.b32.cont [7/16] 0.0, 128
        %4011 = vxpose.xlu0.b32.cont [8/16] 0.0, 128
        %4012 = vxpose.xlu0.b32.cont [9/16] 0.0, 128
        %4013 = vxpose.xlu0.b32.cont [10/16] 0.0, 128
        %4014 = vxpose.xlu0.b32.cont [11/16] 0.0, 128
        %4015 = vxpose.xlu0.b32.cont [12/16] 0.0, 128
        %4016 = vxpose.xlu0.b32.cont [13/16] 0.0, 128
        %4017 = vxpose.xlu0.b32.cont [14/16] 0.0, 128
        %4018 = vxpose.xlu0.b32.cont [15/16] 0.0, 128
        %4019 = vxpose.xlu0.b32.end [16/16] 0.0, 128
        %v4020 = vpop.trf.xlu0
        %v4021 = vpop.trf.xlu0
        %v4022 = vpop.trf.xlu0
        %v4023 = vpop.trf.xlu0
        %v4024 = vpop.trf.xlu0
        %v4025 = vpop.trf.xlu0
        %v4026 = vpop.trf.xlu0
        %v4027 = vpop.trf.xlu0
        %v4028 = vpop.trf.xlu0
        %v4029 = vpop.trf.xlu0
        %v4030 = vpop.trf.xlu0
        %v4031 = vpop.trf.xlu0
        %v4032 = vpop.trf.xlu0
        %v4033 = vpop.trf.xlu0
        %v4034 = vpop.trf.xlu0
        %v4035 = vpop.trf.xlu0
        %4036 = vxpose.xlu0.b32.start [1/16] %v3860, 128
        %4037 = vxpose.xlu0.b32.cont [2/16] 0.0, 128
        %4038 = vxpose.xlu0.b32.cont [3/16] 0.0, 128
        %4039 = vxpose.xlu0.b32.cont [4/16] 0.0, 128
        %4040 = vxpose.xlu0.b32.cont [5/16] 0.0, 128
        %4041 = vxpose.xlu0.b32.cont [6/16] 0.0, 128
        %4042 = vxpose.xlu0.b32.cont [7/16] 0.0, 128
        %4043 = vxpose.xlu0.b32.cont [8/16] 0.0, 128
        %4044 = vxpose.xlu0.b32.cont [9/16] 0.0, 128
        %4045 = vxpose.xlu0.b32.cont [10/16] 0.0, 128
        %4046 = vxpose.xlu0.b32.cont [11/16] 0.0, 128
        %4047 = vxpose.xlu0.b32.cont [12/16] 0.0, 128
        %4048 = vxpose.xlu0.b32.cont [13/16] 0.0, 128
        %4049 = vxpose.xlu0.b32.cont [14/16] 0.0, 128
        %4050 = vxpose.xlu0.b32.cont [15/16] 0.0, 128
        %4051 = vxpose.xlu0.b32.end [16/16] 0.0, 128
        %v4052 = vpop.trf.xlu0
        %v4053 = vpop.trf.xlu0
        %v4054 = vpop.trf.xlu0
        %v4055 = vpop.trf.xlu0
        %v4056 = vpop.trf.xlu0
        %v4057 = vpop.trf.xlu0
        %v4058 = vpop.trf.xlu0
        %v4059 = vpop.trf.xlu0
        %v4060 = vpop.trf.xlu0
        %v4061 = vpop.trf.xlu0
        %v4062 = vpop.trf.xlu0
        %v4063 = vpop.trf.xlu0
        %v4064 = vpop.trf.xlu0
        %v4065 = vpop.trf.xlu0
        %v4066 = vpop.trf.xlu0
        %v4067 = vpop.trf.xlu0
        %4068 = vxpose.xlu0.b32.start [1/16] %v3865, 128
        %4069 = vxpose.xlu0.b32.cont [2/16] 0.0, 128
        %4070 = vxpose.xlu0.b32.cont [3/16] 0.0, 128
        %4071 = vxpose.xlu0.b32.cont [4/16] 0.0, 128
        %4072 = vxpose.xlu0.b32.cont [5/16] 0.0, 128
        %4073 = vxpose.xlu0.b32.cont [6/16] 0.0, 128
        %4074 = vxpose.xlu0.b32.cont [7/16] 0.0, 128
        %4075 = vxpose.xlu0.b32.cont [8/16] 0.0, 128
        %4076 = vxpose.xlu0.b32.cont [9/16] 0.0, 128
        %4077 = vxpose.xlu0.b32.cont [10/16] 0.0, 128
        %4078 = vxpose.xlu0.b32.cont [11/16] 0.0, 128
        %4079 = vxpose.xlu0.b32.cont [12/16] 0.0, 128
        %4080 = vxpose.xlu0.b32.cont [13/16] 0.0, 128
        %4081 = vxpose.xlu0.b32.cont [14/16] 0.0, 128
        %4082 = vxpose.xlu0.b32.cont [15/16] 0.0, 128
        %4083 = vxpose.xlu0.b32.end [16/16] 0.0, 128
        %v4084 = vpop.trf.xlu0
        %v4085 = vpop.trf.xlu0
        %v4086 = vpop.trf.xlu0
        %v4087 = vpop.trf.xlu0
        %v4088 = vpop.trf.xlu0
        %v4089 = vpop.trf.xlu0
        %v4090 = vpop.trf.xlu0
        %v4091 = vpop.trf.xlu0
        %v4092 = vpop.trf.xlu0
        %v4093 = vpop.trf.xlu0
        %v4094 = vpop.trf.xlu0
        %v4095 = vpop.trf.xlu0
        %v4096 = vpop.trf.xlu0
        %v4097 = vpop.trf.xlu0
        %v4098 = vpop.trf.xlu0
        %v4099 = vpop.trf.xlu0
        %4100 = vxpose.xlu0.b32.start [1/16] %v3870, 128
        %4101 = vxpose.xlu0.b32.cont [2/16] 0.0, 128
        %4102 = vxpose.xlu0.b32.cont [3/16] 0.0, 128
        %4103 = vxpose.xlu0.b32.cont [4/16] 0.0, 128
        %4104 = vxpose.xlu0.b32.cont [5/16] 0.0, 128
        %4105 = vxpose.xlu0.b32.cont [6/16] 0.0, 128
        %4106 = vxpose.xlu0.b32.cont [7/16] 0.0, 128
        %4107 = vxpose.xlu0.b32.cont [8/16] 0.0, 128
        %4108 = vxpose.xlu0.b32.cont [9/16] 0.0, 128
        %4109 = vxpose.xlu0.b32.cont [10/16] 0.0, 128
        %4110 = vxpose.xlu0.b32.cont [11/16] 0.0, 128
        %4111 = vxpose.xlu0.b32.cont [12/16] 0.0, 128
        %4112 = vxpose.xlu0.b32.cont [13/16] 0.0, 128
        %4113 = vxpose.xlu0.b32.cont [14/16] 0.0, 128
        %4114 = vxpose.xlu0.b32.cont [15/16] 0.0, 128
        %4115 = vxpose.xlu0.b32.end [16/16] 0.0, 128
        %v4116 = vpop.trf.xlu0
        %v4117 = vpop.trf.xlu0
        %v4118 = vpop.trf.xlu0
        %v4119 = vpop.trf.xlu0
        %v4120 = vpop.trf.xlu0
        %v4121 = vpop.trf.xlu0
        %v4122 = vpop.trf.xlu0
        %v4123 = vpop.trf.xlu0
        %v4124 = vpop.trf.xlu0
        %v4125 = vpop.trf.xlu0
        %v4126 = vpop.trf.xlu0
        %v4127 = vpop.trf.xlu0
        %v4128 = vpop.trf.xlu0
        %v4129 = vpop.trf.xlu0
        %v4130 = vpop.trf.xlu0
        %v4131 = vpop.trf.xlu0
        %vm4132 = vcmask 64512
        %v4134 = vsel %vm4132, %v4020, 0
        %v4137 = vsel %vm4132, %v4021, 0
        %v4140 = vsel %vm4132, %v4022, 0
        %v4143 = vsel %vm4132, %v4023, 0
        %v4146 = vsel %vm4132, %v4052, 0
        %v4149 = vsel %vm4132, %v4053, 0
        %v4152 = vsel %vm4132, %v4054, 0
        %v4155 = vsel %vm4132, %v4055, 0
        %v4158 = vsel %vm4132, %v4084, 0
        %v4161 = vsel %vm4132, %v4085, 0
        %v4164 = vsel %vm4132, %v4086, 0
        %v4167 = vsel %vm4132, %v4087, 0
        %v4170 = vsel %vm4132, %v4116, 0
        %v4173 = vsel %vm4132, %v4117, 0
        %v4176 = vsel %vm4132, %v4118, 0
        %v4179 = vsel %vm4132, %v4119, 0
        %4181 = vmatprep.subr.mxu0 0.0
        %4182 = vmatpush1.msra.mxu0 0.0
        %4183 = vmatprep.subr.mxu0 0.0
        %4184 = vmatpush1.msra.mxu0 0.0
        %4185 = vmatprep.subr.mxu0 0.0
        %4186 = vmatpush1.msra.mxu0 0.0
        %4187 = vmatprep.subr.mxu0 0.0
        %4188 = vmatpush1.msra.mxu0 0.0
        %4189 = vmatprep.subr.mxu0 0.0
        %4190 = vmatpush1.msra.mxu0 0.0
        %4191 = vmatprep.subr.mxu0 0.0
        %4192 = vmatpush1.msra.mxu0 0.0
        %4193 = vmatprep.subr.mxu0 0.0
        %4194 = vmatpush1.msra.mxu0 0.0
        %4195 = vmatprep.subr.mxu0 0.0
        %4196 = vmatpush1.msra.mxu0 0.0
        %4197 = vmatprep.subr.mxu0 0.0
        %4198 = vmatpush1.msra.mxu0 0.0
        %4199 = vmatprep.subr.mxu0 0.0
        %4200 = vmatpush1.msra.mxu0 0.0
        %4201 = vmatprep.subr.mxu0 0.0
        %4202 = vmatpush1.msra.mxu0 0.0
        %4203 = vmatprep.subr.mxu0 0.0
        %4204 = vmatpush1.msra.mxu0 0.0
        %4205 = vmatprep.subr.mxu0 0.0
        %4206 = vmatpush1.msra.mxu0 0.0
        %4207 = vmatprep.subr.mxu0 0.0
        %4208 = vmatpush1.msra.mxu0 0.0
        %4209 = vmatprep.subr.mxu0 0.0
        %4210 = vmatpush1.msra.mxu0 0.0
        %4211 = vmatprep.subr.mxu0 0.0
        %4212 = vmatpush1.msra.mxu0 %v3875
        %4213 = vmatprep.subr.mxu0 0.0
        %4214 = vmatpush2.msra.mxu0 0.0
        %4215 = vmatprep.subr.mxu0 0.0
        %4216 = vmatpush2.msra.mxu0 0.0
        %4217 = vmatprep.subr.mxu0 0.0
        %4218 = vmatpush2.msra.mxu0 0.0
        %4219 = vmatprep.subr.mxu0 0.0
        %4220 = vmatpush2.msra.mxu0 0.0
        %4221 = vmatprep.subr.mxu0 0.0
        %4222 = vmatpush2.msra.mxu0 0.0
        %4223 = vmatprep.subr.mxu0 0.0
        %4224 = vmatpush2.msra.mxu0 0.0
        %4225 = vmatprep.subr.mxu0 0.0
        %4226 = vmatpush2.msra.mxu0 0.0
        %4227 = vmatprep.subr.mxu0 0.0
        %4228 = vmatpush2.msra.mxu0 0.0
        %4229 = vmatprep.subr.mxu0 0.0
        %4230 = vmatpush2.msra.mxu0 0.0
        %4231 = vmatprep.subr.mxu0 0.0
        %4232 = vmatpush2.msra.mxu0 0.0
        %4233 = vmatprep.subr.mxu0 0.0
        %4234 = vmatpush2.msra.mxu0 0.0
        %4235 = vmatprep.subr.mxu0 0.0
        %4236 = vmatpush2.msra.mxu0 0.0
        %4237 = vmatprep.subr.mxu0 0.0
        %4238 = vmatpush2.msra.mxu0 0.0
        %4239 = vmatprep.subr.mxu0 0.0
        %4240 = vmatpush2.msra.mxu0 0.0
        %4241 = vmatprep.subr.mxu0 0.0
        %4242 = vmatpush2.msra.mxu0 0.0
        %4243 = vmatprep.subr.mxu0 0.0
        %4244 = vmatpush2.msra.mxu0 0.0
        %4245 = vmatprep.mubr.f32.mxu0 0.0
        %4246 = vmatmul.mubr.f32.gmra.mxu0 %v4134
        %v4247 = vpop.f32.mrf.mxu0
        %v4248 = vadd.f32 0.0, %v4247
        %v4249 = vpop.f32.mrf.mxu0
        %4250 = vmatprep.mubr.f32.mxu0 0.0
        %4251 = vmatmul.mubr.f32.gmra.mxu0 %v4137
        %v4252 = vpop.f32.mrf.mxu0
        %v4253 = vadd.f32 0.0, %v4252
        %v4254 = vpop.f32.mrf.mxu0
        %4255 = vmatprep.mubr.f32.mxu0 0.0
        %4256 = vmatmul.mubr.f32.gmra.mxu0 %v4140
        %v4257 = vpop.f32.mrf.mxu0
        %v4258 = vadd.f32 0.0, %v4257
        %v4259 = vpop.f32.mrf.mxu0
        %4260 = vmatprep.mubr.f32.mxu0 0.0
        %4261 = vmatmul.mubr.f32.gmra.mxu0 %v4143
        %v4262 = vpop.f32.mrf.mxu0
        %v4263 = vadd.f32 0.0, %v4262
        %v4264 = vpop.f32.mrf.mxu0
        %4265 = vmatprep.mubr.f32.mxu0 0.0
        %4266 = vmatmul.mubr.f32.gmra.mxu0 %v4146
        %v4267 = vpop.f32.mrf.mxu0
        %v4268 = vadd.f32 0.0, %v4267
        %v4269 = vpop.f32.mrf.mxu0
        %4270 = vmatprep.mubr.f32.mxu0 0.0
        %4271 = vmatmul.mubr.f32.gmra.mxu0 %v4149
        %v4272 = vpop.f32.mrf.mxu0
        %v4273 = vadd.f32 0.0, %v4272
        %v4274 = vpop.f32.mrf.mxu0
        %4275 = vmatprep.mubr.f32.mxu0 0.0
        %4276 = vmatmul.mubr.f32.gmra.mxu0 %v4152
        %v4277 = vpop.f32.mrf.mxu0
        %v4278 = vadd.f32 0.0, %v4277
        %v4279 = vpop.f32.mrf.mxu0
        %4280 = vmatprep.mubr.f32.mxu0 0.0
        %4281 = vmatmul.mubr.f32.gmra.mxu0 %v4155
        %v4282 = vpop.f32.mrf.mxu0
        %v4283 = vadd.f32 0.0, %v4282
        %v4284 = vpop.f32.mrf.mxu0
        %4285 = vmatprep.mubr.f32.mxu0 0.0
        %4286 = vmatmul.mubr.f32.gmra.mxu0 %v4158
        %v4287 = vpop.f32.mrf.mxu0
        %v4288 = vadd.f32 0.0, %v4287
        %v4289 = vpop.f32.mrf.mxu0
        %4290 = vmatprep.mubr.f32.mxu0 0.0
        %4291 = vmatmul.mubr.f32.gmra.mxu0 %v4161
        %v4292 = vpop.f32.mrf.mxu0
        %v4293 = vadd.f32 0.0, %v4292
        %v4294 = vpop.f32.mrf.mxu0
        %4295 = vmatprep.mubr.f32.mxu0 0.0
        %4296 = vmatmul.mubr.f32.gmra.mxu0 %v4164
        %v4297 = vpop.f32.mrf.mxu0
        %v4298 = vadd.f32 0.0, %v4297
        %v4299 = vpop.f32.mrf.mxu0
        %4300 = vmatprep.mubr.f32.mxu0 0.0
        %4301 = vmatmul.mubr.f32.gmra.mxu0 %v4167
        %v4302 = vpop.f32.mrf.mxu0
        %v4303 = vadd.f32 0.0, %v4302
        %v4304 = vpop.f32.mrf.mxu0
        %4305 = vmatprep.mubr.f32.mxu0 0.0
        %4306 = vmatmul.mubr.f32.gmra.mxu0 %v4170
        %v4307 = vpop.f32.mrf.mxu0
        %v4308 = vadd.f32 0.0, %v4307
        %v4309 = vpop.f32.mrf.mxu0
        %4310 = vmatprep.mubr.f32.mxu0 0.0
        %4311 = vmatmul.mubr.f32.gmra.mxu0 %v4173
        %v4312 = vpop.f32.mrf.mxu0
        %v4313 = vadd.f32 0.0, %v4312
        %v4314 = vpop.f32.mrf.mxu0
        %4315 = vmatprep.mubr.f32.mxu0 0.0
        %4316 = vmatmul.mubr.f32.gmra.mxu0 %v4176
        %v4317 = vpop.f32.mrf.mxu0
        %v4318 = vadd.f32 0.0, %v4317
        %v4319 = vpop.f32.mrf.mxu0
        %4320 = vmatprep.mubr.f32.mxu0 0.0
        %4321 = vmatmul.mubr.f32.gmra.mxu0 %v4179
        %v4322 = vpop.f32.mrf.mxu0
        %v4323 = vadd.f32 0.0, %v4322
        %v4324 = vpop.f32.mrf.mxu0
        %4325 = vdwg.mxu0
        %v4327 = vsel %vm4132, %v3892, 0
        %v4330 = vsel %vm4132, %v3893, 0
        %v4333 = vsel %vm4132, %v3894, 0
        %v4336 = vsel %vm4132, %v3895, 0
        %v4339 = vsel %vm4132, %v3924, 0
        %v4342 = vsel %vm4132, %v3925, 0
        %v4345 = vsel %vm4132, %v3926, 0
        %v4348 = vsel %vm4132, %v3927, 0
        %v4351 = vsel %vm4132, %v3956, 0
        %v4354 = vsel %vm4132, %v3957, 0
        %v4357 = vsel %vm4132, %v3958, 0
        %v4360 = vsel %vm4132, %v3959, 0
        %v4363 = vsel %vm4132, %v3988, 0
        %v4366 = vsel %vm4132, %v3989, 0
        %v4369 = vsel %vm4132, %v3990, 0
        %v4372 = vsel %vm4132, %v3991, 0
        %4374 = vmatprep.subr.mxu0 0.0
        %4375 = vmatpush1.msra.mxu0 0.0
        %4376 = vmatprep.subr.mxu0 0.0
        %4377 = vmatpush1.msra.mxu0 0.0
        %4378 = vmatprep.subr.mxu0 0.0
        %4379 = vmatpush1.msra.mxu0 0.0
        %4380 = vmatprep.subr.mxu0 0.0
        %4381 = vmatpush1.msra.mxu0 0.0
        %4382 = vmatprep.subr.mxu0 0.0
        %4383 = vmatpush1.msra.mxu0 0.0
        %4384 = vmatprep.subr.mxu0 0.0
        %4385 = vmatpush1.msra.mxu0 0.0
        %4386 = vmatprep.subr.mxu0 0.0
        %4387 = vmatpush1.msra.mxu0 0.0
        %4388 = vmatprep.subr.mxu0 0.0
        %4389 = vmatpush1.msra.mxu0 0.0
        %4390 = vmatprep.subr.mxu0 0.0
        %4391 = vmatpush1.msra.mxu0 0.0
        %4392 = vmatprep.subr.mxu0 0.0
        %4393 = vmatpush1.msra.mxu0 0.0
        %4394 = vmatprep.subr.mxu0 0.0
        %4395 = vmatpush1.msra.mxu0 0.0
        %4396 = vmatprep.subr.mxu0 0.0
        %4397 = vmatpush1.msra.mxu0 0.0
        %4398 = vmatprep.subr.mxu0 0.0
        %4399 = vmatpush1.msra.mxu0 0.0
        %4400 = vmatprep.subr.mxu0 0.0
        %4401 = vmatpush1.msra.mxu0 0.0
        %4402 = vmatprep.subr.mxu0 0.0
        %4403 = vmatpush1.msra.mxu0 0.0
        %4404 = vmatprep.subr.mxu0 0.0
        %4405 = vmatpush1.msra.mxu0 %v3873
        %4406 = vmatprep.subr.mxu0 0.0
        %4407 = vmatpush2.msra.mxu0 0.0
        %4408 = vmatprep.subr.mxu0 0.0
        %4409 = vmatpush2.msra.mxu0 0.0
        %4410 = vmatprep.subr.mxu0 0.0
        %4411 = vmatpush2.msra.mxu0 0.0
        %4412 = vmatprep.subr.mxu0 0.0
        %4413 = vmatpush2.msra.mxu0 0.0
        %4414 = vmatprep.subr.mxu0 0.0
        %4415 = vmatpush2.msra.mxu0 0.0
        %4416 = vmatprep.subr.mxu0 0.0
        %4417 = vmatpush2.msra.mxu0 0.0
        %4418 = vmatprep.subr.mxu0 0.0
        %4419 = vmatpush2.msra.mxu0 0.0
        %4420 = vmatprep.subr.mxu0 0.0
        %4421 = vmatpush2.msra.mxu0 0.0
        %4422 = vmatprep.subr.mxu0 0.0
        %4423 = vmatpush2.msra.mxu0 0.0
        %4424 = vmatprep.subr.mxu0 0.0
        %4425 = vmatpush2.msra.mxu0 0.0
        %4426 = vmatprep.subr.mxu0 0.0
        %4427 = vmatpush2.msra.mxu0 0.0
        %4428 = vmatprep.subr.mxu0 0.0
        %4429 = vmatpush2.msra.mxu0 0.0
        %4430 = vmatprep.subr.mxu0 0.0
        %4431 = vmatpush2.msra.mxu0 0.0
        %4432 = vmatprep.subr.mxu0 0.0
        %4433 = vmatpush2.msra.mxu0 0.0
        %4434 = vmatprep.subr.mxu0 0.0
        %4435 = vmatpush2.msra.mxu0 0.0
        %4436 = vmatprep.subr.mxu0 0.0
        %4437 = vmatpush2.msra.mxu0 0.0
        %4438 = vmatprep.mubr.f32.mxu0 0.0
        %4439 = vmatmul.mubr.f32.gmra.mxu0 %v4327
        %v4440 = vpop.f32.mrf.mxu0
        %v4441 = vadd.f32 %v4248, %v4440
        %v4442 = vpop.f32.mrf.mxu0
        %4443 = vmatprep.mubr.f32.mxu0 0.0
        %4444 = vmatmul.mubr.f32.gmra.mxu0 %v4330
        %v4445 = vpop.f32.mrf.mxu0
        %v4446 = vadd.f32 %v4253, %v4445
        %v4447 = vpop.f32.mrf.mxu0
        %4448 = vmatprep.mubr.f32.mxu0 0.0
        %4449 = vmatmul.mubr.f32.gmra.mxu0 %v4333
        %v4450 = vpop.f32.mrf.mxu0
        %v4451 = vadd.f32 %v4258, %v4450
        %v4452 = vpop.f32.mrf.mxu0
        %4453 = vmatprep.mubr.f32.mxu0 0.0
        %4454 = vmatmul.mubr.f32.gmra.mxu0 %v4336
        %v4455 = vpop.f32.mrf.mxu0
        %v4456 = vadd.f32 %v4263, %v4455
        %v4457 = vpop.f32.mrf.mxu0
        %4458 = vmatprep.mubr.f32.mxu0 0.0
        %4459 = vmatmul.mubr.f32.gmra.mxu0 %v4339
        %v4460 = vpop.f32.mrf.mxu0
        %v4461 = vadd.f32 %v4268, %v4460
        %v4462 = vpop.f32.mrf.mxu0
        %4463 = vmatprep.mubr.f32.mxu0 0.0
        %4464 = vmatmul.mubr.f32.gmra.mxu0 %v4342
        %v4465 = vpop.f32.mrf.mxu0
        %v4466 = vadd.f32 %v4273, %v4465
        %v4467 = vpop.f32.mrf.mxu0
        %4468 = vmatprep.mubr.f32.mxu0 0.0
        %4469 = vmatmul.mubr.f32.gmra.mxu0 %v4345
        %v4470 = vpop.f32.mrf.mxu0
        %v4471 = vadd.f32 %v4278, %v4470
        %v4472 = vpop.f32.mrf.mxu0
        %4473 = vmatprep.mubr.f32.mxu0 0.0
        %4474 = vmatmul.mubr.f32.gmra.mxu0 %v4348
        %v4475 = vpop.f32.mrf.mxu0
        %v4476 = vadd.f32 %v4283, %v4475
        %v4477 = vpop.f32.mrf.mxu0
        %4478 = vmatprep.mubr.f32.mxu0 0.0
        %4479 = vmatmul.mubr.f32.gmra.mxu0 %v4351
        %v4480 = vpop.f32.mrf.mxu0
        %v4481 = vadd.f32 %v4288, %v4480
        %v4482 = vpop.f32.mrf.mxu0
        %4483 = vmatprep.mubr.f32.mxu0 0.0
        %4484 = vmatmul.mubr.f32.gmra.mxu0 %v4354
        %v4485 = vpop.f32.mrf.mxu0
        %v4486 = vadd.f32 %v4293, %v4485
        %v4487 = vpop.f32.mrf.mxu0
        %4488 = vmatprep.mubr.f32.mxu0 0.0
        %4489 = vmatmul.mubr.f32.gmra.mxu0 %v4357
        %v4490 = vpop.f32.mrf.mxu0
        %v4491 = vadd.f32 %v4298, %v4490
        %v4492 = vpop.f32.mrf.mxu0
        %4493 = vmatprep.mubr.f32.mxu0 0.0
        %4494 = vmatmul.mubr.f32.gmra.mxu0 %v4360
        %v4495 = vpop.f32.mrf.mxu0
        %v4496 = vadd.f32 %v4303, %v4495
        %v4497 = vpop.f32.mrf.mxu0
        %4498 = vmatprep.mubr.f32.mxu0 0.0
        %4499 = vmatmul.mubr.f32.gmra.mxu0 %v4363
        %v4500 = vpop.f32.mrf.mxu0
        %v4501 = vadd.f32 %v4308, %v4500
        %v4502 = vpop.f32.mrf.mxu0
        %4503 = vmatprep.mubr.f32.mxu0 0.0
        %4504 = vmatmul.mubr.f32.gmra.mxu0 %v4366
        %v4505 = vpop.f32.mrf.mxu0
        %v4506 = vadd.f32 %v4313, %v4505
        %v4507 = vpop.f32.mrf.mxu0
        %4508 = vmatprep.mubr.f32.mxu0 0.0
        %4509 = vmatmul.mubr.f32.gmra.mxu0 %v4369
        %v4510 = vpop.f32.mrf.mxu0
        %v4511 = vadd.f32 %v4318, %v4510
        %v4512 = vpop.f32.mrf.mxu0
        %4513 = vmatprep.mubr.f32.mxu0 0.0
        %4514 = vmatmul.mubr.f32.gmra.mxu0 %v4372
        %v4515 = vpop.f32.mrf.mxu0
        %v4516 = vadd.f32 %v4323, %v4515
        %v4517 = vpop.f32.mrf.mxu0
        %4518 = vdwg.mxu0
        %4519 = vxpose.xlu0.b32.start [1/16] %v4441, 128
        %4520 = vxpose.xlu0.b32.cont [2/16] %v4446, 128
        %4521 = vxpose.xlu0.b32.cont [3/16] %v4451, 128
        %4522 = vxpose.xlu0.b32.cont [4/16] %v4456, 128
        %4523 = vxpose.xlu0.b32.cont [5/16] 0.0, 128
        %4524 = vxpose.xlu0.b32.cont [6/16] 0.0, 128
        %4525 = vxpose.xlu0.b32.cont [7/16] 0.0, 128
        %4526 = vxpose.xlu0.b32.cont [8/16] 0.0, 128
        %4527 = vxpose.xlu0.b32.cont [9/16] 0.0, 128
        %4528 = vxpose.xlu0.b32.cont [10/16] 0.0, 128
        %4529 = vxpose.xlu0.b32.cont [11/16] 0.0, 128
        %4530 = vxpose.xlu0.b32.cont [12/16] 0.0, 128
        %4531 = vxpose.xlu0.b32.cont [13/16] 0.0, 128
        %4532 = vxpose.xlu0.b32.cont [14/16] 0.0, 128
        %4533 = vxpose.xlu0.b32.cont [15/16] 0.0, 128
        %4534 = vxpose.xlu0.b32.end [16/16] 0.0, 128
        %v4535 = vpop.trf.xlu0
        %v4536 = vpop.trf.xlu0
        %v4537 = vpop.trf.xlu0
        %v4538 = vpop.trf.xlu0
        %v4539 = vpop.trf.xlu0
        %v4540 = vpop.trf.xlu0
        %v4541 = vpop.trf.xlu0
        %v4542 = vpop.trf.xlu0
        %v4543 = vpop.trf.xlu0
        %v4544 = vpop.trf.xlu0
        %v4545 = vpop.trf.xlu0
        %v4546 = vpop.trf.xlu0
        %v4547 = vpop.trf.xlu0
        %v4548 = vpop.trf.xlu0
        %v4549 = vpop.trf.xlu0
        %v4550 = vpop.trf.xlu0
        %4551 = vxpose.xlu0.b32.start [1/16] %v4461, 128
        %4552 = vxpose.xlu0.b32.cont [2/16] %v4466, 128
        %4553 = vxpose.xlu0.b32.cont [3/16] %v4471, 128
        %4554 = vxpose.xlu0.b32.cont [4/16] %v4476, 128
        %4555 = vxpose.xlu0.b32.cont [5/16] 0.0, 128
        %4556 = vxpose.xlu0.b32.cont [6/16] 0.0, 128
        %4557 = vxpose.xlu0.b32.cont [7/16] 0.0, 128
        %4558 = vxpose.xlu0.b32.cont [8/16] 0.0, 128
        %4559 = vxpose.xlu0.b32.cont [9/16] 0.0, 128
        %4560 = vxpose.xlu0.b32.cont [10/16] 0.0, 128
        %4561 = vxpose.xlu0.b32.cont [11/16] 0.0, 128
        %4562 = vxpose.xlu0.b32.cont [12/16] 0.0, 128
        %4563 = vxpose.xlu0.b32.cont [13/16] 0.0, 128
        %4564 = vxpose.xlu0.b32.cont [14/16] 0.0, 128
        %4565 = vxpose.xlu0.b32.cont [15/16] 0.0, 128
        %4566 = vxpose.xlu0.b32.end [16/16] 0.0, 128
        %v4567 = vpop.trf.xlu0
        %v4568 = vpop.trf.xlu0
        %v4569 = vpop.trf.xlu0
        %v4570 = vpop.trf.xlu0
        %v4571 = vpop.trf.xlu0
        %v4572 = vpop.trf.xlu0
        %v4573 = vpop.trf.xlu0
        %v4574 = vpop.trf.xlu0
        %v4575 = vpop.trf.xlu0
        %v4576 = vpop.trf.xlu0
        %v4577 = vpop.trf.xlu0
        %v4578 = vpop.trf.xlu0
        %v4579 = vpop.trf.xlu0
        %v4580 = vpop.trf.xlu0
        %v4581 = vpop.trf.xlu0
        %v4582 = vpop.trf.xlu0
        %4583 = vxpose.xlu0.b32.start [1/16] %v4481, 128
        %4584 = vxpose.xlu0.b32.cont [2/16] %v4486, 128
        %4585 = vxpose.xlu0.b32.cont [3/16] %v4491, 128
        %4586 = vxpose.xlu0.b32.cont [4/16] %v4496, 128
        %4587 = vxpose.xlu0.b32.cont [5/16] 0.0, 128
        %4588 = vxpose.xlu0.b32.cont [6/16] 0.0, 128
        %4589 = vxpose.xlu0.b32.cont [7/16] 0.0, 128
        %4590 = vxpose.xlu0.b32.cont [8/16] 0.0, 128
        %4591 = vxpose.xlu0.b32.cont [9/16] 0.0, 128
        %4592 = vxpose.xlu0.b32.cont [10/16] 0.0, 128
        %4593 = vxpose.xlu0.b32.cont [11/16] 0.0, 128
        %4594 = vxpose.xlu0.b32.cont [12/16] 0.0, 128
        %4595 = vxpose.xlu0.b32.cont [13/16] 0.0, 128
        %4596 = vxpose.xlu0.b32.cont [14/16] 0.0, 128
        %4597 = vxpose.xlu0.b32.cont [15/16] 0.0, 128
        %4598 = vxpose.xlu0.b32.end [16/16] 0.0, 128
        %v4599 = vpop.trf.xlu0
        %v4600 = vpop.trf.xlu0
        %v4601 = vpop.trf.xlu0
        %v4602 = vpop.trf.xlu0
        %v4603 = vpop.trf.xlu0
        %v4604 = vpop.trf.xlu0
        %v4605 = vpop.trf.xlu0
        %v4606 = vpop.trf.xlu0
        %v4607 = vpop.trf.xlu0
        %v4608 = vpop.trf.xlu0
        %v4609 = vpop.trf.xlu0
        %v4610 = vpop.trf.xlu0
        %v4611 = vpop.trf.xlu0
        %v4612 = vpop.trf.xlu0
        %v4613 = vpop.trf.xlu0
        %v4614 = vpop.trf.xlu0
        %4615 = vxpose.xlu0.b32.start [1/16] %v4501, 128
        %4616 = vxpose.xlu0.b32.cont [2/16] %v4506, 128
        %4617 = vxpose.xlu0.b32.cont [3/16] %v4511, 128
        %4618 = vxpose.xlu0.b32.cont [4/16] %v4516, 128
        %4619 = vxpose.xlu0.b32.cont [5/16] 0.0, 128
        %4620 = vxpose.xlu0.b32.cont [6/16] 0.0, 128
        %4621 = vxpose.xlu0.b32.cont [7/16] 0.0, 128
        %4622 = vxpose.xlu0.b32.cont [8/16] 0.0, 128
        %4623 = vxpose.xlu0.b32.cont [9/16] 0.0, 128
        %4624 = vxpose.xlu0.b32.cont [10/16] 0.0, 128
        %4625 = vxpose.xlu0.b32.cont [11/16] 0.0, 128
        %4626 = vxpose.xlu0.b32.cont [12/16] 0.0, 128
        %4627 = vxpose.xlu0.b32.cont [13/16] 0.0, 128
        %4628 = vxpose.xlu0.b32.cont [14/16] 0.0, 128
        %4629 = vxpose.xlu0.b32.cont [15/16] 0.0, 128
        %4630 = vxpose.xlu0.b32.end [16/16] 0.0, 128
        %v4631 = vpop.trf.xlu0
        %v4632 = vpop.trf.xlu0
        %v4633 = vpop.trf.xlu0
        %v4634 = vpop.trf.xlu0
        %v4635 = vpop.trf.xlu0
        %v4636 = vpop.trf.xlu0
        %v4637 = vpop.trf.xlu0
        %v4638 = vpop.trf.xlu0
        %v4639 = vpop.trf.xlu0
        %v4640 = vpop.trf.xlu0
        %v4641 = vpop.trf.xlu0
        %v4642 = vpop.trf.xlu0
        %v4643 = vpop.trf.xlu0
        %v4644 = vpop.trf.xlu0
        %v4645 = vpop.trf.xlu0
        %v4646 = vpop.trf.xlu0
        %v4647 = vld [vmem:[%s2] sm:$0x1]
        %v4648 = vld [vmem:[%s2 + $0x1] sm:$0x1]
        %v4649 = vld [vmem:[%s2 + $0x2] sm:$0x1]
        %v4650 = vld [vmem:[%s2 + $0x3] sm:$0x1]
        %v4655 = vlaneseq
        %v4656 = vshrl.u32 %v4655, 7
        %v4657 = vsub.s32 0, %v4656
        %v4658 = vrot.slane %v4647, %v4657
        %v4659 = vlaneseq
        %v4660 = vshrl.u32 %v4659, 7
        %v4661 = vsub.s32 0, %v4660
        %v4662 = vrot.slane %v4648, %v4661
        %v4663 = vlaneseq
        %v4664 = vshrl.u32 %v4663, 7
        %v4665 = vsub.s32 0, %v4664
        %v4666 = vrot.slane %v4649, %v4665
        %v4667 = vlaneseq
        %v4668 = vshrl.u32 %v4667, 7
        %v4669 = vsub.s32 0, %v4668
        %v4670 = vrot.slane %v4650, %v4669
        %4671 = vset.pattern.permute.xlu0 0
        %4672 = vperm.xlu0 %4671, %v4658
        %v4673 = vpop.permute.xlu0 %4672
        %4675 = vset.pattern.permute.xlu0 0
        %4676 = vperm.xlu0 %4675, %v4662
        %v4677 = vpop.permute.xlu0 %4676
        %4679 = vset.pattern.permute.xlu0 0
        %4680 = vperm.xlu0 %4679, %v4666
        %v4681 = vpop.permute.xlu0 %4680
        %4683 = vset.pattern.permute.xlu0 0
        %4684 = vperm.xlu0 %4683, %v4670
        %v4685 = vpop.permute.xlu0 %4684
        %v4687 = vadd.f32 %v4535, %v4673
        %v4688 = vadd.f32 %v4536, %v4673
        %v4689 = vadd.f32 %v4567, %v4677
        %v4690 = vadd.f32 %v4568, %v4677
        %v4691 = vadd.f32 %v4599, %v4681
        %v4692 = vadd.f32 %v4600, %v4681
        %v4693 = vadd.f32 %v4631, %v4685
        %v4694 = vadd.f32 %v4632, %v4685
        %vm4695 = vcmask 261120
        %4696 = vst.msk [vmem:[%s231] sm:$0xff] %vm4695, %v4687
        %4697 = vst.msk [vmem:[%s231 + $0x8] sm:$0xff] %vm4695, %v4688
        %4698 = vst.msk [vmem:[%s231 + $0x10] sm:$0xff] %vm4695, %v4689
        %4699 = vst.msk [vmem:[%s231 + $0x18] sm:$0xff] %vm4695, %v4690
        %4700 = vst.msk [vmem:[%s231 + $0x20] sm:$0xff] %vm4695, %v4691
        %4701 = vst.msk [vmem:[%s231 + $0x28] sm:$0xff] %vm4695, %v4692
        %4702 = vst.msk [vmem:[%s231 + $0x30] sm:$0xff] %vm4695, %v4693
        %4703 = vst.msk [vmem:[%s231 + $0x38] sm:$0xff] %vm4695, %v4694
        %s4704 = sand.u32 %s151, 1
        %s4705 = scalar_lea.sflag [#allocation3], %s4704
        %s4706 = sand.u32 %s151, 1
        %s4707 = smul.addr %s4706, 64
        %s4708 = scalar_lea.vmem [#allocation2], %s4707
        // Predicated region
        $region41: #{tpu_custom_call.1} parent=39 // pred_check
          %p4709 = pneg %p161
        $region42: #{tpu_custom_call.1} parent=39 // pred_check_branch
          %4711 = sbr.rel (%p4709) target = $region44
        $region43: #{tpu_custom_call.1} parent=39 // pred_region
          #allocation5 [shape = 'u32[6]{0}', space=smem, size = 0x18, scoped, tag = 'DMA stride descriptor']
          %s4712 = smul.u32 2, %s24
          %s4714 = ssub.s32 1024, 1024
          %4715 = vsyncadd %s4705, %s4714
          %s4716 = smul.addr %s23, 16
          %s4717 = sadd.s32 %s4712, %s4716
          %s4718 = smul.addr %s4717, 128
          %s4719 = scalar_lea.hbm %s5, %s4718
          %s4721 = sshll.u32 1, 14
          %s4722 = sxor.u32 4294967295, %s4721
          %s4725 = sshll.u32 7, 18
          %s4726 = sxor.u32 4294967295, %s4725
          %s4727 = sand.u32 0, %s4726
          %s4729 = sor.u32 %s4727, 0
          %s4730 = sshll.u32 %s4708, 4
          %s4731 = int_to_ptr.vmem [resolvable:$true] %s4730
          %4737 = sst [smem:[#allocation5]] 256
          %s4738 = scalar_lea.smem [#allocation5], 1
          %4739 = sst [smem:[%s4738]] 512
          %s4740 = scalar_lea.smem [#allocation5], 2
          %4741 = sst [smem:[%s4740]] 2
          %s4742 = scalar_lea.smem [#allocation5], 3
          %4743 = sst [smem:[%s4742]] 128
          %s4744 = scalar_lea.smem [#allocation5], 4
          %4745 = sst [smem:[%s4744]] 128
          %s4746 = scalar_lea.smem [#allocation5], 5
          %4747 = sst [smem:[%s4746]] 8
          %4749 = dma.general %s4731, 1024, %s4719, %s4705, 131072, [#allocation5], %s4729, 0
        $region44: #{tpu_custom_call.1} parent=39 // pred_fallthru
          _
      $region40: #{tpu_custom_call.1} parent=5 // pred_fallthru
        _
      %p4750 = scmp.le.s32.totalorder 2, %s14
      // Predicated region
      $region45: #{tpu_custom_call.1} parent=5 // pred_check
        %p4751 = pneg %p4750
      $region46: #{tpu_custom_call.1} parent=5 // pred_check_branch
        %4753 = sbr.rel (%p4751) target = $region48
      $region47: #{tpu_custom_call.1} parent=5 // pred_region
        %s4754 = ssub.s32 %s14, 2
        // Predicated region
        $region49: #{tpu_custom_call.1} parent=47 // pred_check
          %p4755 = pneg %p167
        $region50: #{tpu_custom_call.1} parent=47 // pred_check_branch
          %4757 = sbr.rel (%p4755) target = $region52
        $region51: #{tpu_custom_call.1} parent=47 // pred_region
          %s4758 = sand.u32 %s152, 1
          %s4759 = scalar_lea.sflag [#allocation3], %s4758
          %s4760 = sand.u32 %s152, 1
          %s4761 = smul.addr %s4760, 64
          %s4762 = scalar_lea.vmem [#allocation2], %s4761
          %4763 = dma.done %s4759, 1024
        $region52: #{tpu_custom_call.1} parent=47 // pred_fallthru
          _
      $region48: #{tpu_custom_call.1} parent=5 // pred_fallthru
        _
    $region6: #{tpu_custom_call.1} parent=1 // loop_footer
      %s18 = sadd.s32 1, %s14
    $region7: #{tpu_custom_call.1} parent=1 // loop_footer_branch
      %13 = sbr.rel target = $region3
    $region8: #{tpu_custom_call.1} parent=1 // loop_exit
      _
    %4764 = vsyncpa [#allocation3], 1
    %s4765 = scalar_lea.sflag [#allocation3], 1
    %4766 = vsyncpa %s4765, 1

</llo_original>
